<compile_context>
chip_gen: v7x
topology: tpu7x:2x2x1
jax: 0.10.0
libtpu: 0.0.40
codegen_flags: <defaults>
</compile_context>

<pallas_src>
import jax
import jax.numpy as jnp
import numpy as np
from jax.experimental import pallas as pl
from jax.experimental.pallas import tpu as pltpu

# ----------------------- configuration (mirrors RNNBase.__init__) -----------------
SENSOR_TYPE = "lidar"
ATOM_O_ENV = 32                     # atom_num_inputs_o_env (lidar beam count)
DIM = 2
NUM_AGENTS = 3
UNORDERED = True
INDEPENDENT = False
SHARE = False
NO_RNN = False
NUM_SUBNETS = 1 if INDEPENDENT else NUM_AGENTS
O_ELSE = 4
ATOM_NUM_INPUTS = ATOM_O_ENV + DIM * (NUM_AGENTS - 1) + O_ELSE      # 40
NUM_INPUTS = ATOM_NUM_INPUTS * NUM_SUBNETS                          # 120

CNN1_C, CNN1_K, CNN1_S = 32, 5, 2
CNN2_C, CNN2_K, CNN2_S = 32, 3, 2
T1 = (ATOM_O_ENV - CNN1_K) // CNN1_S + 1                            # 14
T2 = (T1 - CNN2_K) // CNN2_S + 1                                    # 6
CNN_OUT = T2 * CNN2_C                                               # 192
CC = 2 * CNN1_C                                                     # 64 merged (critic|actor) channels
FC1, FC2, FC3 = 256, 128, 128
FC_O_PARTNER = 64
FC_IN = ATOM_NUM_INPUTS - ATOM_O_ENV + FC1 - DIM * (NUM_AGENTS - 1) + FC_O_PARTNER  # 324
STATE_SIZE = FC3 + FC3 * NUM_SUBNETS                                # 512

# -------------------- packed-buffer layouts (all offsets tile-aligned) -------------
# folded activation buffer [S*B, 384]: per subnet-major row
#   lanes [0:32)    o_env                (32)
#   lanes [128:136) partner(4) + o_else(4)
#   lanes [256:384) s_a * mask           (128)
FOLD_OENV, FOLD_X8, FOLD_SA, FOLD_W = 0, 128, 256, 384

# bf16 weight slab "wn128" [1024, 128] row offsets
R_PREP_C_ENV, R_PREP_A_ENV = 0, 256
R_PREP_C_PART, R_PREP_A_PART = 512, 640
R_WARP, R_WCRP = 768, 896
WN128_ROWS = 1024

# bf16 weight slab "wn384" [1408, 384] row offsets
R_W2T = 0                              # conv2 block-Toeplitz [896, 384]
R_WIH_C, R_WHH_C = 896, 1024
R_WIH_A, R_WHH_A = 1152, 1280
WN384_ROWS = 1408

# f32 bias slab [1, 4608] lane offsets (every segment a multiple of 128 lanes)
BO_B1 = 0                              # conv1 bias tiled over T1        (896)
BO_B2 = 896                            # conv2 bias tiled over T2        (384)
BO_BL = 1280                           # flatten-linear bias critic|actor (512)
BO_BPART = 1792                        # partner bias [c,c,a,a] pad128    (512)
BO_BPREP_C = 2304
BO_BPREP_A = 2432
BO_BARP = 2560
BO_BCRP = 2688
BO_BIH_C = 2816
BO_BHH_C = 3200
BO_BIH_A = 3584
BO_BHH_A = 3968
BO_WV = 4352                           # collapsed critic head weight    (128)
BO_BV = 4480                           # collapsed critic head bias bcast(128)
BO_TOTAL = 4608

_VMEM_SPEC = pl.BlockSpec(memory_space=pltpu.MemorySpace.VMEM)


# ------------------------------- the single fused kernel ---------------------------
def _fused_policy_kernel(fold_ref, st_ref, mk_ref, w1e_ref, wn384_ref, wl_ref,
                         wn128_ref, wsm_ref, b_ref, out_ref):
    f32, bf16 = jnp.float32, jnp.bfloat16
    relu = lambda v: jnp.maximum(v, 0.0)
    B = st_ref.shape[0]
    SB = fold_ref.shape[0]
    S = SB // B

    def bias(lo, n):
        return b_ref[:, lo:lo + n]                       # [1, n]

    def dot(x, w):
        return jnp.dot(x, w, preferred_element_type=f32)

    # ---- activations (already subnet-major / mask-scaled from the wrapper fold) ----
    fold = fold_ref[...]                                 # [SB, 384]
    o_env = fold[:, FOLD_OENV:FOLD_OENV + ATOM_O_ENV].astype(bf16)      # [SB, 32]
    x8 = fold[:, FOLD_X8:FOLD_X8 + 2 * DIM + O_ELSE]                    # [SB, 8]
    s_a_m = fold[:, FOLD_SA:FOLD_SA + FC3]                              # [SB, 128]
    s_c_m = st_ref[:, :FC3] * mk_ref[...]                               # [B, 128]

    # ---- CNN tower: critic+actor channels merged; convs as Toeplitz matmuls ----
    y1 = relu(dot(o_env, w1e_ref[...]) + bias(BO_B1, T1 * CC))          # [SB, 896]
    y2 = relu(dot(y1.astype(bf16), wn384_ref[R_W2T:R_W2T + T1 * CC, :])
              + bias(BO_B2, T2 * CC))                                   # [SB, 384]
    env = relu(dot(y2.astype(bf16), wl_ref[...]) + bias(BO_BL, 2 * FC1))  # [SB, 512]

    # ---- partner encoders (shared, summed over 2 partners) + o_else, one matmul ----
    sm = dot(x8, wsm_ref[...])                                          # [SB, 768]
    pe = relu(sm[:, 0:512] + bias(BO_BPART, 512))
    part_c = (pe[:, 0:128] + pe[:, 128:256]).astype(bf16)               # [SB,128] (hi 64 lanes 0)
    part_a = (pe[:, 256:384] + pe[:, 384:512]).astype(bf16)
    else_c = sm[:, 512:640]                                             # [SB,128]
    else_a = sm[:, 640:768]

    # ---- per-subnet prep linears ----
    xc = relu(dot(env[:, :FC1].astype(bf16), wn128_ref[R_PREP_C_ENV:R_PREP_C_ENV + FC1, :])
              + dot(part_c, wn128_ref[R_PREP_C_PART:R_PREP_C_PART + FC2, :])
              + else_c + bias(BO_BPREP_C, FC2))                         # [SB, 128]
    xa = relu(dot(env[:, FC1:].astype(bf16), wn128_ref[R_PREP_A_ENV:R_PREP_A_ENV + FC1, :])
              + dot(part_a, wn128_ref[R_PREP_A_PART:R_PREP_A_PART + FC2, :])
              + else_a + bias(BO_BPREP_A, FC2))                         # [SB, 128]

    # actor_rnn_prep
    xa = relu(dot(xa.astype(bf16), wn128_ref[R_WARP:R_WARP + FC2, :]) + bias(BO_BARP, FC3))

    # ---- subnet selection matrices from iota (no sel input, no row slicing) ----
    row = jax.lax.broadcasted_iota(jnp.int32, (B, SB), 0)
    col = jax.lax.broadcasted_iota(jnp.int32, (B, SB), 1)
    sels = [jnp.where(col == row + i * B, 1.0, 0.0) for i in range(S)]
    sel_sum = sels[0]
    for i in range(1, S):
        sel_sum = sel_sum + sels[i]

    # critic: sum over subnets, then critic_rnn_prep
    xc_sum = dot(sel_sum, xc)                                           # [B, 128]
    xc2 = relu(dot(xc_sum.astype(bf16), wn128_ref[R_WCRP:R_WCRP + FC2, :]) + bias(BO_BCRP, FC3))

    # ---- GRU cells (nn.GRUCell semantics; gate order r, z, n) ----
    def gru(x, h, r_wih, r_whh, bo_bih, bo_bhh):
        gi = dot(x.astype(bf16), wn384_ref[r_wih:r_wih + FC3, :]) + bias(bo_bih, 3 * FC3)
        gh = dot(h.astype(bf16), wn384_ref[r_whh:r_whh + FC3, :]) + bias(bo_bhh, 3 * FC3)
        r = jax.nn.sigmoid(gi[:, :FC3] + gh[:, :FC3])
        z = jax.nn.sigmoid(gi[:, FC3:2 * FC3] + gh[:, FC3:2 * FC3])
        n = jnp.tanh(gi[:, 2 * FC3:] + r * gh[:, 2 * FC3:])
        return (1.0 - z) * n + z * h

    h_c = gru(xc2, s_c_m, R_WIH_C, R_WHH_C, BO_BIH_C, BO_BHH_C)         # [B, 128]
    h_a = gru(xa, s_a_m, R_WIH_A, R_WHH_A, BO_BIH_A, BO_BHH_A)          # [SB, 128]

    # ---- collapsed critic value head: Linear(128,128) -> Linear(128,1) ----
    val = jnp.sum(h_c * bias(BO_WV, FC3), axis=-1, keepdims=True)       # [B, 1]
    val128 = jnp.broadcast_to(val, (B, FC3)) + bias(BO_BV, FC3)         # [B, 128]

    # ---- single lane-dense output: [h_c | h_a subnet 0..S-1 | value bcast] ----
    out_ref[:, 0:FC3] = h_c
    for i in range(S):
        out_ref[:, FC3 * (1 + i):FC3 * (2 + i)] = dot(sels[i], h_a)     # re-interleave
    out_ref[:, FC3 * (1 + S):FC3 * (2 + S)] = val128


# --------------------------------- parameter init ----------------------------------
def init_params(key):
    keys = iter(jax.random.split(key, 32))

    def dense(out_f, in_f):
        w = jax.random.normal(next(keys), (out_f, in_f), dtype=jnp.float32) / jnp.sqrt(float(in_f))
        return w, jnp.zeros((out_f,), jnp.float32)

    def conv(out_c, in_c, k):
        w = jax.random.normal(next(keys), (out_c, in_c, k), dtype=jnp.float32) / jnp.sqrt(float(in_c * k))
        return w, jnp.zeros((out_c,), jnp.float32)

    def ortho(rows, cols):
        a = jax.random.normal(next(keys), (rows, cols), dtype=jnp.float32)
        q, _ = jnp.linalg.qr(a)
        return q

    def cnn_tower():
        w1, b1 = conv(CNN1_C, 1, CNN1_K)
        w2, b2 = conv(CNN2_C, CNN1_C, CNN2_K)
        wl, bl = dense(FC1, CNN_OUT)
        return {"w1": w1, "b1": b1, "w2": w2, "b2": b2, "wl": wl, "bl": bl}

    def gru():
        return {
            "w_ih": ortho(3 * FC3, FC3), "w_hh": ortho(3 * FC3, FC3),
            "b_ih": jnp.zeros((3 * FC3,), jnp.float32),
            "b_hh": jnp.zeros((3 * FC3,), jnp.float32),
        }

    return {
        "critic_cnn": cnn_tower(),
        "actor_cnn": cnn_tower(),
        "critic_o_partner": dense(FC_O_PARTNER, DIM),
        "actor_o_partner": dense(FC_O_PARTNER, DIM),
        "critic_prep": dense(FC2, FC_IN),
        "actor_prep": dense(FC2, FC_IN),
        "critic_rnn_prep": dense(FC3, FC2),
        "actor_rnn_prep": dense(FC3, FC2),
        "critic_rnn": gru(),
        "actor_rnn": gru(),
        "critic_linear1": dense(FC3, FC3),
        "critic_linear2": dense(1, FC3),
    }


# -------------------- one-time weight pre-layout into packed slabs -----------------
def prepare_params(p):
    g = lambda a: np.asarray(jax.device_get(a), dtype=np.float32)

    # conv1 as one Toeplitz matmul [32, T1*CC]; critic+actor merged along channels.
    w1 = np.concatenate([g(p["critic_cnn"]["w1"]).reshape(CNN1_C, CNN1_K),
                         g(p["actor_cnn"]["w1"]).reshape(CNN1_C, CNN1_K)], axis=0)   # [CC, 5]
    w1e = np.zeros((ATOM_O_ENV, T1 * CC), np.float32)
    for t in range(T1):
        for k in range(CNN1_K):
            w1e[CNN1_S * t + k, t * CC:(t + 1) * CC] = w1[:, k]
    b1_t = np.tile(np.concatenate([g(p["critic_cnn"]["b1"]), g(p["actor_cnn"]["b1"])]), T1)

    # conv2 as one block-Toeplitz matmul [T1*CC, T2*CC].
    w2c, w2a = g(p["critic_cnn"]["w2"]), g(p["actor_cnn"]["w2"])                     # [32, 32, 3]
    w2t = np.zeros((T1 * CC, T2 * CC), np.float32)
    for t2 in range(T2):
        for k in range(CNN2_K):
            t1 = t2 * CNN2_S + k
            w2t[t1 * CC:t1 * CC + CNN2_C, t2 * CC:t2 * CC + CNN2_C] = w2c[:, :, k].T
            w2t[t1 * CC + CNN2_C:(t1 + 1) * CC, t2 * CC + CNN2_C:(t2 + 1) * CC] = w2a[:, :, k].T
    b2_t = np.tile(np.concatenate([g(p["critic_cnn"]["b2"]), g(p["actor_cnn"]["b2"])]), T2)

    # Flatten (torch channel-major) + Linear(192,256): permutation baked into [384, 512].
    wlc, wla = g(p["critic_cnn"]["wl"]), g(p["actor_cnn"]["wl"])                     # [256, 192]
    wl = np.zeros((T2 * CC, 2 * FC1), np.float32)
    for t2 in range(T2):
        for c in range(CNN2_C):
            wl[t2 * CC + c, :FC1] = wlc[:, c * T2 + t2]
            wl[t2 * CC + CNN2_C + c, FC1:] = wla[:, c * T2 + t2]
    bl = np.concatenate([g(p["critic_cnn"]["bl"]), g(p["actor_cnn"]["bl"])])

    # partner-pair + o_else weights folded into one [8, 768] f32 matmul operand.
    wpc, bpc = g(p["critic_o_partner"][0]), g(p["critic_o_partner"][1])              # [64,2], [64]
    wpa, bpa = g(p["actor_o_partner"][0]), g(p["actor_o_partner"][1])
    wprc, wpra = g(p["critic_prep"][0]), g(p["actor_prep"][0])                       # [128, 324]
    wsm = np.zeros((2 * DIM + O_ELSE, 768), np.float32)
    wsm[0:DIM, 0:FC_O_PARTNER] = wpc.T
    wsm[DIM:2 * DIM, 128:128 + FC_O_PARTNER] = wpc.T
    wsm[0:DIM, 256:256 + FC_O_PARTNER] = wpa.T
    wsm[DIM:2 * DIM, 384:384 + FC_O_PARTNER] = wpa.T
    wsm[2 * DIM:, 512:640] = wprc[:, FC1 + FC_O_PARTNER:].T                          # [4, 128]
    wsm[2 * DIM:, 640:768] = wpra[:, FC1 + FC_O_PARTNER:].T
    bpart = np.zeros(512, np.float32)
    bpart[0:FC_O_PARTNER] = bpc
    bpart[128:128 + FC_O_PARTNER] = bpc
    bpart[256:256 + FC_O_PARTNER] = bpa
    bpart[384:384 + FC_O_PARTNER] = bpa

    # bf16 slab, output width 128: prep env/partner(K padded to 128), rnn preps.
    wn128 = np.zeros((WN128_ROWS, FC2), np.float32)
    wn128[R_PREP_C_ENV:R_PREP_C_ENV + FC1, :] = wprc[:, :FC1].T
    wn128[R_PREP_A_ENV:R_PREP_A_ENV + FC1, :] = wpra[:, :FC1].T
    wn128[R_PREP_C_PART:R_PREP_C_PART + FC_O_PARTNER, :] = wprc[:, FC1:FC1 + FC_O_PARTNER].T
    wn128[R_PREP_A_PART:R_PREP_A_PART + FC_O_PARTNER, :] = wpra[:, FC1:FC1 + FC_O_PARTNER].T
    wn128[R_WARP:R_WARP + FC2, :] = g(p["actor_rnn_prep"][0]).T
    wn128[R_WCRP:R_WCRP + FC2, :] = g(p["critic_rnn_prep"][0]).T

    # bf16 slab, output width 384: conv2-Toeplitz + both GRU cells.
    wn384 = np.zeros((WN384_ROWS, 3 * FC3), np.float32)
    wn384[R_W2T:R_W2T + T1 * CC, :] = w2t
    wn384[R_WIH_C:R_WIH_C + FC3, :] = g(p["critic_rnn"]["w_ih"]).T
    wn384[R_WHH_C:R_WHH_C + FC3, :] = g(p["critic_rnn"]["w_hh"]).T
    wn384[R_WIH_A:R_WIH_A + FC3, :] = g(p["actor_rnn"]["w_ih"]).T
    wn384[R_WHH_A:R_WHH_A + FC3, :] = g(p["actor_rnn"]["w_hh"]).T

    # collapsed critic head: Linear(128,128) -> Linear(128,1), no activation between.
    w1_, b1_ = p["critic_linear1"]
    w2_, b2_ = p["critic_linear2"]
    wv = (g(w2_) @ g(w1_)).reshape(-1)                                   # [128]
    bv = float((g(w2_) @ g(b1_))[0] + g(b2_)[0])                         # scalar

    # f32 bias / small-vector slab [1, 4608].
    slab = np.zeros((1, BO_TOTAL), np.float32)

    def put(off, vec):
        vec = np.asarray(vec, np.float32).reshape(-1)
        slab[0, off:off + vec.shape[0]] = vec

    put(BO_B1, b1_t); put(BO_B2, b2_t); put(BO_BL, bl); put(BO_BPART, bpart)
    put(BO_BPREP_C, g(p["critic_prep"][1])); put(BO_BPREP_A, g(p["actor_prep"][1]))
    put(BO_BARP, g(p["actor_rnn_prep"][1])); put(BO_BCRP, g(p["critic_rnn_prep"][1]))
    put(BO_BIH_C, g(p["critic_rnn"]["b_ih"])); put(BO_BHH_C, g(p["critic_rnn"]["b_hh"]))
    put(BO_BIH_A, g(p["actor_rnn"]["b_ih"])); put(BO_BHH_A, g(p["actor_rnn"]["b_hh"]))
    put(BO_WV, wv)
    slab[0, BO_BV:BO_BV + FC3] = bv                                      # bv broadcast over 128 lanes

    return {
        "w1e": jnp.asarray(w1e, jnp.bfloat16),
        "wn384": jnp.asarray(wn384, jnp.bfloat16),
        "wl": jnp.asarray(wl, jnp.bfloat16),
        "wn128": jnp.asarray(wn128, jnp.bfloat16),
        "wsmall": jnp.asarray(wsm, jnp.float32),
        "bias": jnp.asarray(slab, jnp.float32),
    }


# ------------------------------- RNNBase.forward -----------------------------------
def rnnbase_forward(prep, inputs, states, masks):
    """(value, actor_features, new_states) = base(inputs, states, masks)."""
    B = inputs.shape[0]
    S = NUM_SUBNETS

    # Single fused fold (one tiny XLA op): subnet-major rows, 128-aligned lane segments.
    per = inputs.reshape(B, S, ATOM_NUM_INPUTS)
    s_a_m = states[:, FC3:].reshape(B, S, FC3) * masks[:, None, :]
    pad0 = jnp.zeros((B, S, 128 - ATOM_O_ENV), jnp.float32)
    pad1 = jnp.zeros((B, S, 128 - (ATOM_NUM_INPUTS - ATOM_O_ENV)), jnp.float32)
    folded = jnp.concatenate(
        [per[:, :, :ATOM_O_ENV], pad0, per[:, :, ATOM_O_ENV:], pad1, s_a_m], axis=-1)
    folded = jnp.transpose(folded, (1, 0, 2)).reshape(S * B, FOLD_W)     # [SB, 384]

    out = pl.pallas_call(
        _fused_policy_kernel,
        out_shape=jax.ShapeDtypeStruct((B, (2 + S) * FC3), jnp.float32),
        in_specs=[_VMEM_SPEC] * 9,
        out_specs=_VMEM_SPEC,
    )(folded, states, masks,
      prep["w1e"], prep["wn384"], prep["wl"], prep["wn128"],
      prep["wsmall"], prep["bias"])

    new_states = out[:, :STATE_SIZE]                                     # [B, 512]
    actor_features = out[:, FC3:STATE_SIZE]                              # [B, S*128]
    value = out[:, STATE_SIZE:STATE_SIZE + 1]                            # [B, 1]
    return value, actor_features, new_states


# ----------------------------------------- main ------------------------------------
if __name__ == "__main__":
    key = jax.random.PRNGKey(0)
    kp, ki, ks = jax.random.split(key, 3)
    params = init_params(kp)
    prep = prepare_params(params)          # one-time weight layout for the fused kernel

    B = 2
    inputs = jax.random.normal(ki, (B, NUM_INPUTS), dtype=jnp.float32)   # [2, 120]
    states = jax.random.normal(ks, (B, STATE_SIZE), dtype=jnp.float32)   # [2, 512]
    masks = jnp.ones((B, 1), dtype=jnp.float32)

    fwd = jax.jit(rnnbase_forward)
    value, actor_features, new_states = fwd(prep, inputs, states, masks)
    jax.block_until_ready((value, actor_features, new_states))

    assert value.shape == (B, 1)
    assert actor_features.shape == (B, FC3 * NUM_SUBNETS)
    assert new_states.shape == (B, STATE_SIZE)
    assert bool(jnp.all(jnp.isfinite(value)))
    assert bool(jnp.all(jnp.isfinite(actor_features)))
    assert bool(jnp.all(jnp.isfinite(new_states)))
    print("KERNEL_OK")
</pallas_src>

<mosaic_0001>
module attributes {stable_mosaic.version = 11 : i64} {
  func.func @_fused_policy_kernel(%arg0: memref<6x384xf32, #tpu.memory_space<vmem>>, %arg1: memref<2x512xf32, #tpu.memory_space<vmem>>, %arg2: memref<2x1xf32, #tpu.memory_space<vmem>>, %arg3: memref<32x896xbf16, #tpu.memory_space<vmem>>, %arg4: memref<1408x384xbf16, #tpu.memory_space<vmem>>, %arg5: memref<384x512xbf16, #tpu.memory_space<vmem>>, %arg6: memref<1024x128xbf16, #tpu.memory_space<vmem>>, %arg7: memref<8x768xf32, #tpu.memory_space<vmem>>, %arg8: memref<1x4608xf32, #tpu.memory_space<vmem>>, %arg9: memref<2x640xf32, #tpu.memory_space<vmem>>) attributes {dimension_semantics = [], scalar_prefetch = 0 : i64, scratch_operands = 0 : i64, tpu.core_type = #tpu.core_type<tc>} {
    %c0 = arith.constant 0 : index
    %c0_0 = arith.constant 0 : index
    %0 = vector.load %arg0[%c0, %c0_0] : memref<6x384xf32, #tpu.memory_space<vmem>>, vector<6x384xf32>
    %1 = vector.extract_strided_slice %0 {offsets = [0, 0], sizes = [6, 32], strides = [1, 1]} : vector<6x384xf32> to vector<6x32xf32>
    %2 = arith.truncf %1 : vector<6x32xf32> to vector<6x32xbf16>
    %3 = vector.extract_strided_slice %0 {offsets = [0, 128], sizes = [6, 8], strides = [1, 1]} : vector<6x384xf32> to vector<6x8xf32>
    %4 = vector.extract_strided_slice %0 {offsets = [0, 256], sizes = [6, 128], strides = [1, 1]} : vector<6x384xf32> to vector<6x128xf32>
    %c0_1 = arith.constant 0 : index
    %c0_2 = arith.constant 0 : index
    %5 = vector.load %arg1[%c0_1, %c0_2] : memref<2x512xf32, #tpu.memory_space<vmem>>, vector<2x128xf32>
    %c0_3 = arith.constant 0 : index
    %c0_4 = arith.constant 0 : index
    %6 = vector.load %arg2[%c0_3, %c0_4] : memref<2x1xf32, #tpu.memory_space<vmem>>, vector<2x1xf32>
    %7 = vector.broadcast %6 : vector<2x1xf32> to vector<2x128xf32>
    %8 = arith.mulf %5, %7 : vector<2x128xf32>
    %c0_5 = arith.constant 0 : index
    %c0_6 = arith.constant 0 : index
    %9 = vector.load %arg3[%c0_5, %c0_6] : memref<32x896xbf16, #tpu.memory_space<vmem>>, vector<32x896xbf16>
    %cst = arith.constant dense<0.000000e+00> : vector<6x896xf32>
    %10 = tpu.matmul %2, %9, %cst {dimension_numbers = #tpu.dot_dimension_numbers<[1], [0], [0], [1], [0, 0, 1, 1], [], []>} : vector<6x32xbf16>, vector<32x896xbf16>, vector<6x896xf32> -> vector<6x896xf32>
    %c0_7 = arith.constant 0 : index
    %c0_8 = arith.constant 0 : index
    %11 = vector.load %arg8[%c0_7, %c0_8] : memref<1x4608xf32, #tpu.memory_space<vmem>>, vector<1x896xf32>
    %12 = vector.broadcast %11 : vector<1x896xf32> to vector<6x896xf32>
    %13 = arith.addf %10, %12 : vector<6x896xf32>
    %cst_9 = arith.constant 0.000000e+00 : f32
    %14 = vector.broadcast %cst_9 : f32 to vector<6x896xf32>
    %15 = arith.maximumf %13, %14 : vector<6x896xf32>
    %16 = arith.truncf %15 : vector<6x896xf32> to vector<6x896xbf16>
    %c0_10 = arith.constant 0 : index
    %c0_11 = arith.constant 0 : index
    %17 = vector.load %arg4[%c0_10, %c0_11] : memref<1408x384xbf16, #tpu.memory_space<vmem>>, vector<896x384xbf16>
    %cst_12 = arith.constant dense<0.000000e+00> : vector<6x384xf32>
    %18 = tpu.matmul %16, %17, %cst_12 {dimension_numbers = #tpu.dot_dimension_numbers<[1], [0], [0], [1], [0, 0, 1, 1], [], []>} : vector<6x896xbf16>, vector<896x384xbf16>, vector<6x384xf32> -> vector<6x384xf32>
    %c0_13 = arith.constant 0 : index
    %c896 = arith.constant 896 : index
    %19 = vector.load %arg8[%c0_13, %c896] : memref<1x4608xf32, #tpu.memory_space<vmem>>, vector<1x384xf32>
    %20 = vector.broadcast %19 : vector<1x384xf32> to vector<6x384xf32>
    %21 = arith.addf %18, %20 : vector<6x384xf32>
    %cst_14 = arith.constant 0.000000e+00 : f32
    %22 = vector.broadcast %cst_14 : f32 to vector<6x384xf32>
    %23 = arith.maximumf %21, %22 : vector<6x384xf32>
    %24 = arith.truncf %23 : vector<6x384xf32> to vector<6x384xbf16>
    %c0_15 = arith.constant 0 : index
    %c0_16 = arith.constant 0 : index
    %25 = vector.load %arg5[%c0_15, %c0_16] : memref<384x512xbf16, #tpu.memory_space<vmem>>, vector<384x512xbf16>
    %cst_17 = arith.constant dense<0.000000e+00> : vector<6x512xf32>
    %26 = tpu.matmul %24, %25, %cst_17 {dimension_numbers = #tpu.dot_dimension_numbers<[1], [0], [0], [1], [0, 0, 1, 1], [], []>} : vector<6x384xbf16>, vector<384x512xbf16>, vector<6x512xf32> -> vector<6x512xf32>
    %c0_18 = arith.constant 0 : index
    %c1280 = arith.constant 1280 : index
    %27 = vector.load %arg8[%c0_18, %c1280] : memref<1x4608xf32, #tpu.memory_space<vmem>>, vector<1x512xf32>
    %28 = vector.broadcast %27 : vector<1x512xf32> to vector<6x512xf32>
    %29 = arith.addf %26, %28 : vector<6x512xf32>
    %cst_19 = arith.constant 0.000000e+00 : f32
    %30 = vector.broadcast %cst_19 : f32 to vector<6x512xf32>
    %31 = arith.maximumf %29, %30 : vector<6x512xf32>
    %c0_20 = arith.constant 0 : index
    %c0_21 = arith.constant 0 : index
    %32 = vector.load %arg7[%c0_20, %c0_21] : memref<8x768xf32, #tpu.memory_space<vmem>>, vector<8x768xf32>
    %cst_22 = arith.constant dense<0.000000e+00> : vector<6x768xf32>
    %33 = tpu.matmul %3, %32, %cst_22 {dimension_numbers = #tpu.dot_dimension_numbers<[1], [0], [0], [1], [0, 0, 1, 1], [], []>} : vector<6x8xf32>, vector<8x768xf32>, vector<6x768xf32> -> vector<6x768xf32>
    %34 = vector.extract_strided_slice %33 {offsets = [0, 0], sizes = [6, 512], strides = [1, 1]} : vector<6x768xf32> to vector<6x512xf32>
    %c0_23 = arith.constant 0 : index
    %c1792 = arith.constant 1792 : index
    %35 = vector.load %arg8[%c0_23, %c1792] : memref<1x4608xf32, #tpu.memory_space<vmem>>, vector<1x512xf32>
    %36 = vector.broadcast %35 : vector<1x512xf32> to vector<6x512xf32>
    %37 = arith.addf %34, %36 : vector<6x512xf32>
    %cst_24 = arith.constant 0.000000e+00 : f32
    %38 = vector.broadcast %cst_24 : f32 to vector<6x512xf32>
    %39 = arith.maximumf %37, %38 : vector<6x512xf32>
    %40 = vector.extract_strided_slice %39 {offsets = [0, 0], sizes = [6, 128], strides = [1, 1]} : vector<6x512xf32> to vector<6x128xf32>
    %41 = vector.extract_strided_slice %39 {offsets = [0, 128], sizes = [6, 128], strides = [1, 1]} : vector<6x512xf32> to vector<6x128xf32>
    %42 = arith.addf %40, %41 : vector<6x128xf32>
    %43 = arith.truncf %42 : vector<6x128xf32> to vector<6x128xbf16>
    %44 = vector.extract_strided_slice %39 {offsets = [0, 256], sizes = [6, 128], strides = [1, 1]} : vector<6x512xf32> to vector<6x128xf32>
    %45 = vector.extract_strided_slice %39 {offsets = [0, 384], sizes = [6, 128], strides = [1, 1]} : vector<6x512xf32> to vector<6x128xf32>
    %46 = arith.addf %44, %45 : vector<6x128xf32>
    %47 = arith.truncf %46 : vector<6x128xf32> to vector<6x128xbf16>
    %48 = vector.extract_strided_slice %33 {offsets = [0, 512], sizes = [6, 128], strides = [1, 1]} : vector<6x768xf32> to vector<6x128xf32>
    %49 = vector.extract_strided_slice %33 {offsets = [0, 640], sizes = [6, 128], strides = [1, 1]} : vector<6x768xf32> to vector<6x128xf32>
    %50 = vector.extract_strided_slice %31 {offsets = [0, 0], sizes = [6, 256], strides = [1, 1]} : vector<6x512xf32> to vector<6x256xf32>
    %51 = arith.truncf %50 : vector<6x256xf32> to vector<6x256xbf16>
    %c0_25 = arith.constant 0 : index
    %c0_26 = arith.constant 0 : index
    %52 = vector.load %arg6[%c0_25, %c0_26] : memref<1024x128xbf16, #tpu.memory_space<vmem>>, vector<256x128xbf16>
    %cst_27 = arith.constant dense<0.000000e+00> : vector<6x128xf32>
    %53 = tpu.matmul %51, %52, %cst_27 {dimension_numbers = #tpu.dot_dimension_numbers<[1], [0], [0], [1], [0, 0, 1, 1], [], []>} : vector<6x256xbf16>, vector<256x128xbf16>, vector<6x128xf32> -> vector<6x128xf32>
    %c512 = arith.constant 512 : index
    %c0_28 = arith.constant 0 : index
    %54 = vector.load %arg6[%c512, %c0_28] : memref<1024x128xbf16, #tpu.memory_space<vmem>>, vector<128x128xbf16>
    %cst_29 = arith.constant dense<0.000000e+00> : vector<6x128xf32>
    %55 = tpu.matmul %43, %54, %cst_29 {dimension_numbers = #tpu.dot_dimension_numbers<[1], [0], [0], [1], [0, 0, 1, 1], [], []>} : vector<6x128xbf16>, vector<128x128xbf16>, vector<6x128xf32> -> vector<6x128xf32>
    %56 = arith.addf %53, %55 : vector<6x128xf32>
    %57 = arith.addf %56, %48 : vector<6x128xf32>
    %c0_30 = arith.constant 0 : index
    %c2304 = arith.constant 2304 : index
    %58 = vector.load %arg8[%c0_30, %c2304] : memref<1x4608xf32, #tpu.memory_space<vmem>>, vector<1x128xf32>
    %59 = vector.broadcast %58 : vector<1x128xf32> to vector<6x128xf32>
    %60 = arith.addf %57, %59 : vector<6x128xf32>
    %cst_31 = arith.constant 0.000000e+00 : f32
    %61 = vector.broadcast %cst_31 : f32 to vector<6x128xf32>
    %62 = arith.maximumf %60, %61 : vector<6x128xf32>
    %63 = vector.extract_strided_slice %31 {offsets = [0, 256], sizes = [6, 256], strides = [1, 1]} : vector<6x512xf32> to vector<6x256xf32>
    %64 = arith.truncf %63 : vector<6x256xf32> to vector<6x256xbf16>
    %c256 = arith.constant 256 : index
    %c0_32 = arith.constant 0 : index
    %65 = vector.load %arg6[%c256, %c0_32] : memref<1024x128xbf16, #tpu.memory_space<vmem>>, vector<256x128xbf16>
    %cst_33 = arith.constant dense<0.000000e+00> : vector<6x128xf32>
    %66 = tpu.matmul %64, %65, %cst_33 {dimension_numbers = #tpu.dot_dimension_numbers<[1], [0], [0], [1], [0, 0, 1, 1], [], []>} : vector<6x256xbf16>, vector<256x128xbf16>, vector<6x128xf32> -> vector<6x128xf32>
    %c640 = arith.constant 640 : index
    %c0_34 = arith.constant 0 : index
    %67 = vector.load %arg6[%c640, %c0_34] : memref<1024x128xbf16, #tpu.memory_space<vmem>>, vector<128x128xbf16>
    %cst_35 = arith.constant dense<0.000000e+00> : vector<6x128xf32>
    %68 = tpu.matmul %47, %67, %cst_35 {dimension_numbers = #tpu.dot_dimension_numbers<[1], [0], [0], [1], [0, 0, 1, 1], [], []>} : vector<6x128xbf16>, vector<128x128xbf16>, vector<6x128xf32> -> vector<6x128xf32>
    %69 = arith.addf %66, %68 : vector<6x128xf32>
    %70 = arith.addf %69, %49 : vector<6x128xf32>
    %c0_36 = arith.constant 0 : index
    %c2432 = arith.constant 2432 : index
    %71 = vector.load %arg8[%c0_36, %c2432] : memref<1x4608xf32, #tpu.memory_space<vmem>>, vector<1x128xf32>
    %72 = vector.broadcast %71 : vector<1x128xf32> to vector<6x128xf32>
    %73 = arith.addf %70, %72 : vector<6x128xf32>
    %cst_37 = arith.constant 0.000000e+00 : f32
    %74 = vector.broadcast %cst_37 : f32 to vector<6x128xf32>
    %75 = arith.maximumf %73, %74 : vector<6x128xf32>
    %76 = arith.truncf %75 : vector<6x128xf32> to vector<6x128xbf16>
    %c768 = arith.constant 768 : index
    %c0_38 = arith.constant 0 : index
    %77 = vector.load %arg6[%c768, %c0_38] : memref<1024x128xbf16, #tpu.memory_space<vmem>>, vector<128x128xbf16>
    %cst_39 = arith.constant dense<0.000000e+00> : vector<6x128xf32>
    %78 = tpu.matmul %76, %77, %cst_39 {dimension_numbers = #tpu.dot_dimension_numbers<[1], [0], [0], [1], [0, 0, 1, 1], [], []>} : vector<6x128xbf16>, vector<128x128xbf16>, vector<6x128xf32> -> vector<6x128xf32>
    %c0_40 = arith.constant 0 : index
    %c2560 = arith.constant 2560 : index
    %79 = vector.load %arg8[%c0_40, %c2560] : memref<1x4608xf32, #tpu.memory_space<vmem>>, vector<1x128xf32>
    %80 = vector.broadcast %79 : vector<1x128xf32> to vector<6x128xf32>
    %81 = arith.addf %78, %80 : vector<6x128xf32>
    %cst_41 = arith.constant 0.000000e+00 : f32
    %82 = vector.broadcast %cst_41 : f32 to vector<6x128xf32>
    %83 = arith.maximumf %81, %82 : vector<6x128xf32>
    %84 = tpu.iota {dimensions = array<i32: 0>} : vector<2x6xi32>
    %85 = tpu.iota {dimensions = array<i32: 1>} : vector<2x6xi32>
    %c0_i32 = arith.constant 0 : i32
    %86 = vector.broadcast %c0_i32 : i32 to vector<2x6xi32>
    %87 = arith.addi %84, %86 : vector<2x6xi32>
    %88 = arith.cmpi eq, %85, %87 : vector<2x6xi32>
    %cst_42 = arith.constant 1.000000e+00 : f32
    %cst_43 = arith.constant 0.000000e+00 : f32
    %89 = vector.broadcast %cst_42 : f32 to vector<2x6xf32>
    %90 = vector.broadcast %cst_43 : f32 to vector<2x6xf32>
    %91 = arith.select %88, %89, %90 : vector<2x6xi1>, vector<2x6xf32>
    %c2_i32 = arith.constant 2 : i32
    %92 = vector.broadcast %c2_i32 : i32 to vector<2x6xi32>
    %93 = arith.addi %84, %92 : vector<2x6xi32>
    %94 = arith.cmpi eq, %85, %93 : vector<2x6xi32>
    %cst_44 = arith.constant 1.000000e+00 : f32
    %cst_45 = arith.constant 0.000000e+00 : f32
    %95 = vector.broadcast %cst_44 : f32 to vector<2x6xf32>
    %96 = vector.broadcast %cst_45 : f32 to vector<2x6xf32>
    %97 = arith.select %94, %95, %96 : vector<2x6xi1>, vector<2x6xf32>
    %c4_i32 = arith.constant 4 : i32
    %98 = vector.broadcast %c4_i32 : i32 to vector<2x6xi32>
    %99 = arith.addi %84, %98 : vector<2x6xi32>
    %100 = arith.cmpi eq, %85, %99 : vector<2x6xi32>
    %cst_46 = arith.constant 1.000000e+00 : f32
    %cst_47 = arith.constant 0.000000e+00 : f32
    %101 = vector.broadcast %cst_46 : f32 to vector<2x6xf32>
    %102 = vector.broadcast %cst_47 : f32 to vector<2x6xf32>
    %103 = arith.select %100, %101, %102 : vector<2x6xi1>, vector<2x6xf32>
    %104 = arith.addf %91, %97 : vector<2x6xf32>
    %105 = arith.addf %104, %103 : vector<2x6xf32>
    %cst_48 = arith.constant dense<0.000000e+00> : vector<2x128xf32>
    %106 = tpu.matmul %105, %62, %cst_48 {dimension_numbers = #tpu.dot_dimension_numbers<[1], [0], [0], [1], [0, 0, 1, 1], [], []>} : vector<2x6xf32>, vector<6x128xf32>, vector<2x128xf32> -> vector<2x128xf32>
    %107 = arith.truncf %106 : vector<2x128xf32> to vector<2x128xbf16>
    %c896_49 = arith.constant 896 : index
    %c0_50 = arith.constant 0 : index
    %108 = vector.load %arg6[%c896_49, %c0_50] : memref<1024x128xbf16, #tpu.memory_space<vmem>>, vector<128x128xbf16>
    %cst_51 = arith.constant dense<0.000000e+00> : vector<2x128xf32>
    %109 = tpu.matmul %107, %108, %cst_51 {dimension_numbers = #tpu.dot_dimension_numbers<[1], [0], [0], [1], [0, 0, 1, 1], [], []>} : vector<2x128xbf16>, vector<128x128xbf16>, vector<2x128xf32> -> vector<2x128xf32>
    %c0_52 = arith.constant 0 : index
    %c2688 = arith.constant 2688 : index
    %110 = vector.load %arg8[%c0_52, %c2688] : memref<1x4608xf32, #tpu.memory_space<vmem>>, vector<1x128xf32>
    %111 = vector.broadcast %110 : vector<1x128xf32> to vector<2x128xf32>
    %112 = arith.addf %109, %111 : vector<2x128xf32>
    %cst_53 = arith.constant 0.000000e+00 : f32
    %113 = vector.broadcast %cst_53 : f32 to vector<2x128xf32>
    %114 = arith.maximumf %112, %113 : vector<2x128xf32>
    %115 = arith.truncf %114 : vector<2x128xf32> to vector<2x128xbf16>
    %c896_54 = arith.constant 896 : index
    %c0_55 = arith.constant 0 : index
    %116 = vector.load %arg4[%c896_54, %c0_55] : memref<1408x384xbf16, #tpu.memory_space<vmem>>, vector<128x384xbf16>
    %cst_56 = arith.constant dense<0.000000e+00> : vector<2x384xf32>
    %117 = tpu.matmul %115, %116, %cst_56 {dimension_numbers = #tpu.dot_dimension_numbers<[1], [0], [0], [1], [0, 0, 1, 1], [], []>} : vector<2x128xbf16>, vector<128x384xbf16>, vector<2x384xf32> -> vector<2x384xf32>
    %c0_57 = arith.constant 0 : index
    %c2816 = arith.constant 2816 : index
    %118 = vector.load %arg8[%c0_57, %c2816] : memref<1x4608xf32, #tpu.memory_space<vmem>>, vector<1x384xf32>
    %119 = vector.broadcast %118 : vector<1x384xf32> to vector<2x384xf32>
    %120 = arith.addf %117, %119 : vector<2x384xf32>
    %121 = arith.truncf %8 : vector<2x128xf32> to vector<2x128xbf16>
    %c1024 = arith.constant 1024 : index
    %c0_58 = arith.constant 0 : index
    %122 = vector.load %arg4[%c1024, %c0_58] : memref<1408x384xbf16, #tpu.memory_space<vmem>>, vector<128x384xbf16>
    %cst_59 = arith.constant dense<0.000000e+00> : vector<2x384xf32>
    %123 = tpu.matmul %121, %122, %cst_59 {dimension_numbers = #tpu.dot_dimension_numbers<[1], [0], [0], [1], [0, 0, 1, 1], [], []>} : vector<2x128xbf16>, vector<128x384xbf16>, vector<2x384xf32> -> vector<2x384xf32>
    %c0_60 = arith.constant 0 : index
    %c3200 = arith.constant 3200 : index
    %124 = vector.load %arg8[%c0_60, %c3200] : memref<1x4608xf32, #tpu.memory_space<vmem>>, vector<1x384xf32>
    %125 = vector.broadcast %124 : vector<1x384xf32> to vector<2x384xf32>
    %126 = arith.addf %123, %125 : vector<2x384xf32>
    %127 = vector.extract_strided_slice %120 {offsets = [0, 0], sizes = [2, 128], strides = [1, 1]} : vector<2x384xf32> to vector<2x128xf32>
    %128 = vector.extract_strided_slice %126 {offsets = [0, 0], sizes = [2, 128], strides = [1, 1]} : vector<2x384xf32> to vector<2x128xf32>
    %129 = arith.addf %127, %128 : vector<2x128xf32>
    %130 = arith.negf %129 : vector<2x128xf32>
    %131 = math.exp %130 : vector<2x128xf32>
    %cst_61 = arith.constant 1.000000e+00 : f32
    %132 = vector.broadcast %cst_61 : f32 to vector<2x128xf32>
    %133 = arith.addf %132, %131 : vector<2x128xf32>
    %134 = arith.divf %132, %133 : vector<2x128xf32>
    %135 = vector.extract_strided_slice %120 {offsets = [0, 128], sizes = [2, 128], strides = [1, 1]} : vector<2x384xf32> to vector<2x128xf32>
    %136 = vector.extract_strided_slice %126 {offsets = [0, 128], sizes = [2, 128], strides = [1, 1]} : vector<2x384xf32> to vector<2x128xf32>
    %137 = arith.addf %135, %136 : vector<2x128xf32>
    %138 = arith.negf %137 : vector<2x128xf32>
    %139 = math.exp %138 : vector<2x128xf32>
    %cst_62 = arith.constant 1.000000e+00 : f32
    %140 = vector.broadcast %cst_62 : f32 to vector<2x128xf32>
    %141 = arith.addf %140, %139 : vector<2x128xf32>
    %142 = arith.divf %140, %141 : vector<2x128xf32>
    %143 = vector.extract_strided_slice %120 {offsets = [0, 256], sizes = [2, 128], strides = [1, 1]} : vector<2x384xf32> to vector<2x128xf32>
    %144 = vector.extract_strided_slice %126 {offsets = [0, 256], sizes = [2, 128], strides = [1, 1]} : vector<2x384xf32> to vector<2x128xf32>
    %145 = arith.mulf %134, %144 : vector<2x128xf32>
    %146 = arith.addf %143, %145 : vector<2x128xf32>
    %147 = math.tanh %146 : vector<2x128xf32>
    %cst_63 = arith.constant 1.000000e+00 : f32
    %148 = vector.broadcast %cst_63 : f32 to vector<2x128xf32>
    %149 = arith.subf %148, %142 : vector<2x128xf32>
    %150 = arith.mulf %149, %147 : vector<2x128xf32>
    %151 = arith.mulf %142, %8 : vector<2x128xf32>
    %152 = arith.addf %150, %151 : vector<2x128xf32>
    %153 = arith.truncf %83 : vector<6x128xf32> to vector<6x128xbf16>
    %c1152 = arith.constant 1152 : index
    %c0_64 = arith.constant 0 : index
    %154 = vector.load %arg4[%c1152, %c0_64] : memref<1408x384xbf16, #tpu.memory_space<vmem>>, vector<128x384xbf16>
    %cst_65 = arith.constant dense<0.000000e+00> : vector<6x384xf32>
    %155 = tpu.matmul %153, %154, %cst_65 {dimension_numbers = #tpu.dot_dimension_numbers<[1], [0], [0], [1], [0, 0, 1, 1], [], []>} : vector<6x128xbf16>, vector<128x384xbf16>, vector<6x384xf32> -> vector<6x384xf32>
    %c0_66 = arith.constant 0 : index
    %c3584 = arith.constant 3584 : index
    %156 = vector.load %arg8[%c0_66, %c3584] : memref<1x4608xf32, #tpu.memory_space<vmem>>, vector<1x384xf32>
    %157 = vector.broadcast %156 : vector<1x384xf32> to vector<6x384xf32>
    %158 = arith.addf %155, %157 : vector<6x384xf32>
    %159 = arith.truncf %4 : vector<6x128xf32> to vector<6x128xbf16>
    %c1280_67 = arith.constant 1280 : index
    %c0_68 = arith.constant 0 : index
    %160 = vector.load %arg4[%c1280_67, %c0_68] : memref<1408x384xbf16, #tpu.memory_space<vmem>>, vector<128x384xbf16>
    %cst_69 = arith.constant dense<0.000000e+00> : vector<6x384xf32>
    %161 = tpu.matmul %159, %160, %cst_69 {dimension_numbers = #tpu.dot_dimension_numbers<[1], [0], [0], [1], [0, 0, 1, 1], [], []>} : vector<6x128xbf16>, vector<128x384xbf16>, vector<6x384xf32> -> vector<6x384xf32>
    %c0_70 = arith.constant 0 : index
    %c3968 = arith.constant 3968 : index
    %162 = vector.load %arg8[%c0_70, %c3968] : memref<1x4608xf32, #tpu.memory_space<vmem>>, vector<1x384xf32>
    %163 = vector.broadcast %162 : vector<1x384xf32> to vector<6x384xf32>
    %164 = arith.addf %161, %163 : vector<6x384xf32>
    %165 = vector.extract_strided_slice %158 {offsets = [0, 0], sizes = [6, 128], strides = [1, 1]} : vector<6x384xf32> to vector<6x128xf32>
    %166 = vector.extract_strided_slice %164 {offsets = [0, 0], sizes = [6, 128], strides = [1, 1]} : vector<6x384xf32> to vector<6x128xf32>
    %167 = arith.addf %165, %166 : vector<6x128xf32>
    %168 = arith.negf %167 : vector<6x128xf32>
    %169 = math.exp %168 : vector<6x128xf32>
    %cst_71 = arith.constant 1.000000e+00 : f32
    %170 = vector.broadcast %cst_71 : f32 to vector<6x128xf32>
    %171 = arith.addf %170, %169 : vector<6x128xf32>
    %172 = arith.divf %170, %171 : vector<6x128xf32>
    %173 = vector.extract_strided_slice %158 {offsets = [0, 128], sizes = [6, 128], strides = [1, 1]} : vector<6x384xf32> to vector<6x128xf32>
    %174 = vector.extract_strided_slice %164 {offsets = [0, 128], sizes = [6, 128], strides = [1, 1]} : vector<6x384xf32> to vector<6x128xf32>
    %175 = arith.addf %173, %174 : vector<6x128xf32>
    %176 = arith.negf %175 : vector<6x128xf32>
    %177 = math.exp %176 : vector<6x128xf32>
    %cst_72 = arith.constant 1.000000e+00 : f32
    %178 = vector.broadcast %cst_72 : f32 to vector<6x128xf32>
    %179 = arith.addf %178, %177 : vector<6x128xf32>
    %180 = arith.divf %178, %179 : vector<6x128xf32>
    %181 = vector.extract_strided_slice %158 {offsets = [0, 256], sizes = [6, 128], strides = [1, 1]} : vector<6x384xf32> to vector<6x128xf32>
    %182 = vector.extract_strided_slice %164 {offsets = [0, 256], sizes = [6, 128], strides = [1, 1]} : vector<6x384xf32> to vector<6x128xf32>
    %183 = arith.mulf %172, %182 : vector<6x128xf32>
    %184 = arith.addf %181, %183 : vector<6x128xf32>
    %185 = math.tanh %184 : vector<6x128xf32>
    %cst_73 = arith.constant 1.000000e+00 : f32
    %186 = vector.broadcast %cst_73 : f32 to vector<6x128xf32>
    %187 = arith.subf %186, %180 : vector<6x128xf32>
    %188 = arith.mulf %187, %185 : vector<6x128xf32>
    %189 = arith.mulf %180, %4 : vector<6x128xf32>
    %190 = arith.addf %188, %189 : vector<6x128xf32>
    %c0_74 = arith.constant 0 : index
    %c4352 = arith.constant 4352 : index
    %191 = vector.load %arg8[%c0_74, %c4352] : memref<1x4608xf32, #tpu.memory_space<vmem>>, vector<1x128xf32>
    %192 = vector.broadcast %191 : vector<1x128xf32> to vector<2x128xf32>
    %193 = arith.mulf %152, %192 : vector<2x128xf32>
    %cst_75 = arith.constant dense<0.000000e+00> : vector<2xf32>
    %194 = vector.multi_reduction <add>, %193, %cst_75 [1] : vector<2x128xf32> to vector<2xf32>
    %195 = vector.shape_cast %194 : vector<2xf32> to vector<2x1xf32>
    %196 = vector.shape_cast %195 : vector<2x1xf32> to vector<2x1xf32>
    %197 = vector.broadcast %196 : vector<2x1xf32> to vector<2x128xf32>
    %c0_76 = arith.constant 0 : index
    %c4480 = arith.constant 4480 : index
    %198 = vector.load %arg8[%c0_76, %c4480] : memref<1x4608xf32, #tpu.memory_space<vmem>>, vector<1x128xf32>
    %199 = vector.broadcast %198 : vector<1x128xf32> to vector<2x128xf32>
    %200 = arith.addf %197, %199 : vector<2x128xf32>
    %c0_77 = arith.constant 0 : index
    %c0_78 = arith.constant 0 : index
    %201 = vector.load %arg9[%c0_77, %c0_78] : memref<2x640xf32, #tpu.memory_space<vmem>>, vector<2x128xf32>
    tpu.vector_store %arg9[%c0_77, %c0_78], %152 {strides = array<i32>} : memref<2x640xf32, #tpu.memory_space<vmem>>, vector<2x128xf32>,
    %cst_79 = arith.constant dense<0.000000e+00> : vector<2x128xf32>
    %202 = tpu.matmul %91, %190, %cst_79 {dimension_numbers = #tpu.dot_dimension_numbers<[1], [0], [0], [1], [0, 0, 1, 1], [], []>} : vector<2x6xf32>, vector<6x128xf32>, vector<2x128xf32> -> vector<2x128xf32>
    %c0_80 = arith.constant 0 : index
    %c128 = arith.constant 128 : index
    %203 = vector.load %arg9[%c0_80, %c128] : memref<2x640xf32, #tpu.memory_space<vmem>>, vector<2x128xf32>
    tpu.vector_store %arg9[%c0_80, %c128], %202 {strides = array<i32>} : memref<2x640xf32, #tpu.memory_space<vmem>>, vector<2x128xf32>,
    %cst_81 = arith.constant dense<0.000000e+00> : vector<2x128xf32>
    %204 = tpu.matmul %97, %190, %cst_81 {dimension_numbers = #tpu.dot_dimension_numbers<[1], [0], [0], [1], [0, 0, 1, 1], [], []>} : vector<2x6xf32>, vector<6x128xf32>, vector<2x128xf32> -> vector<2x128xf32>
    %c0_82 = arith.constant 0 : index
    %c256_83 = arith.constant 256 : index
    %205 = vector.load %arg9[%c0_82, %c256_83] : memref<2x640xf32, #tpu.memory_space<vmem>>, vector<2x128xf32>
    tpu.vector_store %arg9[%c0_82, %c256_83], %204 {strides = array<i32>} : memref<2x640xf32, #tpu.memory_space<vmem>>, vector<2x128xf32>,
    %cst_84 = arith.constant dense<0.000000e+00> : vector<2x128xf32>
    %206 = tpu.matmul %103, %190, %cst_84 {dimension_numbers = #tpu.dot_dimension_numbers<[1], [0], [0], [1], [0, 0, 1, 1], [], []>} : vector<2x6xf32>, vector<6x128xf32>, vector<2x128xf32> -> vector<2x128xf32>
    %c0_85 = arith.constant 0 : index
    %c384 = arith.constant 384 : index
    %207 = vector.load %arg9[%c0_85, %c384] : memref<2x640xf32, #tpu.memory_space<vmem>>, vector<2x128xf32>
    tpu.vector_store %arg9[%c0_85, %c384], %206 {strides = array<i32>} : memref<2x640xf32, #tpu.memory_space<vmem>>, vector<2x128xf32>,
    %c0_86 = arith.constant 0 : index
    %c512_87 = arith.constant 512 : index
    %208 = vector.load %arg9[%c0_86, %c512_87] : memref<2x640xf32, #tpu.memory_space<vmem>>, vector<2x128xf32>
    tpu.vector_store %arg9[%c0_86, %c512_87], %200 {strides = array<i32>} : memref<2x640xf32, #tpu.memory_space<vmem>>, vector<2x128xf32>,
    return
  }
}

</mosaic_0001>

<llo_original>
// kernel: rnnbase_forward.1
$region0: #{rnnbase_forward.1}
  #allocation0 [shape = 'u32[]', space=smem, size = 0x4, offset = 0x4, fixed_abs, tag = 'smem constant byte address 0x4 - core index']
  #allocation1 [shape = 'u32[144,128]{1,0:T(1,128)}', space=vmem, size = 0x12000, scoped, tag = 'internal scratch']
  %s0 = inlined_call_operand.vmem [shape: f32[6,384], index: 0, kind: input, shape index: {}]
  %s1 = inlined_call_operand.hbm [shape: f32[2,512], index: 1, kind: input, shape index: {}]
  %s2 = inlined_call_operand.vmem [shape: f32[2,1], index: 2, kind: input, shape index: {}]
  %s3 = inlined_call_operand.hbm [shape: bf16[32,896], index: 3, kind: input, shape index: {}]
  %s4 = inlined_call_operand.hbm [shape: bf16[1408,384], index: 4, kind: input, shape index: {}]
  %s5 = inlined_call_operand.hbm [shape: bf16[384,512], index: 5, kind: input, shape index: {}]
  %s6 = inlined_call_operand.hbm [shape: bf16[1024,128], index: 6, kind: input, shape index: {}]
  %s7 = inlined_call_operand.hbm [shape: f32[8,768], index: 7, kind: input, shape index: {}]
  %s8 = inlined_call_operand.hbm [shape: f32[1,4608], index: 8, kind: input, shape index: {}]
  %s9 = inlined_call_operand.vmem [shape: f32[2,640], index: 9, kind: output, shape index: {}]
  %s10 = sld [smem:[#allocation0]]
  $region74: #{rnnbase_forward.1} parent=0
    _
  %s12 = ssub.s32 1, %s10
  %s13 = scalar_select 0, %s12, %s10
  $region1: #{rnnbase_forward.1} parent=0
    #allocation2 [shape = 'u8[4096]{0}', space=vmem, size = 0x1000, scoped, tag = 'input window, operand 1, single buffered']
    #allocation3 [shape = 's32[1]{0}', space=sflag, size = 0x4, scoped, tag = 'scoped memory for rnnbase_forward.1']
    #allocation4 [shape = 'u8[57344]{0}', space=vmem, size = 0xe000, scoped, tag = 'input window, operand 3, single buffered']
    #allocation5 [shape = 's32[1]{0}', space=sflag, size = 0x4, scoped, tag = 'scoped memory for rnnbase_forward.1']
    #allocation6 [shape = 'u8[1081344]{0}', space=vmem, size = 0x108000, scoped, tag = 'input window, operand 4, single buffered']
    #allocation7 [shape = 'u8[393216]{0}', space=vmem, size = 0x60000, scoped, tag = 'input window, operand 5, single buffered']
    #allocation8 [shape = 's32[1]{0}', space=sflag, size = 0x4, scoped, tag = 'scoped memory for rnnbase_forward.1']
    #allocation9 [shape = 'u8[262144]{0}', space=vmem, size = 0x40000, scoped, tag = 'input window, operand 6, single buffered']
    #allocation10 [shape = 'u8[24576]{0}', space=vmem, size = 0x6000, scoped, tag = 'input window, operand 7, single buffered']
    #allocation11 [shape = 's32[1]{0}', space=sflag, size = 0x4, scoped, tag = 'scoped memory for rnnbase_forward.1']
    #allocation12 [shape = 'u8[18432]{0}', space=vmem, size = 0x4800, scoped, tag = 'input window, operand 8, single buffered']
    %14 = vsyncpa [#allocation3], 0
    %15 = vsyncpa [#allocation5], 0
    %16 = vsyncpa [#allocation8], 0
    %17 = vsyncpa [#allocation11], 0
    // Predicated region
    $region2: #{rnnbase_forward.1} parent=1 // pred_check
      _
    $region3: #{rnnbase_forward.1} parent=1 // pred_check_branch
      %19 = sbr.rel (0) target = $region5
    $region4: #{rnnbase_forward.1} parent=1 // pred_region
      _
    $region5: #{rnnbase_forward.1} parent=1 // pred_fallthru
      _
    // Predicated region
    $region6: #{rnnbase_forward.1} parent=1 // pred_check
      _
    $region7: #{rnnbase_forward.1} parent=1 // pred_check_branch
      %21 = sbr.rel (0) target = $region9
    $region8: #{rnnbase_forward.1} parent=1 // pred_region
      %s23 = ssub.s32 128, 128
      %24 = vsyncadd [#allocation3], %s23
      %s26 = sshll.u32 [#allocation2], 4
      %s27 = int_to_ptr.vmem [resolvable:$true] %s26
      %29 = dma.hbm_to_vmem [thread:$0]  %s1, 128, %s27, [#allocation3]
    $region9: #{rnnbase_forward.1} parent=1 // pred_fallthru
      _
    // Predicated region
    $region10: #{rnnbase_forward.1} parent=1 // pred_check
      _
    $region11: #{rnnbase_forward.1} parent=1 // pred_check_branch
      %31 = sbr.rel (0) target = $region13
    $region12: #{rnnbase_forward.1} parent=1 // pred_region
      _
    $region13: #{rnnbase_forward.1} parent=1 // pred_fallthru
      _
    // Predicated region
    $region14: #{rnnbase_forward.1} parent=1 // pred_check
      _
    $region15: #{rnnbase_forward.1} parent=1 // pred_check_branch
      %33 = sbr.rel (0) target = $region17
    $region16: #{rnnbase_forward.1} parent=1 // pred_region
      %s35 = ssub.s32 1792, 1792
      %36 = vsyncadd [#allocation5], %s35
      %s37 = sshll.u32 [#allocation4], 4
      %s38 = int_to_ptr.vmem [resolvable:$true] %s37
      %43 = dma.hbm_to_vmem [thread:$0]  %s3, 1792, %s38, [#allocation5], 448, 448, 28
    $region17: #{rnnbase_forward.1} parent=1 // pred_fallthru
      _
    // Predicated region
    $region18: #{rnnbase_forward.1} parent=1 // pred_check
      _
    $region19: #{rnnbase_forward.1} parent=1 // pred_check_branch
      %45 = sbr.rel (0) target = $region21
    $region20: #{rnnbase_forward.1} parent=1 // pred_region
      %s47 = ssub.s32 33792, 33792
      %48 = vsyncadd [#allocation5], %s47
      %s49 = sshll.u32 [#allocation6], 4
      %s50 = int_to_ptr.vmem [resolvable:$true] %s49
      %55 = dma.hbm_to_vmem [thread:$0]  %s4, 33792, %s50, [#allocation5], 192, 192, 12
    $region21: #{rnnbase_forward.1} parent=1 // pred_fallthru
      _
    // Predicated region
    $region22: #{rnnbase_forward.1} parent=1 // pred_check
      _
    $region23: #{rnnbase_forward.1} parent=1 // pred_check_branch
      %57 = sbr.rel (0) target = $region25
    $region24: #{rnnbase_forward.1} parent=1 // pred_region
      %s59 = ssub.s32 12288, 12288
      %60 = vsyncadd [#allocation8], %s59
      %s61 = sshll.u32 [#allocation7], 4
      %s62 = int_to_ptr.vmem [resolvable:$true] %s61
      %67 = dma.hbm_to_vmem [thread:$0]  %s5, 12288, %s62, [#allocation8], 256, 256, 16
    $region25: #{rnnbase_forward.1} parent=1 // pred_fallthru
      _
    // Predicated region
    $region26: #{rnnbase_forward.1} parent=1 // pred_check
      _
    $region27: #{rnnbase_forward.1} parent=1 // pred_check_branch
      %69 = sbr.rel (0) target = $region29
    $region28: #{rnnbase_forward.1} parent=1 // pred_region
      %s71 = ssub.s32 8192, 8192
      %72 = vsyncadd [#allocation8], %s71
      %s73 = sshll.u32 [#allocation9], 4
      %s74 = int_to_ptr.vmem [resolvable:$true] %s73
      %79 = dma.hbm_to_vmem [thread:$0]  %s6, 8192, %s74, [#allocation8], 64, 64, 4
    $region29: #{rnnbase_forward.1} parent=1 // pred_fallthru
      _
    // Predicated region
    $region30: #{rnnbase_forward.1} parent=1 // pred_check
      _
    $region31: #{rnnbase_forward.1} parent=1 // pred_check_branch
      %81 = sbr.rel (0) target = $region33
    $region32: #{rnnbase_forward.1} parent=1 // pred_region
      %s83 = ssub.s32 768, 768
      %84 = vsyncadd [#allocation11], %s83
      %s86 = sshll.u32 [#allocation10], 4
      %s87 = int_to_ptr.vmem [resolvable:$true] %s86
      %89 = dma.hbm_to_vmem [thread:$0]  %s7, 768, %s87, [#allocation11]
    $region33: #{rnnbase_forward.1} parent=1 // pred_fallthru
      _
    // Predicated region
    $region34: #{rnnbase_forward.1} parent=1 // pred_check
      _
    $region35: #{rnnbase_forward.1} parent=1 // pred_check_branch
      %91 = sbr.rel (0) target = $region37
    $region36: #{rnnbase_forward.1} parent=1 // pred_region
      %s93 = ssub.s32 576, 576
      %94 = vsyncadd [#allocation11], %s93
      %s96 = sshll.u32 [#allocation12], 4
      %s97 = int_to_ptr.vmem [resolvable:$true] %s96
      %99 = dma.hbm_to_vmem [thread:$0]  %s8, 576, %s97, [#allocation11]
    $region37: #{rnnbase_forward.1} parent=1 // pred_fallthru
      _
    // Predicated region
    $region38: #{rnnbase_forward.1} parent=1 // pred_check
      _
    $region39: #{rnnbase_forward.1} parent=1 // pred_check_branch
      %101 = sbr.rel (0) target = $region41
    $region40: #{rnnbase_forward.1} parent=1 // pred_region
      %102 = dma.done [#allocation3], 128
    $region41: #{rnnbase_forward.1} parent=1 // pred_fallthru
      _
    // Predicated region
    $region42: #{rnnbase_forward.1} parent=1 // pred_check
      _
    $region43: #{rnnbase_forward.1} parent=1 // pred_check_branch
      %104 = sbr.rel (0) target = $region45
    $region44: #{rnnbase_forward.1} parent=1 // pred_region
      %105 = dma.done [#allocation5], 1792
    $region45: #{rnnbase_forward.1} parent=1 // pred_fallthru
      _
    // Predicated region
    $region46: #{rnnbase_forward.1} parent=1 // pred_check
      _
    $region47: #{rnnbase_forward.1} parent=1 // pred_check_branch
      %107 = sbr.rel (0) target = $region49
    $region48: #{rnnbase_forward.1} parent=1 // pred_region
      %108 = dma.done [#allocation5], 33792
    $region49: #{rnnbase_forward.1} parent=1 // pred_fallthru
      _
    // Predicated region
    $region50: #{rnnbase_forward.1} parent=1 // pred_check
      _
    $region51: #{rnnbase_forward.1} parent=1 // pred_check_branch
      %110 = sbr.rel (0) target = $region53
    $region52: #{rnnbase_forward.1} parent=1 // pred_region
      %111 = dma.done [#allocation8], 12288
    $region53: #{rnnbase_forward.1} parent=1 // pred_fallthru
      _
    // Predicated region
    $region54: #{rnnbase_forward.1} parent=1 // pred_check
      _
    $region55: #{rnnbase_forward.1} parent=1 // pred_check_branch
      %113 = sbr.rel (0) target = $region57
    $region56: #{rnnbase_forward.1} parent=1 // pred_region
      %114 = dma.done [#allocation8], 8192
    $region57: #{rnnbase_forward.1} parent=1 // pred_fallthru
      _
    // Predicated region
    $region58: #{rnnbase_forward.1} parent=1 // pred_check
      _
    $region59: #{rnnbase_forward.1} parent=1 // pred_check_branch
      %116 = sbr.rel (0) target = $region61
    $region60: #{rnnbase_forward.1} parent=1 // pred_region
      %117 = dma.done [#allocation11], 768
    $region61: #{rnnbase_forward.1} parent=1 // pred_fallthru
      _
    // Predicated region
    $region62: #{rnnbase_forward.1} parent=1 // pred_check
      _
    $region63: #{rnnbase_forward.1} parent=1 // pred_check_branch
      %119 = sbr.rel (0) target = $region65
    $region64: #{rnnbase_forward.1} parent=1 // pred_region
      %120 = dma.done [#allocation11], 576
    $region65: #{rnnbase_forward.1} parent=1 // pred_fallthru
      _
    %v122 = vld [vmem:[%s0] sm:$0x3f]
    %v123 = vld [vmem:[%s0 + $0x8] sm:$0x3f]
    %v124 = vld [vmem:[%s0 + $0x10] sm:$0x3f]
    %v125 = vpack.c.bf16 %v122, %v122
    %v126 = vld [vmem:[#allocation2] sm:$0x3]
    %v127 = vld [vmem:[%s2] sm:$0x3]
    %129 = vset.pattern.permute.xlu0 0
    %130 = vperm.xlu0 %129, %v127
    %v131 = vpop.permute.xlu0 %130
    %v133 = vmul.f32 %v126, %v131
    %v134 = vld [vmem:[#allocation4] sm:$0xff]
    %v135 = vld [vmem:[#allocation4 + $0x8] sm:$0xff]
    %v136 = vld [vmem:[#allocation4 + $0x10] sm:$0xff]
    %v137 = vld [vmem:[#allocation4 + $0x18] sm:$0xf]
    %v138 = vld [vmem:[#allocation4 + $0x1c] sm:$0xff]
    %v139 = vld [vmem:[#allocation4 + $0x24] sm:$0xff]
    %v140 = vld [vmem:[#allocation4 + $0x2c] sm:$0xff]
    %v141 = vld [vmem:[#allocation4 + $0x34] sm:$0xf]
    %v142 = vld [vmem:[#allocation4 + $0x38] sm:$0xff]
    %v143 = vld [vmem:[#allocation4 + $0x40] sm:$0xff]
    %v144 = vld [vmem:[#allocation4 + $0x48] sm:$0xff]
    %v145 = vld [vmem:[#allocation4 + $0x50] sm:$0xf]
    %v146 = vld [vmem:[#allocation4 + $0x54] sm:$0xff]
    %v147 = vld [vmem:[#allocation4 + $0x5c] sm:$0xff]
    %v148 = vld [vmem:[#allocation4 + $0x64] sm:$0xff]
    %v149 = vld [vmem:[#allocation4 + $0x6c] sm:$0xf]
    %v150 = vld [vmem:[#allocation12] sm:$0xff]
    %v152 = vlaneseq
    %v153 = vshrl.u32 %v152, 7
    %v154 = vsub.s32 0, %v153
    %v155 = vrot.slane %v150, %v154
    %v156 = vlaneseq
    %v157 = vshrl.u32 %v156, 7
    %v158 = vsub.s32 1, %v157
    %v159 = vrot.slane %v150, %v158
    %v160 = vlaneseq
    %v161 = vshrl.u32 %v160, 7
    %v162 = vsub.s32 2, %v161
    %v163 = vrot.slane %v150, %v162
    %v164 = vlaneseq
    %v165 = vshrl.u32 %v164, 7
    %v166 = vsub.s32 3, %v165
    %v167 = vrot.slane %v150, %v166
    %v168 = vlaneseq
    %v169 = vshrl.u32 %v168, 7
    %v170 = vsub.s32 4, %v169
    %v171 = vrot.slane %v150, %v170
    %v172 = vlaneseq
    %v173 = vshrl.u32 %v172, 7
    %v174 = vsub.s32 5, %v173
    %v175 = vrot.slane %v150, %v174
    %v176 = vlaneseq
    %v177 = vshrl.u32 %v176, 7
    %v178 = vsub.s32 6, %v177
    %v179 = vrot.slane %v150, %v178
    %v203 = vunpack.c.l.b16 %v134
    %v204 = vunpack.c.h.b16 %v134
    %v205 = vunpack.c.l.b16 %v135
    %v206 = vunpack.c.h.b16 %v135
    %v207 = vunpack.c.l.b16 %v136
    %v208 = vunpack.c.h.b16 %v136
    %v209 = vunpack.c.l.b16 %v137
    %v210 = vunpack.c.l.b16 %v138
    %v211 = vunpack.c.h.b16 %v138
    %v212 = vunpack.c.l.b16 %v139
    %v213 = vunpack.c.h.b16 %v139
    %v214 = vunpack.c.l.b16 %v140
    %v215 = vunpack.c.h.b16 %v140
    %v216 = vunpack.c.l.b16 %v141
    %v217 = vunpack.c.l.b16 %v142
    %v218 = vunpack.c.h.b16 %v142
    %v219 = vunpack.c.l.b16 %v143
    %v220 = vunpack.c.h.b16 %v143
    %v221 = vunpack.c.l.b16 %v144
    %v222 = vunpack.c.h.b16 %v144
    %v223 = vunpack.c.l.b16 %v145
    %v224 = vunpack.c.l.b16 %v146
    %v225 = vunpack.c.h.b16 %v146
    %v226 = vunpack.c.l.b16 %v147
    %v227 = vunpack.c.h.b16 %v147
    %v228 = vunpack.c.l.b16 %v148
    %v229 = vunpack.c.h.b16 %v148
    %v230 = vunpack.c.l.b16 %v149
    %v231 = vpack.c.b16 %v210, %v203
    %v232 = vpack.c.b16 %v211, %v204
    %v233 = vpack.c.b16 %v212, %v205
    %v234 = vpack.c.b16 %v213, %v206
    %v235 = vpack.c.b16 %v214, %v207
    %v236 = vpack.c.b16 %v215, %v208
    %v237 = vpack.c.b16 %v216, %v209
    %v238 = vpack.c.b16 %v224, %v217
    %v239 = vpack.c.b16 %v225, %v218
    %v240 = vpack.c.b16 %v226, %v219
    %v241 = vpack.c.b16 %v227, %v220
    %v242 = vpack.c.b16 %v228, %v221
    %v243 = vpack.c.b16 %v229, %v222
    %v244 = vpack.c.b16 %v230, %v223
    %vm259 = vcmask 261120
    %v261 = vsel %vm259, %v125, 0
    %263 = vmatprep.subr.bf16.mxu0 %v232
    %264 = vmatpush1.bf16.msra.mxu0 %v231
    %265 = vmatprep.subr.bf16.mxu0 %v239
    %266 = vmatpush1.bf16.msra.mxu0 %v238
    %267 = vmatprep.subr.bf16.mxu0 0
    %268 = vmatpush1.bf16.msra.mxu0 0
    %269 = vmatprep.subr.bf16.mxu0 0
    %270 = vmatpush1.bf16.msra.mxu0 0
    %271 = vmatprep.subr.bf16.mxu0 0
    %272 = vmatpush1.bf16.msra.mxu0 0
    %273 = vmatprep.subr.bf16.mxu0 0
    %274 = vmatpush1.bf16.msra.mxu0 0
    %275 = vmatprep.subr.bf16.mxu0 0
    %276 = vmatpush1.bf16.msra.mxu0 0
    %277 = vmatprep.subr.bf16.mxu0 0
    %278 = vmatpush1.bf16.msra.mxu0 0
    %279 = vmatprep.subr.bf16.mxu0 0
    %280 = vmatpush1.bf16.msra.mxu0 0
    %281 = vmatprep.subr.bf16.mxu0 0
    %282 = vmatpush1.bf16.msra.mxu0 0
    %283 = vmatprep.subr.bf16.mxu0 0
    %284 = vmatpush1.bf16.msra.mxu0 0
    %285 = vmatprep.subr.bf16.mxu0 0
    %286 = vmatpush1.bf16.msra.mxu0 0
    %287 = vmatprep.subr.bf16.mxu0 0
    %288 = vmatpush1.bf16.msra.mxu0 0
    %289 = vmatprep.subr.bf16.mxu0 0
    %290 = vmatpush1.bf16.msra.mxu0 0
    %291 = vmatprep.subr.bf16.mxu0 0
    %292 = vmatpush1.bf16.msra.mxu0 0
    %293 = vmatprep.subr.bf16.mxu0 0
    %294 = vmatpush1.bf16.msra.mxu0 0
    %295 = vmatprep.mubr.bf16.mxu0 0
    %296 = vmatmul.mubr.bf16.gmra.mrb[0].mxu0 %v261
    %v297 = vpop.f32.mrb[0].mxu0
    %v298 = vadd.f32 %v155, %v297
    %v299 = vpop.f32.mrb[0].mxu0
    %v300 = vadd.f32 %v159, %v299
    %v301 = vpop.f32.mrb[0].mxu0
    %v302 = vpop.f32.mrb[0].mxu0
    %303 = vdwg.mxu0
    %304 = vmatprep.subr.bf16.mxu0 %v234
    %305 = vmatpush1.bf16.msra.mxu0 %v233
    %306 = vmatprep.subr.bf16.mxu0 %v241
    %307 = vmatpush1.bf16.msra.mxu0 %v240
    %308 = vmatprep.subr.bf16.mxu0 0
    %309 = vmatpush1.bf16.msra.mxu0 0
    %310 = vmatprep.subr.bf16.mxu0 0
    %311 = vmatpush1.bf16.msra.mxu0 0
    %312 = vmatprep.subr.bf16.mxu0 0
    %313 = vmatpush1.bf16.msra.mxu0 0
    %314 = vmatprep.subr.bf16.mxu0 0
    %315 = vmatpush1.bf16.msra.mxu0 0
    %316 = vmatprep.subr.bf16.mxu0 0
    %317 = vmatpush1.bf16.msra.mxu0 0
    %318 = vmatprep.subr.bf16.mxu0 0
    %319 = vmatpush1.bf16.msra.mxu0 0
    %320 = vmatprep.subr.bf16.mxu0 0
    %321 = vmatpush1.bf16.msra.mxu0 0
    %322 = vmatprep.subr.bf16.mxu0 0
    %323 = vmatpush1.bf16.msra.mxu0 0
    %324 = vmatprep.subr.bf16.mxu0 0
    %325 = vmatpush1.bf16.msra.mxu0 0
    %326 = vmatprep.subr.bf16.mxu0 0
    %327 = vmatpush1.bf16.msra.mxu0 0
    %328 = vmatprep.subr.bf16.mxu0 0
    %329 = vmatpush1.bf16.msra.mxu0 0
    %330 = vmatprep.subr.bf16.mxu0 0
    %331 = vmatpush1.bf16.msra.mxu0 0
    %332 = vmatprep.subr.bf16.mxu0 0
    %333 = vmatpush1.bf16.msra.mxu0 0
    %334 = vmatprep.subr.bf16.mxu0 0
    %335 = vmatpush1.bf16.msra.mxu0 0
    %336 = vmatprep.mubr.bf16.mxu0 0
    %337 = vmatmul.mubr.bf16.gmra.mrb[0].mxu0 %v261
    %v338 = vpop.f32.mrb[0].mxu0
    %v339 = vadd.f32 %v163, %v338
    %v340 = vpop.f32.mrb[0].mxu0
    %v341 = vadd.f32 %v167, %v340
    %v342 = vpop.f32.mrb[0].mxu0
    %v343 = vpop.f32.mrb[0].mxu0
    %344 = vdwg.mxu0
    %345 = vmatprep.subr.bf16.mxu0 %v236
    %346 = vmatpush1.bf16.msra.mxu0 %v235
    %347 = vmatprep.subr.bf16.mxu0 %v243
    %348 = vmatpush1.bf16.msra.mxu0 %v242
    %349 = vmatprep.subr.bf16.mxu0 0
    %350 = vmatpush1.bf16.msra.mxu0 0
    %351 = vmatprep.subr.bf16.mxu0 0
    %352 = vmatpush1.bf16.msra.mxu0 0
    %353 = vmatprep.subr.bf16.mxu0 0
    %354 = vmatpush1.bf16.msra.mxu0 0
    %355 = vmatprep.subr.bf16.mxu0 0
    %356 = vmatpush1.bf16.msra.mxu0 0
    %357 = vmatprep.subr.bf16.mxu0 0
    %358 = vmatpush1.bf16.msra.mxu0 0
    %359 = vmatprep.subr.bf16.mxu0 0
    %360 = vmatpush1.bf16.msra.mxu0 0
    %361 = vmatprep.subr.bf16.mxu0 0
    %362 = vmatpush1.bf16.msra.mxu0 0
    %363 = vmatprep.subr.bf16.mxu0 0
    %364 = vmatpush1.bf16.msra.mxu0 0
    %365 = vmatprep.subr.bf16.mxu0 0
    %366 = vmatpush1.bf16.msra.mxu0 0
    %367 = vmatprep.subr.bf16.mxu0 0
    %368 = vmatpush1.bf16.msra.mxu0 0
    %369 = vmatprep.subr.bf16.mxu0 0
    %370 = vmatpush1.bf16.msra.mxu0 0
    %371 = vmatprep.subr.bf16.mxu0 0
    %372 = vmatpush1.bf16.msra.mxu0 0
    %373 = vmatprep.subr.bf16.mxu0 0
    %374 = vmatpush1.bf16.msra.mxu0 0
    %375 = vmatprep.subr.bf16.mxu0 0
    %376 = vmatpush1.bf16.msra.mxu0 0
    %377 = vmatprep.mubr.bf16.mxu0 0
    %378 = vmatmul.mubr.bf16.gmra.mrb[0].mxu0 %v261
    %v379 = vpop.f32.mrb[0].mxu0
    %v380 = vadd.f32 %v171, %v379
    %v381 = vpop.f32.mrb[0].mxu0
    %v382 = vadd.f32 %v175, %v381
    %v383 = vpop.f32.mrb[0].mxu0
    %v384 = vpop.f32.mrb[0].mxu0
    %385 = vdwg.mxu0
    %386 = vmatprep.subr.bf16.mxu0 0
    %387 = vmatpush1.bf16.msra.mxu0 %v237
    %388 = vmatprep.subr.bf16.mxu0 0
    %389 = vmatpush1.bf16.msra.mxu0 %v244
    %390 = vmatprep.subr.bf16.mxu0 0
    %391 = vmatpush1.bf16.msra.mxu0 0
    %392 = vmatprep.subr.bf16.mxu0 0
    %393 = vmatpush1.bf16.msra.mxu0 0
    %394 = vmatprep.subr.bf16.mxu0 0
    %395 = vmatpush1.bf16.msra.mxu0 0
    %396 = vmatprep.subr.bf16.mxu0 0
    %397 = vmatpush1.bf16.msra.mxu0 0
    %398 = vmatprep.subr.bf16.mxu0 0
    %399 = vmatpush1.bf16.msra.mxu0 0
    %400 = vmatprep.subr.bf16.mxu0 0
    %401 = vmatpush1.bf16.msra.mxu0 0
    %402 = vmatprep.subr.bf16.mxu0 0
    %403 = vmatpush1.bf16.msra.mxu0 0
    %404 = vmatprep.subr.bf16.mxu0 0
    %405 = vmatpush1.bf16.msra.mxu0 0
    %406 = vmatprep.subr.bf16.mxu0 0
    %407 = vmatpush1.bf16.msra.mxu0 0
    %408 = vmatprep.subr.bf16.mxu0 0
    %409 = vmatpush1.bf16.msra.mxu0 0
    %410 = vmatprep.subr.bf16.mxu0 0
    %411 = vmatpush1.bf16.msra.mxu0 0
    %412 = vmatprep.subr.bf16.mxu0 0
    %413 = vmatpush1.bf16.msra.mxu0 0
    %414 = vmatprep.subr.bf16.mxu0 0
    %415 = vmatpush1.bf16.msra.mxu0 0
    %416 = vmatprep.subr.bf16.mxu0 0
    %417 = vmatpush1.bf16.msra.mxu0 0
    %418 = vmatprep.mubr.bf16.mxu0 0
    %419 = vmatmul.mubr.bf16.gmra.mrb[0].mxu0 %v261
    %v420 = vpop.f32.mrb[0].mxu0
    %v421 = vadd.f32 %v179, %v420
    %v422 = vpop.f32.mrb[0].mxu0
    %v423 = vpop.f32.mrb[0].mxu0
    %v424 = vpop.f32.mrb[0].mxu0
    %425 = vdwg.mxu0
    %v426 = vmax.f32 %v298, 0.0
    %v427 = vmax.f32 %v300, 0.0
    %v428 = vmax.f32 %v339, 0.0
    %v429 = vmax.f32 %v341, 0.0
    %v430 = vmax.f32 %v380, 0.0
    %v431 = vmax.f32 %v382, 0.0
    %v432 = vmax.f32 %v421, 0.0
    %v433 = vpack.c.bf16 %v426, %v426
    %v434 = vpack.c.bf16 %v427, %v427
    %v435 = vpack.c.bf16 %v428, %v428
    %v436 = vpack.c.bf16 %v429, %v429
    %v437 = vpack.c.bf16 %v430, %v430
    %v438 = vpack.c.bf16 %v431, %v431
    %v439 = vpack.c.bf16 %v432, %v432
    %v440 = vld [vmem:[#allocation6] sm:$0xff]
    %v441 = vld [vmem:[#allocation6 + $0x8] sm:$0xf]
    %v442 = vld [vmem:[#allocation6 + $0xc] sm:$0xff]
    %v443 = vld [vmem:[#allocation6 + $0x14] sm:$0xf]
    %v444 = vld [vmem:[#allocation6 + $0x18] sm:$0xff]
    %v445 = vld [vmem:[#allocation6 + $0x20] sm:$0xf]
    %v446 = vld [vmem:[#allocation6 + $0x24] sm:$0xff]
    %v447 = vld [vmem:[#allocation6 + $0x2c] sm:$0xf]
    %v448 = vld [vmem:[#allocation6 + $0x30] sm:$0xff]
    %v449 = vld [vmem:[#allocation6 + $0x38] sm:$0xf]
    %v450 = vld [vmem:[#allocation6 + $0x3c] sm:$0xff]
    %v451 = vld [vmem:[#allocation6 + $0x44] sm:$0xf]
    %v452 = vld [vmem:[#allocation6 + $0x48] sm:$0xff]
    %v453 = vld [vmem:[#allocation6 + $0x50] sm:$0xf]
    %v454 = vld [vmem:[#allocation6 + $0x54] sm:$0xff]
    %v455 = vld [vmem:[#allocation6 + $0x5c] sm:$0xf]
    %v456 = vld [vmem:[#allocation6 + $0x60] sm:$0xff]
    %v457 = vld [vmem:[#allocation6 + $0x68] sm:$0xf]
    %v458 = vld [vmem:[#allocation6 + $0x6c] sm:$0xff]
    %v459 = vld [vmem:[#allocation6 + $0x74] sm:$0xf]
    %v460 = vld [vmem:[#allocation6 + $0x78] sm:$0xff]
    %v461 = vld [vmem:[#allocation6 + $0x80] sm:$0xf]
    %v462 = vld [vmem:[#allocation6 + $0x84] sm:$0xff]
    %v463 = vld [vmem:[#allocation6 + $0x8c] sm:$0xf]
    %v464 = vld [vmem:[#allocation6 + $0x90] sm:$0xff]
    %v465 = vld [vmem:[#allocation6 + $0x98] sm:$0xf]
    %v466 = vld [vmem:[#allocation6 + $0x9c] sm:$0xff]
    %v467 = vld [vmem:[#allocation6 + $0xa4] sm:$0xf]
    %v468 = vld [vmem:[#allocation6 + $0xa8] sm:$0xff]
    %v469 = vld [vmem:[#allocation6 + $0xb0] sm:$0xf]
    %v470 = vld [vmem:[#allocation6 + $0xb4] sm:$0xff]
    %v471 = vld [vmem:[#allocation6 + $0xbc] sm:$0xf]
    %v472 = vld [vmem:[#allocation6 + $0xc0] sm:$0xff]
    %v473 = vld [vmem:[#allocation6 + $0xc8] sm:$0xf]
    %v474 = vld [vmem:[#allocation6 + $0xcc] sm:$0xff]
    %v475 = vld [vmem:[#allocation6 + $0xd4] sm:$0xf]
    %v476 = vld [vmem:[#allocation6 + $0xd8] sm:$0xff]
    %v477 = vld [vmem:[#allocation6 + $0xe0] sm:$0xf]
    %v478 = vld [vmem:[#allocation6 + $0xe4] sm:$0xff]
    %v479 = vld [vmem:[#allocation6 + $0xec] sm:$0xf]
    %v480 = vld [vmem:[#allocation6 + $0xf0] sm:$0xff]
    %v481 = vld [vmem:[#allocation6 + $0xf8] sm:$0xf]
    %v482 = vld [vmem:[#allocation6 + $0xfc] sm:$0xff]
    %v483 = vld [vmem:[#allocation6 + $0x104] sm:$0xf]
    %v484 = vld [vmem:[#allocation6 + $0x108] sm:$0xff]
    %v485 = vld [vmem:[#allocation6 + $0x110] sm:$0xf]
    %v486 = vld [vmem:[#allocation6 + $0x114] sm:$0xff]
    %v487 = vld [vmem:[#allocation6 + $0x11c] sm:$0xf]
    %v488 = vld [vmem:[#allocation6 + $0x120] sm:$0xff]
    %v489 = vld [vmem:[#allocation6 + $0x128] sm:$0xf]
    %v490 = vld [vmem:[#allocation6 + $0x12c] sm:$0xff]
    %v491 = vld [vmem:[#allocation6 + $0x134] sm:$0xf]
    %v492 = vld [vmem:[#allocation6 + $0x138] sm:$0xff]
    %v493 = vld [vmem:[#allocation6 + $0x140] sm:$0xf]
    %v494 = vld [vmem:[#allocation6 + $0x144] sm:$0xff]
    %v495 = vld [vmem:[#allocation6 + $0x14c] sm:$0xf]
    %v496 = vld [vmem:[#allocation6 + $0x150] sm:$0xff]
    %v497 = vld [vmem:[#allocation6 + $0x158] sm:$0xf]
    %v498 = vld [vmem:[#allocation6 + $0x15c] sm:$0xff]
    %v499 = vld [vmem:[#allocation6 + $0x164] sm:$0xf]
    %v500 = vld [vmem:[#allocation6 + $0x168] sm:$0xff]
    %v501 = vld [vmem:[#allocation6 + $0x170] sm:$0xf]
    %v502 = vld [vmem:[#allocation6 + $0x174] sm:$0xff]
    %v503 = vld [vmem:[#allocation6 + $0x17c] sm:$0xf]
    %v504 = vld [vmem:[#allocation6 + $0x180] sm:$0xff]
    %v505 = vld [vmem:[#allocation6 + $0x188] sm:$0xf]
    %v506 = vld [vmem:[#allocation6 + $0x18c] sm:$0xff]
    %v507 = vld [vmem:[#allocation6 + $0x194] sm:$0xf]
    %v508 = vld [vmem:[#allocation6 + $0x198] sm:$0xff]
    %v509 = vld [vmem:[#allocation6 + $0x1a0] sm:$0xf]
    %v510 = vld [vmem:[#allocation6 + $0x1a4] sm:$0xff]
    %v511 = vld [vmem:[#allocation6 + $0x1ac] sm:$0xf]
    %v512 = vld [vmem:[#allocation6 + $0x1b0] sm:$0xff]
    %v513 = vld [vmem:[#allocation6 + $0x1b8] sm:$0xf]
    %v514 = vld [vmem:[#allocation6 + $0x1bc] sm:$0xff]
    %v515 = vld [vmem:[#allocation6 + $0x1c4] sm:$0xf]
    %v516 = vld [vmem:[#allocation6 + $0x1c8] sm:$0xff]
    %v517 = vld [vmem:[#allocation6 + $0x1d0] sm:$0xf]
    %v518 = vld [vmem:[#allocation6 + $0x1d4] sm:$0xff]
    %v519 = vld [vmem:[#allocation6 + $0x1dc] sm:$0xf]
    %v520 = vld [vmem:[#allocation6 + $0x1e0] sm:$0xff]
    %v521 = vld [vmem:[#allocation6 + $0x1e8] sm:$0xf]
    %v522 = vld [vmem:[#allocation6 + $0x1ec] sm:$0xff]
    %v523 = vld [vmem:[#allocation6 + $0x1f4] sm:$0xf]
    %v524 = vld [vmem:[#allocation6 + $0x1f8] sm:$0xff]
    %v525 = vld [vmem:[#allocation6 + $0x200] sm:$0xf]
    %v526 = vld [vmem:[#allocation6 + $0x204] sm:$0xff]
    %v527 = vld [vmem:[#allocation6 + $0x20c] sm:$0xf]
    %v528 = vld [vmem:[#allocation6 + $0x210] sm:$0xff]
    %v529 = vld [vmem:[#allocation6 + $0x218] sm:$0xf]
    %v530 = vld [vmem:[#allocation6 + $0x21c] sm:$0xff]
    %v531 = vld [vmem:[#allocation6 + $0x224] sm:$0xf]
    %v532 = vld [vmem:[#allocation6 + $0x228] sm:$0xff]
    %v533 = vld [vmem:[#allocation6 + $0x230] sm:$0xf]
    %v534 = vld [vmem:[#allocation6 + $0x234] sm:$0xff]
    %v535 = vld [vmem:[#allocation6 + $0x23c] sm:$0xf]
    %v536 = vld [vmem:[#allocation6 + $0x240] sm:$0xff]
    %v537 = vld [vmem:[#allocation6 + $0x248] sm:$0xf]
    %v538 = vld [vmem:[#allocation6 + $0x24c] sm:$0xff]
    %v539 = vld [vmem:[#allocation6 + $0x254] sm:$0xf]
    %v540 = vld [vmem:[#allocation6 + $0x258] sm:$0xff]
    %v541 = vld [vmem:[#allocation6 + $0x260] sm:$0xf]
    %v542 = vld [vmem:[#allocation6 + $0x264] sm:$0xff]
    %v543 = vld [vmem:[#allocation6 + $0x26c] sm:$0xf]
    %v544 = vld [vmem:[#allocation6 + $0x270] sm:$0xff]
    %v545 = vld [vmem:[#allocation6 + $0x278] sm:$0xf]
    %v546 = vld [vmem:[#allocation6 + $0x27c] sm:$0xff]
    %v547 = vld [vmem:[#allocation6 + $0x284] sm:$0xf]
    %v548 = vld [vmem:[#allocation6 + $0x288] sm:$0xff]
    %v549 = vld [vmem:[#allocation6 + $0x290] sm:$0xf]
    %v550 = vld [vmem:[#allocation6 + $0x294] sm:$0xff]
    %v551 = vld [vmem:[#allocation6 + $0x29c] sm:$0xf]
    %v552 = vld [vmem:[#allocation6 + $0x2a0] sm:$0xff]
    %v553 = vld [vmem:[#allocation6 + $0x2a8] sm:$0xf]
    %v554 = vld [vmem:[#allocation6 + $0x2ac] sm:$0xff]
    %v555 = vld [vmem:[#allocation6 + $0x2b4] sm:$0xf]
    %v556 = vld [vmem:[#allocation6 + $0x2b8] sm:$0xff]
    %v557 = vld [vmem:[#allocation6 + $0x2c0] sm:$0xf]
    %v558 = vld [vmem:[#allocation6 + $0x2c4] sm:$0xff]
    %v559 = vld [vmem:[#allocation6 + $0x2cc] sm:$0xf]
    %v560 = vld [vmem:[#allocation6 + $0x2d0] sm:$0xff]
    %v561 = vld [vmem:[#allocation6 + $0x2d8] sm:$0xf]
    %v562 = vld [vmem:[#allocation6 + $0x2dc] sm:$0xff]
    %v563 = vld [vmem:[#allocation6 + $0x2e4] sm:$0xf]
    %v564 = vld [vmem:[#allocation6 + $0x2e8] sm:$0xff]
    %v565 = vld [vmem:[#allocation6 + $0x2f0] sm:$0xf]
    %v566 = vld [vmem:[#allocation6 + $0x2f4] sm:$0xff]
    %v567 = vld [vmem:[#allocation6 + $0x2fc] sm:$0xf]
    %v568 = vld [vmem:[#allocation6 + $0x300] sm:$0xff]
    %v569 = vld [vmem:[#allocation6 + $0x308] sm:$0xf]
    %v570 = vld [vmem:[#allocation6 + $0x30c] sm:$0xff]
    %v571 = vld [vmem:[#allocation6 + $0x314] sm:$0xf]
    %v572 = vld [vmem:[#allocation6 + $0x318] sm:$0xff]
    %v573 = vld [vmem:[#allocation6 + $0x320] sm:$0xf]
    %v574 = vld [vmem:[#allocation6 + $0x324] sm:$0xff]
    %v575 = vld [vmem:[#allocation6 + $0x32c] sm:$0xf]
    %v576 = vld [vmem:[#allocation6 + $0x330] sm:$0xff]
    %v577 = vld [vmem:[#allocation6 + $0x338] sm:$0xf]
    %v578 = vld [vmem:[#allocation6 + $0x33c] sm:$0xff]
    %v579 = vld [vmem:[#allocation6 + $0x344] sm:$0xf]
    %v580 = vld [vmem:[#allocation6 + $0x348] sm:$0xff]
    %v581 = vld [vmem:[#allocation6 + $0x350] sm:$0xf]
    %v582 = vld [vmem:[#allocation6 + $0x354] sm:$0xff]
    %v583 = vld [vmem:[#allocation6 + $0x35c] sm:$0xf]
    %v584 = vld [vmem:[#allocation6 + $0x360] sm:$0xff]
    %v585 = vld [vmem:[#allocation6 + $0x368] sm:$0xf]
    %v586 = vld [vmem:[#allocation6 + $0x36c] sm:$0xff]
    %v587 = vld [vmem:[#allocation6 + $0x374] sm:$0xf]
    %v588 = vld [vmem:[#allocation6 + $0x378] sm:$0xff]
    %v589 = vld [vmem:[#allocation6 + $0x380] sm:$0xf]
    %v590 = vld [vmem:[#allocation6 + $0x384] sm:$0xff]
    %v591 = vld [vmem:[#allocation6 + $0x38c] sm:$0xf]
    %v592 = vld [vmem:[#allocation6 + $0x390] sm:$0xff]
    %v593 = vld [vmem:[#allocation6 + $0x398] sm:$0xf]
    %v594 = vld [vmem:[#allocation6 + $0x39c] sm:$0xff]
    %v595 = vld [vmem:[#allocation6 + $0x3a4] sm:$0xf]
    %v596 = vld [vmem:[#allocation6 + $0x3a8] sm:$0xff]
    %v597 = vld [vmem:[#allocation6 + $0x3b0] sm:$0xf]
    %v598 = vld [vmem:[#allocation6 + $0x3b4] sm:$0xff]
    %v599 = vld [vmem:[#allocation6 + $0x3bc] sm:$0xf]
    %v600 = vld [vmem:[#allocation6 + $0x3c0] sm:$0xff]
    %v601 = vld [vmem:[#allocation6 + $0x3c8] sm:$0xf]
    %v602 = vld [vmem:[#allocation6 + $0x3cc] sm:$0xff]
    %v603 = vld [vmem:[#allocation6 + $0x3d4] sm:$0xf]
    %v604 = vld [vmem:[#allocation6 + $0x3d8] sm:$0xff]
    %v605 = vld [vmem:[#allocation6 + $0x3e0] sm:$0xf]
    %v606 = vld [vmem:[#allocation6 + $0x3e4] sm:$0xff]
    %v607 = vld [vmem:[#allocation6 + $0x3ec] sm:$0xf]
    %v608 = vld [vmem:[#allocation6 + $0x3f0] sm:$0xff]
    %v609 = vld [vmem:[#allocation6 + $0x3f8] sm:$0xf]
    %v610 = vld [vmem:[#allocation6 + $0x3fc] sm:$0xff]
    %v611 = vld [vmem:[#allocation6 + $0x404] sm:$0xf]
    %v612 = vld [vmem:[#allocation6 + $0x408] sm:$0xff]
    %v613 = vld [vmem:[#allocation6 + $0x410] sm:$0xf]
    %v614 = vld [vmem:[#allocation6 + $0x414] sm:$0xff]
    %v615 = vld [vmem:[#allocation6 + $0x41c] sm:$0xf]
    %v616 = vld [vmem:[#allocation6 + $0x420] sm:$0xff]
    %v617 = vld [vmem:[#allocation6 + $0x428] sm:$0xf]
    %v618 = vld [vmem:[#allocation6 + $0x42c] sm:$0xff]
    %v619 = vld [vmem:[#allocation6 + $0x434] sm:$0xf]
    %v620 = vld [vmem:[#allocation6 + $0x438] sm:$0xff]
    %v621 = vld [vmem:[#allocation6 + $0x440] sm:$0xf]
    %v622 = vld [vmem:[#allocation6 + $0x444] sm:$0xff]
    %v623 = vld [vmem:[#allocation6 + $0x44c] sm:$0xf]
    %v624 = vld [vmem:[#allocation6 + $0x450] sm:$0xff]
    %v625 = vld [vmem:[#allocation6 + $0x458] sm:$0xf]
    %v626 = vld [vmem:[#allocation6 + $0x45c] sm:$0xff]
    %v627 = vld [vmem:[#allocation6 + $0x464] sm:$0xf]
    %v628 = vld [vmem:[#allocation6 + $0x468] sm:$0xff]
    %v629 = vld [vmem:[#allocation6 + $0x470] sm:$0xf]
    %v630 = vld [vmem:[#allocation6 + $0x474] sm:$0xff]
    %v631 = vld [vmem:[#allocation6 + $0x47c] sm:$0xf]
    %v632 = vld [vmem:[#allocation6 + $0x480] sm:$0xff]
    %v633 = vld [vmem:[#allocation6 + $0x488] sm:$0xf]
    %v634 = vld [vmem:[#allocation6 + $0x48c] sm:$0xff]
    %v635 = vld [vmem:[#allocation6 + $0x494] sm:$0xf]
    %v636 = vld [vmem:[#allocation6 + $0x498] sm:$0xff]
    %v637 = vld [vmem:[#allocation6 + $0x4a0] sm:$0xf]
    %v638 = vld [vmem:[#allocation6 + $0x4a4] sm:$0xff]
    %v639 = vld [vmem:[#allocation6 + $0x4ac] sm:$0xf]
    %v640 = vld [vmem:[#allocation6 + $0x4b0] sm:$0xff]
    %v641 = vld [vmem:[#allocation6 + $0x4b8] sm:$0xf]
    %v642 = vld [vmem:[#allocation6 + $0x4bc] sm:$0xff]
    %v643 = vld [vmem:[#allocation6 + $0x4c4] sm:$0xf]
    %v644 = vld [vmem:[#allocation6 + $0x4c8] sm:$0xff]
    %v645 = vld [vmem:[#allocation6 + $0x4d0] sm:$0xf]
    %v646 = vld [vmem:[#allocation6 + $0x4d4] sm:$0xff]
    %v647 = vld [vmem:[#allocation6 + $0x4dc] sm:$0xf]
    %v648 = vld [vmem:[#allocation6 + $0x4e0] sm:$0xff]
    %v649 = vld [vmem:[#allocation6 + $0x4e8] sm:$0xf]
    %v650 = vld [vmem:[#allocation6 + $0x4ec] sm:$0xff]
    %v651 = vld [vmem:[#allocation6 + $0x4f4] sm:$0xf]
    %v652 = vld [vmem:[#allocation6 + $0x4f8] sm:$0xff]
    %v653 = vld [vmem:[#allocation6 + $0x500] sm:$0xf]
    %v654 = vld [vmem:[#allocation6 + $0x504] sm:$0xff]
    %v655 = vld [vmem:[#allocation6 + $0x50c] sm:$0xf]
    %v656 = vld [vmem:[#allocation6 + $0x510] sm:$0xff]
    %v657 = vld [vmem:[#allocation6 + $0x518] sm:$0xf]
    %v658 = vld [vmem:[#allocation6 + $0x51c] sm:$0xff]
    %v659 = vld [vmem:[#allocation6 + $0x524] sm:$0xf]
    %v660 = vld [vmem:[#allocation6 + $0x528] sm:$0xff]
    %v661 = vld [vmem:[#allocation6 + $0x530] sm:$0xf]
    %v662 = vld [vmem:[#allocation6 + $0x534] sm:$0xff]
    %v663 = vld [vmem:[#allocation6 + $0x53c] sm:$0xf]
    %v664 = vld [vmem:[#allocation12 + $0x7] sm:$0x7]
    %v666 = vlaneseq
    %v667 = vshrl.u32 %v666, 7
    %v668 = vsub.s32 0, %v667
    %v669 = vrot.slane %v664, %v668
    %v670 = vlaneseq
    %v671 = vshrl.u32 %v670, 7
    %v672 = vsub.s32 1, %v671
    %v673 = vrot.slane %v664, %v672
    %v674 = vlaneseq
    %v675 = vshrl.u32 %v674, 7
    %v676 = vsub.s32 2, %v675
    %v677 = vrot.slane %v664, %v676
    %v905 = vunpack.c.l.b16 %v440
    %v906 = vunpack.c.h.b16 %v440
    %v907 = vunpack.c.l.b16 %v441
    %v908 = vunpack.c.l.b16 %v442
    %v909 = vunpack.c.h.b16 %v442
    %v910 = vunpack.c.l.b16 %v443
    %v911 = vunpack.c.l.b16 %v444
    %v912 = vunpack.c.h.b16 %v444
    %v913 = vunpack.c.l.b16 %v445
    %v914 = vunpack.c.l.b16 %v446
    %v915 = vunpack.c.h.b16 %v446
    %v916 = vunpack.c.l.b16 %v447
    %v917 = vunpack.c.l.b16 %v448
    %v918 = vunpack.c.h.b16 %v448
    %v919 = vunpack.c.l.b16 %v449
    %v920 = vunpack.c.l.b16 %v450
    %v921 = vunpack.c.h.b16 %v450
    %v922 = vunpack.c.l.b16 %v451
    %v923 = vunpack.c.l.b16 %v452
    %v924 = vunpack.c.h.b16 %v452
    %v925 = vunpack.c.l.b16 %v453
    %v926 = vunpack.c.l.b16 %v454
    %v927 = vunpack.c.h.b16 %v454
    %v928 = vunpack.c.l.b16 %v455
    %v929 = vunpack.c.l.b16 %v456
    %v930 = vunpack.c.h.b16 %v456
    %v931 = vunpack.c.l.b16 %v457
    %v932 = vunpack.c.l.b16 %v458
    %v933 = vunpack.c.h.b16 %v458
    %v934 = vunpack.c.l.b16 %v459
    %v935 = vunpack.c.l.b16 %v460
    %v936 = vunpack.c.h.b16 %v460
    %v937 = vunpack.c.l.b16 %v461
    %v938 = vunpack.c.l.b16 %v462
    %v939 = vunpack.c.h.b16 %v462
    %v940 = vunpack.c.l.b16 %v463
    %v941 = vunpack.c.l.b16 %v464
    %v942 = vunpack.c.h.b16 %v464
    %v943 = vunpack.c.l.b16 %v465
    %v944 = vunpack.c.l.b16 %v466
    %v945 = vunpack.c.h.b16 %v466
    %v946 = vunpack.c.l.b16 %v467
    %v947 = vunpack.c.l.b16 %v468
    %v948 = vunpack.c.h.b16 %v468
    %v949 = vunpack.c.l.b16 %v469
    %v950 = vunpack.c.l.b16 %v470
    %v951 = vunpack.c.h.b16 %v470
    %v952 = vunpack.c.l.b16 %v471
    %v953 = vunpack.c.l.b16 %v472
    %v954 = vunpack.c.h.b16 %v472
    %v955 = vunpack.c.l.b16 %v473
    %v956 = vunpack.c.l.b16 %v474
    %v957 = vunpack.c.h.b16 %v474
    %v958 = vunpack.c.l.b16 %v475
    %v959 = vunpack.c.l.b16 %v476
    %v960 = vunpack.c.h.b16 %v476
    %v961 = vunpack.c.l.b16 %v477
    %v962 = vunpack.c.l.b16 %v478
    %v963 = vunpack.c.h.b16 %v478
    %v964 = vunpack.c.l.b16 %v479
    %v965 = vunpack.c.l.b16 %v480
    %v966 = vunpack.c.h.b16 %v480
    %v967 = vunpack.c.l.b16 %v481
    %v968 = vunpack.c.l.b16 %v482
    %v969 = vunpack.c.h.b16 %v482
    %v970 = vunpack.c.l.b16 %v483
    %v971 = vunpack.c.l.b16 %v484
    %v972 = vunpack.c.h.b16 %v484
    %v973 = vunpack.c.l.b16 %v485
    %v974 = vunpack.c.l.b16 %v486
    %v975 = vunpack.c.h.b16 %v486
    %v976 = vunpack.c.l.b16 %v487
    %v977 = vunpack.c.l.b16 %v488
    %v978 = vunpack.c.h.b16 %v488
    %v979 = vunpack.c.l.b16 %v489
    %v980 = vunpack.c.l.b16 %v490
    %v981 = vunpack.c.h.b16 %v490
    %v982 = vunpack.c.l.b16 %v491
    %v983 = vunpack.c.l.b16 %v492
    %v984 = vunpack.c.h.b16 %v492
    %v985 = vunpack.c.l.b16 %v493
    %v986 = vunpack.c.l.b16 %v494
    %v987 = vunpack.c.h.b16 %v494
    %v988 = vunpack.c.l.b16 %v495
    %v989 = vunpack.c.l.b16 %v496
    %v990 = vunpack.c.h.b16 %v496
    %v991 = vunpack.c.l.b16 %v497
    %v992 = vunpack.c.l.b16 %v498
    %v993 = vunpack.c.h.b16 %v498
    %v994 = vunpack.c.l.b16 %v499
    %v995 = vunpack.c.l.b16 %v500
    %v996 = vunpack.c.h.b16 %v500
    %v997 = vunpack.c.l.b16 %v501
    %v998 = vunpack.c.l.b16 %v502
    %v999 = vunpack.c.h.b16 %v502
    %v1000 = vunpack.c.l.b16 %v503
    %v1001 = vunpack.c.l.b16 %v504
    %v1002 = vunpack.c.h.b16 %v504
    %v1003 = vunpack.c.l.b16 %v505
    %v1004 = vunpack.c.l.b16 %v506
    %v1005 = vunpack.c.h.b16 %v506
    %v1006 = vunpack.c.l.b16 %v507
    %v1007 = vunpack.c.l.b16 %v508
    %v1008 = vunpack.c.h.b16 %v508
    %v1009 = vunpack.c.l.b16 %v509
    %v1010 = vunpack.c.l.b16 %v510
    %v1011 = vunpack.c.h.b16 %v510
    %v1012 = vunpack.c.l.b16 %v511
    %v1013 = vunpack.c.l.b16 %v512
    %v1014 = vunpack.c.h.b16 %v512
    %v1015 = vunpack.c.l.b16 %v513
    %v1016 = vunpack.c.l.b16 %v514
    %v1017 = vunpack.c.h.b16 %v514
    %v1018 = vunpack.c.l.b16 %v515
    %v1019 = vunpack.c.l.b16 %v516
    %v1020 = vunpack.c.h.b16 %v516
    %v1021 = vunpack.c.l.b16 %v517
    %v1022 = vunpack.c.l.b16 %v518
    %v1023 = vunpack.c.h.b16 %v518
    %v1024 = vunpack.c.l.b16 %v519
    %v1025 = vunpack.c.l.b16 %v520
    %v1026 = vunpack.c.h.b16 %v520
    %v1027 = vunpack.c.l.b16 %v521
    %v1028 = vunpack.c.l.b16 %v522
    %v1029 = vunpack.c.h.b16 %v522
    %v1030 = vunpack.c.l.b16 %v523
    %v1031 = vunpack.c.l.b16 %v524
    %v1032 = vunpack.c.h.b16 %v524
    %v1033 = vunpack.c.l.b16 %v525
    %v1034 = vunpack.c.l.b16 %v526
    %v1035 = vunpack.c.h.b16 %v526
    %v1036 = vunpack.c.l.b16 %v527
    %v1037 = vunpack.c.l.b16 %v528
    %v1038 = vunpack.c.h.b16 %v528
    %v1039 = vunpack.c.l.b16 %v529
    %v1040 = vunpack.c.l.b16 %v530
    %v1041 = vunpack.c.h.b16 %v530
    %v1042 = vunpack.c.l.b16 %v531
    %v1043 = vunpack.c.l.b16 %v532
    %v1044 = vunpack.c.h.b16 %v532
    %v1045 = vunpack.c.l.b16 %v533
    %v1046 = vunpack.c.l.b16 %v534
    %v1047 = vunpack.c.h.b16 %v534
    %v1048 = vunpack.c.l.b16 %v535
    %v1049 = vunpack.c.l.b16 %v536
    %v1050 = vunpack.c.h.b16 %v536
    %v1051 = vunpack.c.l.b16 %v537
    %v1052 = vunpack.c.l.b16 %v538
    %v1053 = vunpack.c.h.b16 %v538
    %v1054 = vunpack.c.l.b16 %v539
    %v1055 = vunpack.c.l.b16 %v540
    %v1056 = vunpack.c.h.b16 %v540
    %v1057 = vunpack.c.l.b16 %v541
    %v1058 = vunpack.c.l.b16 %v542
    %v1059 = vunpack.c.h.b16 %v542
    %v1060 = vunpack.c.l.b16 %v543
    %v1061 = vunpack.c.l.b16 %v544
    %v1062 = vunpack.c.h.b16 %v544
    %v1063 = vunpack.c.l.b16 %v545
    %v1064 = vunpack.c.l.b16 %v546
    %v1065 = vunpack.c.h.b16 %v546
    %v1066 = vunpack.c.l.b16 %v547
    %v1067 = vunpack.c.l.b16 %v548
    %v1068 = vunpack.c.h.b16 %v548
    %v1069 = vunpack.c.l.b16 %v549
    %v1070 = vunpack.c.l.b16 %v550
    %v1071 = vunpack.c.h.b16 %v550
    %v1072 = vunpack.c.l.b16 %v551
    %v1073 = vunpack.c.l.b16 %v552
    %v1074 = vunpack.c.h.b16 %v552
    %v1075 = vunpack.c.l.b16 %v553
    %v1076 = vunpack.c.l.b16 %v554
    %v1077 = vunpack.c.h.b16 %v554
    %v1078 = vunpack.c.l.b16 %v555
    %v1079 = vunpack.c.l.b16 %v556
    %v1080 = vunpack.c.h.b16 %v556
    %v1081 = vunpack.c.l.b16 %v557
    %v1082 = vunpack.c.l.b16 %v558
    %v1083 = vunpack.c.h.b16 %v558
    %v1084 = vunpack.c.l.b16 %v559
    %v1085 = vunpack.c.l.b16 %v560
    %v1086 = vunpack.c.h.b16 %v560
    %v1087 = vunpack.c.l.b16 %v561
    %v1088 = vunpack.c.l.b16 %v562
    %v1089 = vunpack.c.h.b16 %v562
    %v1090 = vunpack.c.l.b16 %v563
    %v1091 = vunpack.c.l.b16 %v564
    %v1092 = vunpack.c.h.b16 %v564
    %v1093 = vunpack.c.l.b16 %v565
    %v1094 = vunpack.c.l.b16 %v566
    %v1095 = vunpack.c.h.b16 %v566
    %v1096 = vunpack.c.l.b16 %v567
    %v1097 = vunpack.c.l.b16 %v568
    %v1098 = vunpack.c.h.b16 %v568
    %v1099 = vunpack.c.l.b16 %v569
    %v1100 = vunpack.c.l.b16 %v570
    %v1101 = vunpack.c.h.b16 %v570
    %v1102 = vunpack.c.l.b16 %v571
    %v1103 = vunpack.c.l.b16 %v572
    %v1104 = vunpack.c.h.b16 %v572
    %v1105 = vunpack.c.l.b16 %v573
    %v1106 = vunpack.c.l.b16 %v574
    %v1107 = vunpack.c.h.b16 %v574
    %v1108 = vunpack.c.l.b16 %v575
    %v1109 = vunpack.c.l.b16 %v576
    %v1110 = vunpack.c.h.b16 %v576
    %v1111 = vunpack.c.l.b16 %v577
    %v1112 = vunpack.c.l.b16 %v578
    %v1113 = vunpack.c.h.b16 %v578
    %v1114 = vunpack.c.l.b16 %v579
    %v1115 = vunpack.c.l.b16 %v580
    %v1116 = vunpack.c.h.b16 %v580
    %v1117 = vunpack.c.l.b16 %v581
    %v1118 = vunpack.c.l.b16 %v582
    %v1119 = vunpack.c.h.b16 %v582
    %v1120 = vunpack.c.l.b16 %v583
    %v1121 = vunpack.c.l.b16 %v584
    %v1122 = vunpack.c.h.b16 %v584
    %v1123 = vunpack.c.l.b16 %v585
    %v1124 = vunpack.c.l.b16 %v586
    %v1125 = vunpack.c.h.b16 %v586
    %v1126 = vunpack.c.l.b16 %v587
    %v1127 = vunpack.c.l.b16 %v588
    %v1128 = vunpack.c.h.b16 %v588
    %v1129 = vunpack.c.l.b16 %v589
    %v1130 = vunpack.c.l.b16 %v590
    %v1131 = vunpack.c.h.b16 %v590
    %v1132 = vunpack.c.l.b16 %v591
    %v1133 = vunpack.c.l.b16 %v592
    %v1134 = vunpack.c.h.b16 %v592
    %v1135 = vunpack.c.l.b16 %v593
    %v1136 = vunpack.c.l.b16 %v594
    %v1137 = vunpack.c.h.b16 %v594
    %v1138 = vunpack.c.l.b16 %v595
    %v1139 = vunpack.c.l.b16 %v596
    %v1140 = vunpack.c.h.b16 %v596
    %v1141 = vunpack.c.l.b16 %v597
    %v1142 = vunpack.c.l.b16 %v598
    %v1143 = vunpack.c.h.b16 %v598
    %v1144 = vunpack.c.l.b16 %v599
    %v1145 = vunpack.c.l.b16 %v600
    %v1146 = vunpack.c.h.b16 %v600
    %v1147 = vunpack.c.l.b16 %v601
    %v1148 = vunpack.c.l.b16 %v602
    %v1149 = vunpack.c.h.b16 %v602
    %v1150 = vunpack.c.l.b16 %v603
    %v1151 = vunpack.c.l.b16 %v604
    %v1152 = vunpack.c.h.b16 %v604
    %v1153 = vunpack.c.l.b16 %v605
    %v1154 = vunpack.c.l.b16 %v606
    %v1155 = vunpack.c.h.b16 %v606
    %v1156 = vunpack.c.l.b16 %v607
    %v1157 = vunpack.c.l.b16 %v608
    %v1158 = vunpack.c.h.b16 %v608
    %v1159 = vunpack.c.l.b16 %v609
    %v1160 = vunpack.c.l.b16 %v610
    %v1161 = vunpack.c.h.b16 %v610
    %v1162 = vunpack.c.l.b16 %v611
    %v1163 = vunpack.c.l.b16 %v612
    %v1164 = vunpack.c.h.b16 %v612
    %v1165 = vunpack.c.l.b16 %v613
    %v1166 = vunpack.c.l.b16 %v614
    %v1167 = vunpack.c.h.b16 %v614
    %v1168 = vunpack.c.l.b16 %v615
    %v1169 = vunpack.c.l.b16 %v616
    %v1170 = vunpack.c.h.b16 %v616
    %v1171 = vunpack.c.l.b16 %v617
    %v1172 = vunpack.c.l.b16 %v618
    %v1173 = vunpack.c.h.b16 %v618
    %v1174 = vunpack.c.l.b16 %v619
    %v1175 = vunpack.c.l.b16 %v620
    %v1176 = vunpack.c.h.b16 %v620
    %v1177 = vunpack.c.l.b16 %v621
    %v1178 = vunpack.c.l.b16 %v622
    %v1179 = vunpack.c.h.b16 %v622
    %v1180 = vunpack.c.l.b16 %v623
    %v1181 = vunpack.c.l.b16 %v624
    %v1182 = vunpack.c.h.b16 %v624
    %v1183 = vunpack.c.l.b16 %v625
    %v1184 = vunpack.c.l.b16 %v626
    %v1185 = vunpack.c.h.b16 %v626
    %v1186 = vunpack.c.l.b16 %v627
    %v1187 = vunpack.c.l.b16 %v628
    %v1188 = vunpack.c.h.b16 %v628
    %v1189 = vunpack.c.l.b16 %v629
    %v1190 = vunpack.c.l.b16 %v630
    %v1191 = vunpack.c.h.b16 %v630
    %v1192 = vunpack.c.l.b16 %v631
    %v1193 = vunpack.c.l.b16 %v632
    %v1194 = vunpack.c.h.b16 %v632
    %v1195 = vunpack.c.l.b16 %v633
    %v1196 = vunpack.c.l.b16 %v634
    %v1197 = vunpack.c.h.b16 %v634
    %v1198 = vunpack.c.l.b16 %v635
    %v1199 = vunpack.c.l.b16 %v636
    %v1200 = vunpack.c.h.b16 %v636
    %v1201 = vunpack.c.l.b16 %v637
    %v1202 = vunpack.c.l.b16 %v638
    %v1203 = vunpack.c.h.b16 %v638
    %v1204 = vunpack.c.l.b16 %v639
    %v1205 = vunpack.c.l.b16 %v640
    %v1206 = vunpack.c.h.b16 %v640
    %v1207 = vunpack.c.l.b16 %v641
    %v1208 = vunpack.c.l.b16 %v642
    %v1209 = vunpack.c.h.b16 %v642
    %v1210 = vunpack.c.l.b16 %v643
    %v1211 = vunpack.c.l.b16 %v644
    %v1212 = vunpack.c.h.b16 %v644
    %v1213 = vunpack.c.l.b16 %v645
    %v1214 = vunpack.c.l.b16 %v646
    %v1215 = vunpack.c.h.b16 %v646
    %v1216 = vunpack.c.l.b16 %v647
    %v1217 = vunpack.c.l.b16 %v648
    %v1218 = vunpack.c.h.b16 %v648
    %v1219 = vunpack.c.l.b16 %v649
    %v1220 = vunpack.c.l.b16 %v650
    %v1221 = vunpack.c.h.b16 %v650
    %v1222 = vunpack.c.l.b16 %v651
    %v1223 = vunpack.c.l.b16 %v652
    %v1224 = vunpack.c.h.b16 %v652
    %v1225 = vunpack.c.l.b16 %v653
    %v1226 = vunpack.c.l.b16 %v654
    %v1227 = vunpack.c.h.b16 %v654
    %v1228 = vunpack.c.l.b16 %v655
    %v1229 = vunpack.c.l.b16 %v656
    %v1230 = vunpack.c.h.b16 %v656
    %v1231 = vunpack.c.l.b16 %v657
    %v1232 = vunpack.c.l.b16 %v658
    %v1233 = vunpack.c.h.b16 %v658
    %v1234 = vunpack.c.l.b16 %v659
    %v1235 = vunpack.c.l.b16 %v660
    %v1236 = vunpack.c.h.b16 %v660
    %v1237 = vunpack.c.l.b16 %v661
    %v1238 = vunpack.c.l.b16 %v662
    %v1239 = vunpack.c.h.b16 %v662
    %v1240 = vunpack.c.l.b16 %v663
    %v1241 = vpack.c.b16 %v908, %v905
    %v1242 = vpack.c.b16 %v909, %v906
    %v1243 = vpack.c.b16 %v910, %v907
    %v1244 = vpack.c.b16 %v914, %v911
    %v1245 = vpack.c.b16 %v915, %v912
    %v1246 = vpack.c.b16 %v916, %v913
    %v1247 = vpack.c.b16 %v920, %v917
    %v1248 = vpack.c.b16 %v921, %v918
    %v1249 = vpack.c.b16 %v922, %v919
    %v1250 = vpack.c.b16 %v926, %v923
    %v1251 = vpack.c.b16 %v927, %v924
    %v1252 = vpack.c.b16 %v928, %v925
    %v1253 = vpack.c.b16 %v932, %v929
    %v1254 = vpack.c.b16 %v933, %v930
    %v1255 = vpack.c.b16 %v934, %v931
    %v1256 = vpack.c.b16 %v938, %v935
    %v1257 = vpack.c.b16 %v939, %v936
    %v1258 = vpack.c.b16 %v940, %v937
    %v1259 = vpack.c.b16 %v944, %v941
    %v1260 = vpack.c.b16 %v945, %v942
    %v1261 = vpack.c.b16 %v946, %v943
    %v1262 = vpack.c.b16 %v950, %v947
    %v1263 = vpack.c.b16 %v951, %v948
    %v1264 = vpack.c.b16 %v952, %v949
    %v1265 = vpack.c.b16 %v956, %v953
    %v1266 = vpack.c.b16 %v957, %v954
    %v1267 = vpack.c.b16 %v958, %v955
    %v1268 = vpack.c.b16 %v962, %v959
    %v1269 = vpack.c.b16 %v963, %v960
    %v1270 = vpack.c.b16 %v964, %v961
    %v1271 = vpack.c.b16 %v968, %v965
    %v1272 = vpack.c.b16 %v969, %v966
    %v1273 = vpack.c.b16 %v970, %v967
    %v1274 = vpack.c.b16 %v974, %v971
    %v1275 = vpack.c.b16 %v975, %v972
    %v1276 = vpack.c.b16 %v976, %v973
    %v1277 = vpack.c.b16 %v980, %v977
    %v1278 = vpack.c.b16 %v981, %v978
    %v1279 = vpack.c.b16 %v982, %v979
    %v1280 = vpack.c.b16 %v986, %v983
    %v1281 = vpack.c.b16 %v987, %v984
    %v1282 = vpack.c.b16 %v988, %v985
    %v1283 = vpack.c.b16 %v992, %v989
    %v1284 = vpack.c.b16 %v993, %v990
    %v1285 = vpack.c.b16 %v994, %v991
    %v1286 = vpack.c.b16 %v998, %v995
    %v1287 = vpack.c.b16 %v999, %v996
    %v1288 = vpack.c.b16 %v1000, %v997
    %v1289 = vpack.c.b16 %v1004, %v1001
    %v1290 = vpack.c.b16 %v1005, %v1002
    %v1291 = vpack.c.b16 %v1006, %v1003
    %v1292 = vpack.c.b16 %v1010, %v1007
    %v1293 = vpack.c.b16 %v1011, %v1008
    %v1294 = vpack.c.b16 %v1012, %v1009
    %v1295 = vpack.c.b16 %v1016, %v1013
    %v1296 = vpack.c.b16 %v1017, %v1014
    %v1297 = vpack.c.b16 %v1018, %v1015
    %v1298 = vpack.c.b16 %v1022, %v1019
    %v1299 = vpack.c.b16 %v1023, %v1020
    %v1300 = vpack.c.b16 %v1024, %v1021
    %v1301 = vpack.c.b16 %v1028, %v1025
    %v1302 = vpack.c.b16 %v1029, %v1026
    %v1303 = vpack.c.b16 %v1030, %v1027
    %v1304 = vpack.c.b16 %v1034, %v1031
    %v1305 = vpack.c.b16 %v1035, %v1032
    %v1306 = vpack.c.b16 %v1036, %v1033
    %v1307 = vpack.c.b16 %v1040, %v1037
    %v1308 = vpack.c.b16 %v1041, %v1038
    %v1309 = vpack.c.b16 %v1042, %v1039
    %v1310 = vpack.c.b16 %v1046, %v1043
    %v1311 = vpack.c.b16 %v1047, %v1044
    %v1312 = vpack.c.b16 %v1048, %v1045
    %v1313 = vpack.c.b16 %v1052, %v1049
    %v1314 = vpack.c.b16 %v1053, %v1050
    %v1315 = vpack.c.b16 %v1054, %v1051
    %v1316 = vpack.c.b16 %v1058, %v1055
    %v1317 = vpack.c.b16 %v1059, %v1056
    %v1318 = vpack.c.b16 %v1060, %v1057
    %v1319 = vpack.c.b16 %v1064, %v1061
    %v1320 = vpack.c.b16 %v1065, %v1062
    %v1321 = vpack.c.b16 %v1066, %v1063
    %v1322 = vpack.c.b16 %v1070, %v1067
    %v1323 = vpack.c.b16 %v1071, %v1068
    %v1324 = vpack.c.b16 %v1072, %v1069
    %v1325 = vpack.c.b16 %v1076, %v1073
    %v1326 = vpack.c.b16 %v1077, %v1074
    %v1327 = vpack.c.b16 %v1078, %v1075
    %v1328 = vpack.c.b16 %v1082, %v1079
    %v1329 = vpack.c.b16 %v1083, %v1080
    %v1330 = vpack.c.b16 %v1084, %v1081
    %v1331 = vpack.c.b16 %v1088, %v1085
    %v1332 = vpack.c.b16 %v1089, %v1086
    %v1333 = vpack.c.b16 %v1090, %v1087
    %v1334 = vpack.c.b16 %v1094, %v1091
    %v1335 = vpack.c.b16 %v1095, %v1092
    %v1336 = vpack.c.b16 %v1096, %v1093
    %v1337 = vpack.c.b16 %v1100, %v1097
    %v1338 = vpack.c.b16 %v1101, %v1098
    %v1339 = vpack.c.b16 %v1102, %v1099
    %v1340 = vpack.c.b16 %v1106, %v1103
    %v1341 = vpack.c.b16 %v1107, %v1104
    %v1342 = vpack.c.b16 %v1108, %v1105
    %v1343 = vpack.c.b16 %v1112, %v1109
    %v1344 = vpack.c.b16 %v1113, %v1110
    %v1345 = vpack.c.b16 %v1114, %v1111
    %v1346 = vpack.c.b16 %v1118, %v1115
    %v1347 = vpack.c.b16 %v1119, %v1116
    %v1348 = vpack.c.b16 %v1120, %v1117
    %v1349 = vpack.c.b16 %v1124, %v1121
    %v1350 = vpack.c.b16 %v1125, %v1122
    %v1351 = vpack.c.b16 %v1126, %v1123
    %v1352 = vpack.c.b16 %v1130, %v1127
    %v1353 = vpack.c.b16 %v1131, %v1128
    %v1354 = vpack.c.b16 %v1132, %v1129
    %v1355 = vpack.c.b16 %v1136, %v1133
    %v1356 = vpack.c.b16 %v1137, %v1134
    %v1357 = vpack.c.b16 %v1138, %v1135
    %v1358 = vpack.c.b16 %v1142, %v1139
    %v1359 = vpack.c.b16 %v1143, %v1140
    %v1360 = vpack.c.b16 %v1144, %v1141
    %v1361 = vpack.c.b16 %v1148, %v1145
    %v1362 = vpack.c.b16 %v1149, %v1146
    %v1363 = vpack.c.b16 %v1150, %v1147
    %v1364 = vpack.c.b16 %v1154, %v1151
    %v1365 = vpack.c.b16 %v1155, %v1152
    %v1366 = vpack.c.b16 %v1156, %v1153
    %v1367 = vpack.c.b16 %v1160, %v1157
    %v1368 = vpack.c.b16 %v1161, %v1158
    %v1369 = vpack.c.b16 %v1162, %v1159
    %v1370 = vpack.c.b16 %v1166, %v1163
    %v1371 = vpack.c.b16 %v1167, %v1164
    %v1372 = vpack.c.b16 %v1168, %v1165
    %v1373 = vpack.c.b16 %v1172, %v1169
    %v1374 = vpack.c.b16 %v1173, %v1170
    %v1375 = vpack.c.b16 %v1174, %v1171
    %v1376 = vpack.c.b16 %v1178, %v1175
    %v1377 = vpack.c.b16 %v1179, %v1176
    %v1378 = vpack.c.b16 %v1180, %v1177
    %v1379 = vpack.c.b16 %v1184, %v1181
    %v1380 = vpack.c.b16 %v1185, %v1182
    %v1381 = vpack.c.b16 %v1186, %v1183
    %v1382 = vpack.c.b16 %v1190, %v1187
    %v1383 = vpack.c.b16 %v1191, %v1188
    %v1384 = vpack.c.b16 %v1192, %v1189
    %v1385 = vpack.c.b16 %v1196, %v1193
    %v1386 = vpack.c.b16 %v1197, %v1194
    %v1387 = vpack.c.b16 %v1198, %v1195
    %v1388 = vpack.c.b16 %v1202, %v1199
    %v1389 = vpack.c.b16 %v1203, %v1200
    %v1390 = vpack.c.b16 %v1204, %v1201
    %v1391 = vpack.c.b16 %v1208, %v1205
    %v1392 = vpack.c.b16 %v1209, %v1206
    %v1393 = vpack.c.b16 %v1210, %v1207
    %v1394 = vpack.c.b16 %v1214, %v1211
    %v1395 = vpack.c.b16 %v1215, %v1212
    %v1396 = vpack.c.b16 %v1216, %v1213
    %v1397 = vpack.c.b16 %v1220, %v1217
    %v1398 = vpack.c.b16 %v1221, %v1218
    %v1399 = vpack.c.b16 %v1222, %v1219
    %v1400 = vpack.c.b16 %v1226, %v1223
    %v1401 = vpack.c.b16 %v1227, %v1224
    %v1402 = vpack.c.b16 %v1228, %v1225
    %v1403 = vpack.c.b16 %v1232, %v1229
    %v1404 = vpack.c.b16 %v1233, %v1230
    %v1405 = vpack.c.b16 %v1234, %v1231
    %v1406 = vpack.c.b16 %v1238, %v1235
    %v1407 = vpack.c.b16 %v1239, %v1236
    %v1408 = vpack.c.b16 %v1240, %v1237
    %1577 = vmatprep.subr.bf16.mxu0 %v1242
    %1578 = vmatpush1.bf16.msra.mxu0 %v1241
    %1579 = vmatprep.subr.bf16.mxu0 %v1245
    %1580 = vmatpush1.bf16.msra.mxu0 %v1244
    %1581 = vmatprep.subr.bf16.mxu0 %v1248
    %1582 = vmatpush1.bf16.msra.mxu0 %v1247
    %1583 = vmatprep.subr.bf16.mxu0 %v1251
    %1584 = vmatpush1.bf16.msra.mxu0 %v1250
    %1585 = vmatprep.subr.bf16.mxu0 %v1254
    %1586 = vmatpush1.bf16.msra.mxu0 %v1253
    %1587 = vmatprep.subr.bf16.mxu0 %v1257
    %1588 = vmatpush1.bf16.msra.mxu0 %v1256
    %1589 = vmatprep.subr.bf16.mxu0 %v1260
    %1590 = vmatpush1.bf16.msra.mxu0 %v1259
    %1591 = vmatprep.subr.bf16.mxu0 %v1263
    %1592 = vmatpush1.bf16.msra.mxu0 %v1262
    %1593 = vmatprep.subr.bf16.mxu0 %v1266
    %1594 = vmatpush1.bf16.msra.mxu0 %v1265
    %1595 = vmatprep.subr.bf16.mxu0 %v1269
    %1596 = vmatpush1.bf16.msra.mxu0 %v1268
    %1597 = vmatprep.subr.bf16.mxu0 %v1272
    %1598 = vmatpush1.bf16.msra.mxu0 %v1271
    %1599 = vmatprep.subr.bf16.mxu0 %v1275
    %1600 = vmatpush1.bf16.msra.mxu0 %v1274
    %1601 = vmatprep.subr.bf16.mxu0 %v1278
    %1602 = vmatpush1.bf16.msra.mxu0 %v1277
    %1603 = vmatprep.subr.bf16.mxu0 %v1281
    %1604 = vmatpush1.bf16.msra.mxu0 %v1280
    %1605 = vmatprep.subr.bf16.mxu0 %v1284
    %1606 = vmatpush1.bf16.msra.mxu0 %v1283
    %1607 = vmatprep.subr.bf16.mxu0 %v1287
    %1608 = vmatpush1.bf16.msra.mxu0 %v1286
    %1609 = vmatprep.mubr.bf16.mxu0 %v434
    %1610 = vmatmul.mubr.bf16.gmra.mrb[0].mxu0 %v433
    %v1611 = vpop.f32.mrb[0].mxu0
    %v1612 = vadd.f32 %v669, %v1611
    %v1613 = vpop.f32.mrb[0].mxu0
    %v1614 = vadd.f32 %v673, %v1613
    %v1615 = vpop.f32.mrb[0].mxu0
    %v1616 = vpop.f32.mrb[0].mxu0
    %1617 = vdwg.mxu0
    %1618 = vmatprep.subr.bf16.mxu0 %v1290
    %1619 = vmatpush1.bf16.msra.mxu0 %v1289
    %1620 = vmatprep.subr.bf16.mxu0 %v1293
    %1621 = vmatpush1.bf16.msra.mxu0 %v1292
    %1622 = vmatprep.subr.bf16.mxu0 %v1296
    %1623 = vmatpush1.bf16.msra.mxu0 %v1295
    %1624 = vmatprep.subr.bf16.mxu0 %v1299
    %1625 = vmatpush1.bf16.msra.mxu0 %v1298
    %1626 = vmatprep.subr.bf16.mxu0 %v1302
    %1627 = vmatpush1.bf16.msra.mxu0 %v1301
    %1628 = vmatprep.subr.bf16.mxu0 %v1305
    %1629 = vmatpush1.bf16.msra.mxu0 %v1304
    %1630 = vmatprep.subr.bf16.mxu0 %v1308
    %1631 = vmatpush1.bf16.msra.mxu0 %v1307
    %1632 = vmatprep.subr.bf16.mxu0 %v1311
    %1633 = vmatpush1.bf16.msra.mxu0 %v1310
    %1634 = vmatprep.subr.bf16.mxu0 %v1314
    %1635 = vmatpush1.bf16.msra.mxu0 %v1313
    %1636 = vmatprep.subr.bf16.mxu0 %v1317
    %1637 = vmatpush1.bf16.msra.mxu0 %v1316
    %1638 = vmatprep.subr.bf16.mxu0 %v1320
    %1639 = vmatpush1.bf16.msra.mxu0 %v1319
    %1640 = vmatprep.subr.bf16.mxu0 %v1323
    %1641 = vmatpush1.bf16.msra.mxu0 %v1322
    %1642 = vmatprep.subr.bf16.mxu0 %v1326
    %1643 = vmatpush1.bf16.msra.mxu0 %v1325
    %1644 = vmatprep.subr.bf16.mxu0 %v1329
    %1645 = vmatpush1.bf16.msra.mxu0 %v1328
    %1646 = vmatprep.subr.bf16.mxu0 %v1332
    %1647 = vmatpush1.bf16.msra.mxu0 %v1331
    %1648 = vmatprep.subr.bf16.mxu0 %v1335
    %1649 = vmatpush1.bf16.msra.mxu0 %v1334
    %1650 = vmatprep.mubr.bf16.mxu0 %v436
    %1651 = vmatmul.mubr.bf16.gmra.mrb[0].mxu0 %v435
    %v1652 = vpop.f32.mrb[0].mxu0
    %v1653 = vadd.f32 %v1612, %v1652
    %v1654 = vpop.f32.mrb[0].mxu0
    %v1655 = vadd.f32 %v1614, %v1654
    %v1656 = vpop.f32.mrb[0].mxu0
    %v1657 = vpop.f32.mrb[0].mxu0
    %1658 = vdwg.mxu0
    %1659 = vmatprep.subr.bf16.mxu0 %v1338
    %1660 = vmatpush1.bf16.msra.mxu0 %v1337
    %1661 = vmatprep.subr.bf16.mxu0 %v1341
    %1662 = vmatpush1.bf16.msra.mxu0 %v1340
    %1663 = vmatprep.subr.bf16.mxu0 %v1344
    %1664 = vmatpush1.bf16.msra.mxu0 %v1343
    %1665 = vmatprep.subr.bf16.mxu0 %v1347
    %1666 = vmatpush1.bf16.msra.mxu0 %v1346
    %1667 = vmatprep.subr.bf16.mxu0 %v1350
    %1668 = vmatpush1.bf16.msra.mxu0 %v1349
    %1669 = vmatprep.subr.bf16.mxu0 %v1353
    %1670 = vmatpush1.bf16.msra.mxu0 %v1352
    %1671 = vmatprep.subr.bf16.mxu0 %v1356
    %1672 = vmatpush1.bf16.msra.mxu0 %v1355
    %1673 = vmatprep.subr.bf16.mxu0 %v1359
    %1674 = vmatpush1.bf16.msra.mxu0 %v1358
    %1675 = vmatprep.subr.bf16.mxu0 %v1362
    %1676 = vmatpush1.bf16.msra.mxu0 %v1361
    %1677 = vmatprep.subr.bf16.mxu0 %v1365
    %1678 = vmatpush1.bf16.msra.mxu0 %v1364
    %1679 = vmatprep.subr.bf16.mxu0 %v1368
    %1680 = vmatpush1.bf16.msra.mxu0 %v1367
    %1681 = vmatprep.subr.bf16.mxu0 %v1371
    %1682 = vmatpush1.bf16.msra.mxu0 %v1370
    %1683 = vmatprep.subr.bf16.mxu0 %v1374
    %1684 = vmatpush1.bf16.msra.mxu0 %v1373
    %1685 = vmatprep.subr.bf16.mxu0 %v1377
    %1686 = vmatpush1.bf16.msra.mxu0 %v1376
    %1687 = vmatprep.subr.bf16.mxu0 %v1380
    %1688 = vmatpush1.bf16.msra.mxu0 %v1379
    %1689 = vmatprep.subr.bf16.mxu0 %v1383
    %1690 = vmatpush1.bf16.msra.mxu0 %v1382
    %1691 = vmatprep.mubr.bf16.mxu0 %v438
    %1692 = vmatmul.mubr.bf16.gmra.mrb[0].mxu0 %v437
    %v1693 = vpop.f32.mrb[0].mxu0
    %v1694 = vadd.f32 %v1653, %v1693
    %v1695 = vpop.f32.mrb[0].mxu0
    %v1696 = vadd.f32 %v1655, %v1695
    %v1697 = vpop.f32.mrb[0].mxu0
    %v1698 = vpop.f32.mrb[0].mxu0
    %1699 = vdwg.mxu0
    %1700 = vmatprep.subr.bf16.mxu0 %v1386
    %1701 = vmatpush1.bf16.msra.mxu0 %v1385
    %1702 = vmatprep.subr.bf16.mxu0 %v1389
    %1703 = vmatpush1.bf16.msra.mxu0 %v1388
    %1704 = vmatprep.subr.bf16.mxu0 %v1392
    %1705 = vmatpush1.bf16.msra.mxu0 %v1391
    %1706 = vmatprep.subr.bf16.mxu0 %v1395
    %1707 = vmatpush1.bf16.msra.mxu0 %v1394
    %1708 = vmatprep.subr.bf16.mxu0 %v1398
    %1709 = vmatpush1.bf16.msra.mxu0 %v1397
    %1710 = vmatprep.subr.bf16.mxu0 %v1401
    %1711 = vmatpush1.bf16.msra.mxu0 %v1400
    %1712 = vmatprep.subr.bf16.mxu0 %v1404
    %1713 = vmatpush1.bf16.msra.mxu0 %v1403
    %1714 = vmatprep.subr.bf16.mxu0 %v1407
    %1715 = vmatpush1.bf16.msra.mxu0 %v1406
    %1716 = vmatprep.subr.bf16.mxu0 0
    %1717 = vmatpush1.bf16.msra.mxu0 0
    %1718 = vmatprep.subr.bf16.mxu0 0
    %1719 = vmatpush1.bf16.msra.mxu0 0
    %1720 = vmatprep.subr.bf16.mxu0 0
    %1721 = vmatpush1.bf16.msra.mxu0 0
    %1722 = vmatprep.subr.bf16.mxu0 0
    %1723 = vmatpush1.bf16.msra.mxu0 0
    %1724 = vmatprep.subr.bf16.mxu0 0
    %1725 = vmatpush1.bf16.msra.mxu0 0
    %1726 = vmatprep.subr.bf16.mxu0 0
    %1727 = vmatpush1.bf16.msra.mxu0 0
    %1728 = vmatprep.subr.bf16.mxu0 0
    %1729 = vmatpush1.bf16.msra.mxu0 0
    %1730 = vmatprep.subr.bf16.mxu0 0
    %1731 = vmatpush1.bf16.msra.mxu0 0
    %1732 = vmatprep.mubr.bf16.mxu0 0
    %1733 = vmatmul.mubr.bf16.gmra.mrb[0].mxu0 %v439
    %v1734 = vpop.f32.mrb[0].mxu0
    %v1735 = vadd.f32 %v1694, %v1734
    %v1736 = vpop.f32.mrb[0].mxu0
    %v1737 = vadd.f32 %v1696, %v1736
    %v1738 = vpop.f32.mrb[0].mxu0
    %v1739 = vpop.f32.mrb[0].mxu0
    %1740 = vdwg.mxu0
    %1741 = vmatprep.subr.bf16.mxu0 0
    %1742 = vmatpush1.bf16.msra.mxu0 %v1243
    %1743 = vmatprep.subr.bf16.mxu0 0
    %1744 = vmatpush1.bf16.msra.mxu0 %v1246
    %1745 = vmatprep.subr.bf16.mxu0 0
    %1746 = vmatpush1.bf16.msra.mxu0 %v1249
    %1747 = vmatprep.subr.bf16.mxu0 0
    %1748 = vmatpush1.bf16.msra.mxu0 %v1252
    %1749 = vmatprep.subr.bf16.mxu0 0
    %1750 = vmatpush1.bf16.msra.mxu0 %v1255
    %1751 = vmatprep.subr.bf16.mxu0 0
    %1752 = vmatpush1.bf16.msra.mxu0 %v1258
    %1753 = vmatprep.subr.bf16.mxu0 0
    %1754 = vmatpush1.bf16.msra.mxu0 %v1261
    %1755 = vmatprep.subr.bf16.mxu0 0
    %1756 = vmatpush1.bf16.msra.mxu0 %v1264
    %1757 = vmatprep.subr.bf16.mxu0 0
    %1758 = vmatpush1.bf16.msra.mxu0 %v1267
    %1759 = vmatprep.subr.bf16.mxu0 0
    %1760 = vmatpush1.bf16.msra.mxu0 %v1270
    %1761 = vmatprep.subr.bf16.mxu0 0
    %1762 = vmatpush1.bf16.msra.mxu0 %v1273
    %1763 = vmatprep.subr.bf16.mxu0 0
    %1764 = vmatpush1.bf16.msra.mxu0 %v1276
    %1765 = vmatprep.subr.bf16.mxu0 0
    %1766 = vmatpush1.bf16.msra.mxu0 %v1279
    %1767 = vmatprep.subr.bf16.mxu0 0
    %1768 = vmatpush1.bf16.msra.mxu0 %v1282
    %1769 = vmatprep.subr.bf16.mxu0 0
    %1770 = vmatpush1.bf16.msra.mxu0 %v1285
    %1771 = vmatprep.subr.bf16.mxu0 0
    %1772 = vmatpush1.bf16.msra.mxu0 %v1288
    %1773 = vmatprep.mubr.bf16.mxu0 %v434
    %1774 = vmatmul.mubr.bf16.gmra.mrb[0].mxu0 %v433
    %v1775 = vpop.f32.mrb[0].mxu0
    %v1776 = vadd.f32 %v677, %v1775
    %v1777 = vpop.f32.mrb[0].mxu0
    %v1778 = vpop.f32.mrb[0].mxu0
    %v1779 = vpop.f32.mrb[0].mxu0
    %1780 = vdwg.mxu0
    %1781 = vmatprep.subr.bf16.mxu0 0
    %1782 = vmatpush1.bf16.msra.mxu0 %v1291
    %1783 = vmatprep.subr.bf16.mxu0 0
    %1784 = vmatpush1.bf16.msra.mxu0 %v1294
    %1785 = vmatprep.subr.bf16.mxu0 0
    %1786 = vmatpush1.bf16.msra.mxu0 %v1297
    %1787 = vmatprep.subr.bf16.mxu0 0
    %1788 = vmatpush1.bf16.msra.mxu0 %v1300
    %1789 = vmatprep.subr.bf16.mxu0 0
    %1790 = vmatpush1.bf16.msra.mxu0 %v1303
    %1791 = vmatprep.subr.bf16.mxu0 0
    %1792 = vmatpush1.bf16.msra.mxu0 %v1306
    %1793 = vmatprep.subr.bf16.mxu0 0
    %1794 = vmatpush1.bf16.msra.mxu0 %v1309
    %1795 = vmatprep.subr.bf16.mxu0 0
    %1796 = vmatpush1.bf16.msra.mxu0 %v1312
    %1797 = vmatprep.subr.bf16.mxu0 0
    %1798 = vmatpush1.bf16.msra.mxu0 %v1315
    %1799 = vmatprep.subr.bf16.mxu0 0
    %1800 = vmatpush1.bf16.msra.mxu0 %v1318
    %1801 = vmatprep.subr.bf16.mxu0 0
    %1802 = vmatpush1.bf16.msra.mxu0 %v1321
    %1803 = vmatprep.subr.bf16.mxu0 0
    %1804 = vmatpush1.bf16.msra.mxu0 %v1324
    %1805 = vmatprep.subr.bf16.mxu0 0
    %1806 = vmatpush1.bf16.msra.mxu0 %v1327
    %1807 = vmatprep.subr.bf16.mxu0 0
    %1808 = vmatpush1.bf16.msra.mxu0 %v1330
    %1809 = vmatprep.subr.bf16.mxu0 0
    %1810 = vmatpush1.bf16.msra.mxu0 %v1333
    %1811 = vmatprep.subr.bf16.mxu0 0
    %1812 = vmatpush1.bf16.msra.mxu0 %v1336
    %1813 = vmatprep.mubr.bf16.mxu0 %v436
    %1814 = vmatmul.mubr.bf16.gmra.mrb[0].mxu0 %v435
    %v1815 = vpop.f32.mrb[0].mxu0
    %v1816 = vadd.f32 %v1776, %v1815
    %v1817 = vpop.f32.mrb[0].mxu0
    %v1818 = vpop.f32.mrb[0].mxu0
    %v1819 = vpop.f32.mrb[0].mxu0
    %1820 = vdwg.mxu0
    %1821 = vmatprep.subr.bf16.mxu0 0
    %1822 = vmatpush1.bf16.msra.mxu0 %v1339
    %1823 = vmatprep.subr.bf16.mxu0 0
    %1824 = vmatpush1.bf16.msra.mxu0 %v1342
    %1825 = vmatprep.subr.bf16.mxu0 0
    %1826 = vmatpush1.bf16.msra.mxu0 %v1345
    %1827 = vmatprep.subr.bf16.mxu0 0
    %1828 = vmatpush1.bf16.msra.mxu0 %v1348
    %1829 = vmatprep.subr.bf16.mxu0 0
    %1830 = vmatpush1.bf16.msra.mxu0 %v1351
    %1831 = vmatprep.subr.bf16.mxu0 0
    %1832 = vmatpush1.bf16.msra.mxu0 %v1354
    %1833 = vmatprep.subr.bf16.mxu0 0
    %1834 = vmatpush1.bf16.msra.mxu0 %v1357
    %1835 = vmatprep.subr.bf16.mxu0 0
    %1836 = vmatpush1.bf16.msra.mxu0 %v1360
    %1837 = vmatprep.subr.bf16.mxu0 0
    %1838 = vmatpush1.bf16.msra.mxu0 %v1363
    %1839 = vmatprep.subr.bf16.mxu0 0
    %1840 = vmatpush1.bf16.msra.mxu0 %v1366
    %1841 = vmatprep.subr.bf16.mxu0 0
    %1842 = vmatpush1.bf16.msra.mxu0 %v1369
    %1843 = vmatprep.subr.bf16.mxu0 0
    %1844 = vmatpush1.bf16.msra.mxu0 %v1372
    %1845 = vmatprep.subr.bf16.mxu0 0
    %1846 = vmatpush1.bf16.msra.mxu0 %v1375
    %1847 = vmatprep.subr.bf16.mxu0 0
    %1848 = vmatpush1.bf16.msra.mxu0 %v1378
    %1849 = vmatprep.subr.bf16.mxu0 0
    %1850 = vmatpush1.bf16.msra.mxu0 %v1381
    %1851 = vmatprep.subr.bf16.mxu0 0
    %1852 = vmatpush1.bf16.msra.mxu0 %v1384
    %1853 = vmatprep.mubr.bf16.mxu0 %v438
    %1854 = vmatmul.mubr.bf16.gmra.mrb[0].mxu0 %v437
    %v1855 = vpop.f32.mrb[0].mxu0
    %v1856 = vadd.f32 %v1816, %v1855
    %v1857 = vpop.f32.mrb[0].mxu0
    %v1858 = vpop.f32.mrb[0].mxu0
    %v1859 = vpop.f32.mrb[0].mxu0
    %1860 = vdwg.mxu0
    %1861 = vmatprep.subr.bf16.mxu0 0
    %1862 = vmatpush1.bf16.msra.mxu0 %v1387
    %1863 = vmatprep.subr.bf16.mxu0 0
    %1864 = vmatpush1.bf16.msra.mxu0 %v1390
    %1865 = vmatprep.subr.bf16.mxu0 0
    %1866 = vmatpush1.bf16.msra.mxu0 %v1393
    %1867 = vmatprep.subr.bf16.mxu0 0
    %1868 = vmatpush1.bf16.msra.mxu0 %v1396
    %1869 = vmatprep.subr.bf16.mxu0 0
    %1870 = vmatpush1.bf16.msra.mxu0 %v1399
    %1871 = vmatprep.subr.bf16.mxu0 0
    %1872 = vmatpush1.bf16.msra.mxu0 %v1402
    %1873 = vmatprep.subr.bf16.mxu0 0
    %1874 = vmatpush1.bf16.msra.mxu0 %v1405
    %1875 = vmatprep.subr.bf16.mxu0 0
    %1876 = vmatpush1.bf16.msra.mxu0 %v1408
    %1877 = vmatprep.subr.bf16.mxu0 0
    %1878 = vmatpush1.bf16.msra.mxu0 0
    %1879 = vmatprep.subr.bf16.mxu0 0
    %1880 = vmatpush1.bf16.msra.mxu0 0
    %1881 = vmatprep.subr.bf16.mxu0 0
    %1882 = vmatpush1.bf16.msra.mxu0 0
    %1883 = vmatprep.subr.bf16.mxu0 0
    %1884 = vmatpush1.bf16.msra.mxu0 0
    %1885 = vmatprep.subr.bf16.mxu0 0
    %1886 = vmatpush1.bf16.msra.mxu0 0
    %1887 = vmatprep.subr.bf16.mxu0 0
    %1888 = vmatpush1.bf16.msra.mxu0 0
    %1889 = vmatprep.subr.bf16.mxu0 0
    %1890 = vmatpush1.bf16.msra.mxu0 0
    %1891 = vmatprep.subr.bf16.mxu0 0
    %1892 = vmatpush1.bf16.msra.mxu0 0
    %1893 = vmatprep.mubr.bf16.mxu0 0
    %1894 = vmatmul.mubr.bf16.gmra.mrb[0].mxu0 %v439
    %v1895 = vpop.f32.mrb[0].mxu0
    %v1896 = vadd.f32 %v1856, %v1895
    %v1897 = vpop.f32.mrb[0].mxu0
    %v1898 = vpop.f32.mrb[0].mxu0
    %v1899 = vpop.f32.mrb[0].mxu0
    %1900 = vdwg.mxu0
    %v1901 = vmax.f32 %v1735, 0.0
    %v1902 = vmax.f32 %v1737, 0.0
    %v1903 = vmax.f32 %v1896, 0.0
    %v1904 = vpack.c.bf16 %v1901, %v1901
    %v1905 = vpack.c.bf16 %v1902, %v1902
    %v1906 = vpack.c.bf16 %v1903, %v1903
    %v1907 = vld [vmem:[#allocation7] sm:$0xff]
    %v1908 = vld [vmem:[#allocation7 + $0x8] sm:$0xff]
    %v1909 = vld [vmem:[#allocation7 + $0x10] sm:$0xff]
    %v1910 = vld [vmem:[#allocation7 + $0x18] sm:$0xff]
    %v1911 = vld [vmem:[#allocation7 + $0x20] sm:$0xff]
    %v1912 = vld [vmem:[#allocation7 + $0x28] sm:$0xff]
    %v1913 = vld [vmem:[#allocation7 + $0x30] sm:$0xff]
    %v1914 = vld [vmem:[#allocation7 + $0x38] sm:$0xff]
    %v1915 = vld [vmem:[#allocation7 + $0x40] sm:$0xff]
    %v1916 = vld [vmem:[#allocation7 + $0x48] sm:$0xff]
    %v1917 = vld [vmem:[#allocation7 + $0x50] sm:$0xff]
    %v1918 = vld [vmem:[#allocation7 + $0x58] sm:$0xff]
    %v1919 = vld [vmem:[#allocation7 + $0x60] sm:$0xff]
    %v1920 = vld [vmem:[#allocation7 + $0x68] sm:$0xff]
    %v1921 = vld [vmem:[#allocation7 + $0x70] sm:$0xff]
    %v1922 = vld [vmem:[#allocation7 + $0x78] sm:$0xff]
    %v1923 = vld [vmem:[#allocation7 + $0x80] sm:$0xff]
    %v1924 = vld [vmem:[#allocation7 + $0x88] sm:$0xff]
    %v1925 = vld [vmem:[#allocation7 + $0x90] sm:$0xff]
    %v1926 = vld [vmem:[#allocation7 + $0x98] sm:$0xff]
    %v1927 = vld [vmem:[#allocation7 + $0xa0] sm:$0xff]
    %v1928 = vld [vmem:[#allocation7 + $0xa8] sm:$0xff]
    %v1929 = vld [vmem:[#allocation7 + $0xb0] sm:$0xff]
    %v1930 = vld [vmem:[#allocation7 + $0xb8] sm:$0xff]
    %v1931 = vld [vmem:[#allocation7 + $0xc0] sm:$0xff]
    %v1932 = vld [vmem:[#allocation7 + $0xc8] sm:$0xff]
    %v1933 = vld [vmem:[#allocation7 + $0xd0] sm:$0xff]
    %v1934 = vld [vmem:[#allocation7 + $0xd8] sm:$0xff]
    %v1935 = vld [vmem:[#allocation7 + $0xe0] sm:$0xff]
    %v1936 = vld [vmem:[#allocation7 + $0xe8] sm:$0xff]
    %v1937 = vld [vmem:[#allocation7 + $0xf0] sm:$0xff]
    %v1938 = vld [vmem:[#allocation7 + $0xf8] sm:$0xff]
    %v1939 = vld [vmem:[#allocation7 + $0x100] sm:$0xff]
    %v1940 = vld [vmem:[#allocation7 + $0x108] sm:$0xff]
    %v1941 = vld [vmem:[#allocation7 + $0x110] sm:$0xff]
    %v1942 = vld [vmem:[#allocation7 + $0x118] sm:$0xff]
    %v1943 = vld [vmem:[#allocation7 + $0x120] sm:$0xff]
    %v1944 = vld [vmem:[#allocation7 + $0x128] sm:$0xff]
    %v1945 = vld [vmem:[#allocation7 + $0x130] sm:$0xff]
    %v1946 = vld [vmem:[#allocation7 + $0x138] sm:$0xff]
    %v1947 = vld [vmem:[#allocation7 + $0x140] sm:$0xff]
    %v1948 = vld [vmem:[#allocation7 + $0x148] sm:$0xff]
    %v1949 = vld [vmem:[#allocation7 + $0x150] sm:$0xff]
    %v1950 = vld [vmem:[#allocation7 + $0x158] sm:$0xff]
    %v1951 = vld [vmem:[#allocation7 + $0x160] sm:$0xff]
    %v1952 = vld [vmem:[#allocation7 + $0x168] sm:$0xff]
    %v1953 = vld [vmem:[#allocation7 + $0x170] sm:$0xff]
    %v1954 = vld [vmem:[#allocation7 + $0x178] sm:$0xff]
    %v1955 = vld [vmem:[#allocation7 + $0x180] sm:$0xff]
    %v1956 = vld [vmem:[#allocation7 + $0x188] sm:$0xff]
    %v1957 = vld [vmem:[#allocation7 + $0x190] sm:$0xff]
    %v1958 = vld [vmem:[#allocation7 + $0x198] sm:$0xff]
    %v1959 = vld [vmem:[#allocation7 + $0x1a0] sm:$0xff]
    %v1960 = vld [vmem:[#allocation7 + $0x1a8] sm:$0xff]
    %v1961 = vld [vmem:[#allocation7 + $0x1b0] sm:$0xff]
    %v1962 = vld [vmem:[#allocation7 + $0x1b8] sm:$0xff]
    %v1963 = vld [vmem:[#allocation7 + $0x1c0] sm:$0xff]
    %v1964 = vld [vmem:[#allocation7 + $0x1c8] sm:$0xff]
    %v1965 = vld [vmem:[#allocation7 + $0x1d0] sm:$0xff]
    %v1966 = vld [vmem:[#allocation7 + $0x1d8] sm:$0xff]
    %v1967 = vld [vmem:[#allocation7 + $0x1e0] sm:$0xff]
    %v1968 = vld [vmem:[#allocation7 + $0x1e8] sm:$0xff]
    %v1969 = vld [vmem:[#allocation7 + $0x1f0] sm:$0xff]
    %v1970 = vld [vmem:[#allocation7 + $0x1f8] sm:$0xff]
    %v1971 = vld [vmem:[#allocation7 + $0x200] sm:$0xff]
    %v1972 = vld [vmem:[#allocation7 + $0x208] sm:$0xff]
    %v1973 = vld [vmem:[#allocation7 + $0x210] sm:$0xff]
    %v1974 = vld [vmem:[#allocation7 + $0x218] sm:$0xff]
    %v1975 = vld [vmem:[#allocation7 + $0x220] sm:$0xff]
    %v1976 = vld [vmem:[#allocation7 + $0x228] sm:$0xff]
    %v1977 = vld [vmem:[#allocation7 + $0x230] sm:$0xff]
    %v1978 = vld [vmem:[#allocation7 + $0x238] sm:$0xff]
    %v1979 = vld [vmem:[#allocation7 + $0x240] sm:$0xff]
    %v1980 = vld [vmem:[#allocation7 + $0x248] sm:$0xff]
    %v1981 = vld [vmem:[#allocation7 + $0x250] sm:$0xff]
    %v1982 = vld [vmem:[#allocation7 + $0x258] sm:$0xff]
    %v1983 = vld [vmem:[#allocation7 + $0x260] sm:$0xff]
    %v1984 = vld [vmem:[#allocation7 + $0x268] sm:$0xff]
    %v1985 = vld [vmem:[#allocation7 + $0x270] sm:$0xff]
    %v1986 = vld [vmem:[#allocation7 + $0x278] sm:$0xff]
    %v1987 = vld [vmem:[#allocation7 + $0x280] sm:$0xff]
    %v1988 = vld [vmem:[#allocation7 + $0x288] sm:$0xff]
    %v1989 = vld [vmem:[#allocation7 + $0x290] sm:$0xff]
    %v1990 = vld [vmem:[#allocation7 + $0x298] sm:$0xff]
    %v1991 = vld [vmem:[#allocation7 + $0x2a0] sm:$0xff]
    %v1992 = vld [vmem:[#allocation7 + $0x2a8] sm:$0xff]
    %v1993 = vld [vmem:[#allocation7 + $0x2b0] sm:$0xff]
    %v1994 = vld [vmem:[#allocation7 + $0x2b8] sm:$0xff]
    %v1995 = vld [vmem:[#allocation7 + $0x2c0] sm:$0xff]
    %v1996 = vld [vmem:[#allocation7 + $0x2c8] sm:$0xff]
    %v1997 = vld [vmem:[#allocation7 + $0x2d0] sm:$0xff]
    %v1998 = vld [vmem:[#allocation7 + $0x2d8] sm:$0xff]
    %v1999 = vld [vmem:[#allocation7 + $0x2e0] sm:$0xff]
    %v2000 = vld [vmem:[#allocation7 + $0x2e8] sm:$0xff]
    %v2001 = vld [vmem:[#allocation7 + $0x2f0] sm:$0xff]
    %v2002 = vld [vmem:[#allocation7 + $0x2f8] sm:$0xff]
    %v2003 = vld [vmem:[#allocation12 + $0xa] sm:$0xf]
    %v2005 = vlaneseq
    %v2006 = vshrl.u32 %v2005, 7
    %v2007 = vsub.s32 0, %v2006
    %v2008 = vrot.slane %v2003, %v2007
    %v2009 = vlaneseq
    %v2010 = vshrl.u32 %v2009, 7
    %v2011 = vsub.s32 1, %v2010
    %v2012 = vrot.slane %v2003, %v2011
    %v2013 = vlaneseq
    %v2014 = vshrl.u32 %v2013, 7
    %v2015 = vsub.s32 2, %v2014
    %v2016 = vrot.slane %v2003, %v2015
    %v2017 = vlaneseq
    %v2018 = vshrl.u32 %v2017, 7
    %v2019 = vsub.s32 3, %v2018
    %v2020 = vrot.slane %v2003, %v2019
    %v2121 = vunpack.c.l.b16 %v1907
    %v2122 = vunpack.c.h.b16 %v1907
    %v2123 = vunpack.c.l.b16 %v1908
    %v2124 = vunpack.c.h.b16 %v1908
    %v2125 = vunpack.c.l.b16 %v1909
    %v2126 = vunpack.c.h.b16 %v1909
    %v2127 = vunpack.c.l.b16 %v1910
    %v2128 = vunpack.c.h.b16 %v1910
    %v2129 = vunpack.c.l.b16 %v1911
    %v2130 = vunpack.c.h.b16 %v1911
    %v2131 = vunpack.c.l.b16 %v1912
    %v2132 = vunpack.c.h.b16 %v1912
    %v2133 = vunpack.c.l.b16 %v1913
    %v2134 = vunpack.c.h.b16 %v1913
    %v2135 = vunpack.c.l.b16 %v1914
    %v2136 = vunpack.c.h.b16 %v1914
    %v2137 = vunpack.c.l.b16 %v1915
    %v2138 = vunpack.c.h.b16 %v1915
    %v2139 = vunpack.c.l.b16 %v1916
    %v2140 = vunpack.c.h.b16 %v1916
    %v2141 = vunpack.c.l.b16 %v1917
    %v2142 = vunpack.c.h.b16 %v1917
    %v2143 = vunpack.c.l.b16 %v1918
    %v2144 = vunpack.c.h.b16 %v1918
    %v2145 = vunpack.c.l.b16 %v1919
    %v2146 = vunpack.c.h.b16 %v1919
    %v2147 = vunpack.c.l.b16 %v1920
    %v2148 = vunpack.c.h.b16 %v1920
    %v2149 = vunpack.c.l.b16 %v1921
    %v2150 = vunpack.c.h.b16 %v1921
    %v2151 = vunpack.c.l.b16 %v1922
    %v2152 = vunpack.c.h.b16 %v1922
    %v2153 = vunpack.c.l.b16 %v1923
    %v2154 = vunpack.c.h.b16 %v1923
    %v2155 = vunpack.c.l.b16 %v1924
    %v2156 = vunpack.c.h.b16 %v1924
    %v2157 = vunpack.c.l.b16 %v1925
    %v2158 = vunpack.c.h.b16 %v1925
    %v2159 = vunpack.c.l.b16 %v1926
    %v2160 = vunpack.c.h.b16 %v1926
    %v2161 = vunpack.c.l.b16 %v1927
    %v2162 = vunpack.c.h.b16 %v1927
    %v2163 = vunpack.c.l.b16 %v1928
    %v2164 = vunpack.c.h.b16 %v1928
    %v2165 = vunpack.c.l.b16 %v1929
    %v2166 = vunpack.c.h.b16 %v1929
    %v2167 = vunpack.c.l.b16 %v1930
    %v2168 = vunpack.c.h.b16 %v1930
    %v2169 = vunpack.c.l.b16 %v1931
    %v2170 = vunpack.c.h.b16 %v1931
    %v2171 = vunpack.c.l.b16 %v1932
    %v2172 = vunpack.c.h.b16 %v1932
    %v2173 = vunpack.c.l.b16 %v1933
    %v2174 = vunpack.c.h.b16 %v1933
    %v2175 = vunpack.c.l.b16 %v1934
    %v2176 = vunpack.c.h.b16 %v1934
    %v2177 = vunpack.c.l.b16 %v1935
    %v2178 = vunpack.c.h.b16 %v1935
    %v2179 = vunpack.c.l.b16 %v1936
    %v2180 = vunpack.c.h.b16 %v1936
    %v2181 = vunpack.c.l.b16 %v1937
    %v2182 = vunpack.c.h.b16 %v1937
    %v2183 = vunpack.c.l.b16 %v1938
    %v2184 = vunpack.c.h.b16 %v1938
    %v2185 = vunpack.c.l.b16 %v1939
    %v2186 = vunpack.c.h.b16 %v1939
    %v2187 = vunpack.c.l.b16 %v1940
    %v2188 = vunpack.c.h.b16 %v1940
    %v2189 = vunpack.c.l.b16 %v1941
    %v2190 = vunpack.c.h.b16 %v1941
    %v2191 = vunpack.c.l.b16 %v1942
    %v2192 = vunpack.c.h.b16 %v1942
    %v2193 = vunpack.c.l.b16 %v1943
    %v2194 = vunpack.c.h.b16 %v1943
    %v2195 = vunpack.c.l.b16 %v1944
    %v2196 = vunpack.c.h.b16 %v1944
    %v2197 = vunpack.c.l.b16 %v1945
    %v2198 = vunpack.c.h.b16 %v1945
    %v2199 = vunpack.c.l.b16 %v1946
    %v2200 = vunpack.c.h.b16 %v1946
    %v2201 = vunpack.c.l.b16 %v1947
    %v2202 = vunpack.c.h.b16 %v1947
    %v2203 = vunpack.c.l.b16 %v1948
    %v2204 = vunpack.c.h.b16 %v1948
    %v2205 = vunpack.c.l.b16 %v1949
    %v2206 = vunpack.c.h.b16 %v1949
    %v2207 = vunpack.c.l.b16 %v1950
    %v2208 = vunpack.c.h.b16 %v1950
    %v2209 = vunpack.c.l.b16 %v1951
    %v2210 = vunpack.c.h.b16 %v1951
    %v2211 = vunpack.c.l.b16 %v1952
    %v2212 = vunpack.c.h.b16 %v1952
    %v2213 = vunpack.c.l.b16 %v1953
    %v2214 = vunpack.c.h.b16 %v1953
    %v2215 = vunpack.c.l.b16 %v1954
    %v2216 = vunpack.c.h.b16 %v1954
    %v2217 = vunpack.c.l.b16 %v1955
    %v2218 = vunpack.c.h.b16 %v1955
    %v2219 = vunpack.c.l.b16 %v1956
    %v2220 = vunpack.c.h.b16 %v1956
    %v2221 = vunpack.c.l.b16 %v1957
    %v2222 = vunpack.c.h.b16 %v1957
    %v2223 = vunpack.c.l.b16 %v1958
    %v2224 = vunpack.c.h.b16 %v1958
    %v2225 = vunpack.c.l.b16 %v1959
    %v2226 = vunpack.c.h.b16 %v1959
    %v2227 = vunpack.c.l.b16 %v1960
    %v2228 = vunpack.c.h.b16 %v1960
    %v2229 = vunpack.c.l.b16 %v1961
    %v2230 = vunpack.c.h.b16 %v1961
    %v2231 = vunpack.c.l.b16 %v1962
    %v2232 = vunpack.c.h.b16 %v1962
    %v2233 = vunpack.c.l.b16 %v1963
    %v2234 = vunpack.c.h.b16 %v1963
    %v2235 = vunpack.c.l.b16 %v1964
    %v2236 = vunpack.c.h.b16 %v1964
    %v2237 = vunpack.c.l.b16 %v1965
    %v2238 = vunpack.c.h.b16 %v1965
    %v2239 = vunpack.c.l.b16 %v1966
    %v2240 = vunpack.c.h.b16 %v1966
    %v2241 = vunpack.c.l.b16 %v1967
    %v2242 = vunpack.c.h.b16 %v1967
    %v2243 = vunpack.c.l.b16 %v1968
    %v2244 = vunpack.c.h.b16 %v1968
    %v2245 = vunpack.c.l.b16 %v1969
    %v2246 = vunpack.c.h.b16 %v1969
    %v2247 = vunpack.c.l.b16 %v1970
    %v2248 = vunpack.c.h.b16 %v1970
    %v2249 = vunpack.c.l.b16 %v1971
    %v2250 = vunpack.c.h.b16 %v1971
    %v2251 = vunpack.c.l.b16 %v1972
    %v2252 = vunpack.c.h.b16 %v1972
    %v2253 = vunpack.c.l.b16 %v1973
    %v2254 = vunpack.c.h.b16 %v1973
    %v2255 = vunpack.c.l.b16 %v1974
    %v2256 = vunpack.c.h.b16 %v1974
    %v2257 = vunpack.c.l.b16 %v1975
    %v2258 = vunpack.c.h.b16 %v1975
    %v2259 = vunpack.c.l.b16 %v1976
    %v2260 = vunpack.c.h.b16 %v1976
    %v2261 = vunpack.c.l.b16 %v1977
    %v2262 = vunpack.c.h.b16 %v1977
    %v2263 = vunpack.c.l.b16 %v1978
    %v2264 = vunpack.c.h.b16 %v1978
    %v2265 = vunpack.c.l.b16 %v1979
    %v2266 = vunpack.c.h.b16 %v1979
    %v2267 = vunpack.c.l.b16 %v1980
    %v2268 = vunpack.c.h.b16 %v1980
    %v2269 = vunpack.c.l.b16 %v1981
    %v2270 = vunpack.c.h.b16 %v1981
    %v2271 = vunpack.c.l.b16 %v1982
    %v2272 = vunpack.c.h.b16 %v1982
    %v2273 = vunpack.c.l.b16 %v1983
    %v2274 = vunpack.c.h.b16 %v1983
    %v2275 = vunpack.c.l.b16 %v1984
    %v2276 = vunpack.c.h.b16 %v1984
    %v2277 = vunpack.c.l.b16 %v1985
    %v2278 = vunpack.c.h.b16 %v1985
    %v2279 = vunpack.c.l.b16 %v1986
    %v2280 = vunpack.c.h.b16 %v1986
    %v2281 = vunpack.c.l.b16 %v1987
    %v2282 = vunpack.c.h.b16 %v1987
    %v2283 = vunpack.c.l.b16 %v1988
    %v2284 = vunpack.c.h.b16 %v1988
    %v2285 = vunpack.c.l.b16 %v1989
    %v2286 = vunpack.c.h.b16 %v1989
    %v2287 = vunpack.c.l.b16 %v1990
    %v2288 = vunpack.c.h.b16 %v1990
    %v2289 = vunpack.c.l.b16 %v1991
    %v2290 = vunpack.c.h.b16 %v1991
    %v2291 = vunpack.c.l.b16 %v1992
    %v2292 = vunpack.c.h.b16 %v1992
    %v2293 = vunpack.c.l.b16 %v1993
    %v2294 = vunpack.c.h.b16 %v1993
    %v2295 = vunpack.c.l.b16 %v1994
    %v2296 = vunpack.c.h.b16 %v1994
    %v2297 = vunpack.c.l.b16 %v1995
    %v2298 = vunpack.c.h.b16 %v1995
    %v2299 = vunpack.c.l.b16 %v1996
    %v2300 = vunpack.c.h.b16 %v1996
    %v2301 = vunpack.c.l.b16 %v1997
    %v2302 = vunpack.c.h.b16 %v1997
    %v2303 = vunpack.c.l.b16 %v1998
    %v2304 = vunpack.c.h.b16 %v1998
    %v2305 = vunpack.c.l.b16 %v1999
    %v2306 = vunpack.c.h.b16 %v1999
    %v2307 = vunpack.c.l.b16 %v2000
    %v2308 = vunpack.c.h.b16 %v2000
    %v2309 = vunpack.c.l.b16 %v2001
    %v2310 = vunpack.c.h.b16 %v2001
    %v2311 = vunpack.c.l.b16 %v2002
    %v2312 = vunpack.c.h.b16 %v2002
    %v2313 = vpack.c.b16 %v2125, %v2121
    %v2314 = vpack.c.b16 %v2126, %v2122
    %v2315 = vpack.c.b16 %v2127, %v2123
    %v2316 = vpack.c.b16 %v2128, %v2124
    %v2317 = vpack.c.b16 %v2133, %v2129
    %v2318 = vpack.c.b16 %v2134, %v2130
    %v2319 = vpack.c.b16 %v2135, %v2131
    %v2320 = vpack.c.b16 %v2136, %v2132
    %v2321 = vpack.c.b16 %v2141, %v2137
    %v2322 = vpack.c.b16 %v2142, %v2138
    %v2323 = vpack.c.b16 %v2143, %v2139
    %v2324 = vpack.c.b16 %v2144, %v2140
    %v2325 = vpack.c.b16 %v2149, %v2145
    %v2326 = vpack.c.b16 %v2150, %v2146
    %v2327 = vpack.c.b16 %v2151, %v2147
    %v2328 = vpack.c.b16 %v2152, %v2148
    %v2329 = vpack.c.b16 %v2157, %v2153
    %v2330 = vpack.c.b16 %v2158, %v2154
    %v2331 = vpack.c.b16 %v2159, %v2155
    %v2332 = vpack.c.b16 %v2160, %v2156
    %v2333 = vpack.c.b16 %v2165, %v2161
    %v2334 = vpack.c.b16 %v2166, %v2162
    %v2335 = vpack.c.b16 %v2167, %v2163
    %v2336 = vpack.c.b16 %v2168, %v2164
    %v2337 = vpack.c.b16 %v2173, %v2169
    %v2338 = vpack.c.b16 %v2174, %v2170
    %v2339 = vpack.c.b16 %v2175, %v2171
    %v2340 = vpack.c.b16 %v2176, %v2172
    %v2341 = vpack.c.b16 %v2181, %v2177
    %v2342 = vpack.c.b16 %v2182, %v2178
    %v2343 = vpack.c.b16 %v2183, %v2179
    %v2344 = vpack.c.b16 %v2184, %v2180
    %v2345 = vpack.c.b16 %v2189, %v2185
    %v2346 = vpack.c.b16 %v2190, %v2186
    %v2347 = vpack.c.b16 %v2191, %v2187
    %v2348 = vpack.c.b16 %v2192, %v2188
    %v2349 = vpack.c.b16 %v2197, %v2193
    %v2350 = vpack.c.b16 %v2198, %v2194
    %v2351 = vpack.c.b16 %v2199, %v2195
    %v2352 = vpack.c.b16 %v2200, %v2196
    %v2353 = vpack.c.b16 %v2205, %v2201
    %v2354 = vpack.c.b16 %v2206, %v2202
    %v2355 = vpack.c.b16 %v2207, %v2203
    %v2356 = vpack.c.b16 %v2208, %v2204
    %v2357 = vpack.c.b16 %v2213, %v2209
    %v2358 = vpack.c.b16 %v2214, %v2210
    %v2359 = vpack.c.b16 %v2215, %v2211
    %v2360 = vpack.c.b16 %v2216, %v2212
    %v2361 = vpack.c.b16 %v2221, %v2217
    %v2362 = vpack.c.b16 %v2222, %v2218
    %v2363 = vpack.c.b16 %v2223, %v2219
    %v2364 = vpack.c.b16 %v2224, %v2220
    %v2365 = vpack.c.b16 %v2229, %v2225
    %v2366 = vpack.c.b16 %v2230, %v2226
    %v2367 = vpack.c.b16 %v2231, %v2227
    %v2368 = vpack.c.b16 %v2232, %v2228
    %v2369 = vpack.c.b16 %v2237, %v2233
    %v2370 = vpack.c.b16 %v2238, %v2234
    %v2371 = vpack.c.b16 %v2239, %v2235
    %v2372 = vpack.c.b16 %v2240, %v2236
    %v2373 = vpack.c.b16 %v2245, %v2241
    %v2374 = vpack.c.b16 %v2246, %v2242
    %v2375 = vpack.c.b16 %v2247, %v2243
    %v2376 = vpack.c.b16 %v2248, %v2244
    %v2377 = vpack.c.b16 %v2253, %v2249
    %v2378 = vpack.c.b16 %v2254, %v2250
    %v2379 = vpack.c.b16 %v2255, %v2251
    %v2380 = vpack.c.b16 %v2256, %v2252
    %v2381 = vpack.c.b16 %v2261, %v2257
    %v2382 = vpack.c.b16 %v2262, %v2258
    %v2383 = vpack.c.b16 %v2263, %v2259
    %v2384 = vpack.c.b16 %v2264, %v2260
    %v2385 = vpack.c.b16 %v2269, %v2265
    %v2386 = vpack.c.b16 %v2270, %v2266
    %v2387 = vpack.c.b16 %v2271, %v2267
    %v2388 = vpack.c.b16 %v2272, %v2268
    %v2389 = vpack.c.b16 %v2277, %v2273
    %v2390 = vpack.c.b16 %v2278, %v2274
    %v2391 = vpack.c.b16 %v2279, %v2275
    %v2392 = vpack.c.b16 %v2280, %v2276
    %v2393 = vpack.c.b16 %v2285, %v2281
    %v2394 = vpack.c.b16 %v2286, %v2282
    %v2395 = vpack.c.b16 %v2287, %v2283
    %v2396 = vpack.c.b16 %v2288, %v2284
    %v2397 = vpack.c.b16 %v2293, %v2289
    %v2398 = vpack.c.b16 %v2294, %v2290
    %v2399 = vpack.c.b16 %v2295, %v2291
    %v2400 = vpack.c.b16 %v2296, %v2292
    %v2401 = vpack.c.b16 %v2301, %v2297
    %v2402 = vpack.c.b16 %v2302, %v2298
    %v2403 = vpack.c.b16 %v2303, %v2299
    %v2404 = vpack.c.b16 %v2304, %v2300
    %v2405 = vpack.c.b16 %v2309, %v2305
    %v2406 = vpack.c.b16 %v2310, %v2306
    %v2407 = vpack.c.b16 %v2311, %v2307
    %v2408 = vpack.c.b16 %v2312, %v2308
    %2505 = vmatprep.subr.bf16.mxu0 %v2314
    %2506 = vmatpush1.bf16.msra.mxu0 %v2313
    %2507 = vmatprep.subr.bf16.mxu0 %v2318
    %2508 = vmatpush1.bf16.msra.mxu0 %v2317
    %2509 = vmatprep.subr.bf16.mxu0 %v2322
    %2510 = vmatpush1.bf16.msra.mxu0 %v2321
    %2511 = vmatprep.subr.bf16.mxu0 %v2326
    %2512 = vmatpush1.bf16.msra.mxu0 %v2325
    %2513 = vmatprep.subr.bf16.mxu0 %v2330
    %2514 = vmatpush1.bf16.msra.mxu0 %v2329
    %2515 = vmatprep.subr.bf16.mxu0 %v2334
    %2516 = vmatpush1.bf16.msra.mxu0 %v2333
    %2517 = vmatprep.subr.bf16.mxu0 %v2338
    %2518 = vmatpush1.bf16.msra.mxu0 %v2337
    %2519 = vmatprep.subr.bf16.mxu0 %v2342
    %2520 = vmatpush1.bf16.msra.mxu0 %v2341
    %2521 = vmatprep.subr.bf16.mxu0 %v2346
    %2522 = vmatpush1.bf16.msra.mxu0 %v2345
    %2523 = vmatprep.subr.bf16.mxu0 %v2350
    %2524 = vmatpush1.bf16.msra.mxu0 %v2349
    %2525 = vmatprep.subr.bf16.mxu0 %v2354
    %2526 = vmatpush1.bf16.msra.mxu0 %v2353
    %2527 = vmatprep.subr.bf16.mxu0 %v2358
    %2528 = vmatpush1.bf16.msra.mxu0 %v2357
    %2529 = vmatprep.subr.bf16.mxu0 %v2362
    %2530 = vmatpush1.bf16.msra.mxu0 %v2361
    %2531 = vmatprep.subr.bf16.mxu0 %v2366
    %2532 = vmatpush1.bf16.msra.mxu0 %v2365
    %2533 = vmatprep.subr.bf16.mxu0 %v2370
    %2534 = vmatpush1.bf16.msra.mxu0 %v2369
    %2535 = vmatprep.subr.bf16.mxu0 %v2374
    %2536 = vmatpush1.bf16.msra.mxu0 %v2373
    %2537 = vmatprep.mubr.bf16.mxu0 %v1905
    %2538 = vmatmul.mubr.bf16.gmra.mrb[0].mxu0 %v1904
    %v2539 = vpop.f32.mrb[0].mxu0
    %v2540 = vadd.f32 %v2008, %v2539
    %v2541 = vpop.f32.mrb[0].mxu0
    %v2542 = vadd.f32 %v2012, %v2541
    %v2543 = vpop.f32.mrb[0].mxu0
    %v2544 = vpop.f32.mrb[0].mxu0
    %2545 = vdwg.mxu0
    %2546 = vmatprep.subr.bf16.mxu0 %v2378
    %2547 = vmatpush1.bf16.msra.mxu0 %v2377
    %2548 = vmatprep.subr.bf16.mxu0 %v2382
    %2549 = vmatpush1.bf16.msra.mxu0 %v2381
    %2550 = vmatprep.subr.bf16.mxu0 %v2386
    %2551 = vmatpush1.bf16.msra.mxu0 %v2385
    %2552 = vmatprep.subr.bf16.mxu0 %v2390
    %2553 = vmatpush1.bf16.msra.mxu0 %v2389
    %2554 = vmatprep.subr.bf16.mxu0 %v2394
    %2555 = vmatpush1.bf16.msra.mxu0 %v2393
    %2556 = vmatprep.subr.bf16.mxu0 %v2398
    %2557 = vmatpush1.bf16.msra.mxu0 %v2397
    %2558 = vmatprep.subr.bf16.mxu0 %v2402
    %2559 = vmatpush1.bf16.msra.mxu0 %v2401
    %2560 = vmatprep.subr.bf16.mxu0 %v2406
    %2561 = vmatpush1.bf16.msra.mxu0 %v2405
    %2562 = vmatprep.subr.bf16.mxu0 0
    %2563 = vmatpush1.bf16.msra.mxu0 0
    %2564 = vmatprep.subr.bf16.mxu0 0
    %2565 = vmatpush1.bf16.msra.mxu0 0
    %2566 = vmatprep.subr.bf16.mxu0 0
    %2567 = vmatpush1.bf16.msra.mxu0 0
    %2568 = vmatprep.subr.bf16.mxu0 0
    %2569 = vmatpush1.bf16.msra.mxu0 0
    %2570 = vmatprep.subr.bf16.mxu0 0
    %2571 = vmatpush1.bf16.msra.mxu0 0
    %2572 = vmatprep.subr.bf16.mxu0 0
    %2573 = vmatpush1.bf16.msra.mxu0 0
    %2574 = vmatprep.subr.bf16.mxu0 0
    %2575 = vmatpush1.bf16.msra.mxu0 0
    %2576 = vmatprep.subr.bf16.mxu0 0
    %2577 = vmatpush1.bf16.msra.mxu0 0
    %2578 = vmatprep.mubr.bf16.mxu0 0
    %2579 = vmatmul.mubr.bf16.gmra.mrb[0].mxu0 %v1906
    %v2580 = vpop.f32.mrb[0].mxu0
    %v2581 = vadd.f32 %v2540, %v2580
    %v2582 = vpop.f32.mrb[0].mxu0
    %v2583 = vadd.f32 %v2542, %v2582
    %v2584 = vpop.f32.mrb[0].mxu0
    %v2585 = vpop.f32.mrb[0].mxu0
    %2586 = vdwg.mxu0
    %2587 = vmatprep.subr.bf16.mxu0 %v2316
    %2588 = vmatpush1.bf16.msra.mxu0 %v2315
    %2589 = vmatprep.subr.bf16.mxu0 %v2320
    %2590 = vmatpush1.bf16.msra.mxu0 %v2319
    %2591 = vmatprep.subr.bf16.mxu0 %v2324
    %2592 = vmatpush1.bf16.msra.mxu0 %v2323
    %2593 = vmatprep.subr.bf16.mxu0 %v2328
    %2594 = vmatpush1.bf16.msra.mxu0 %v2327
    %2595 = vmatprep.subr.bf16.mxu0 %v2332
    %2596 = vmatpush1.bf16.msra.mxu0 %v2331
    %2597 = vmatprep.subr.bf16.mxu0 %v2336
    %2598 = vmatpush1.bf16.msra.mxu0 %v2335
    %2599 = vmatprep.subr.bf16.mxu0 %v2340
    %2600 = vmatpush1.bf16.msra.mxu0 %v2339
    %2601 = vmatprep.subr.bf16.mxu0 %v2344
    %2602 = vmatpush1.bf16.msra.mxu0 %v2343
    %2603 = vmatprep.subr.bf16.mxu0 %v2348
    %2604 = vmatpush1.bf16.msra.mxu0 %v2347
    %2605 = vmatprep.subr.bf16.mxu0 %v2352
    %2606 = vmatpush1.bf16.msra.mxu0 %v2351
    %2607 = vmatprep.subr.bf16.mxu0 %v2356
    %2608 = vmatpush1.bf16.msra.mxu0 %v2355
    %2609 = vmatprep.subr.bf16.mxu0 %v2360
    %2610 = vmatpush1.bf16.msra.mxu0 %v2359
    %2611 = vmatprep.subr.bf16.mxu0 %v2364
    %2612 = vmatpush1.bf16.msra.mxu0 %v2363
    %2613 = vmatprep.subr.bf16.mxu0 %v2368
    %2614 = vmatpush1.bf16.msra.mxu0 %v2367
    %2615 = vmatprep.subr.bf16.mxu0 %v2372
    %2616 = vmatpush1.bf16.msra.mxu0 %v2371
    %2617 = vmatprep.subr.bf16.mxu0 %v2376
    %2618 = vmatpush1.bf16.msra.mxu0 %v2375
    %2619 = vmatprep.mubr.bf16.mxu0 %v1905
    %2620 = vmatmul.mubr.bf16.gmra.mrb[0].mxu0 %v1904
    %v2621 = vpop.f32.mrb[0].mxu0
    %v2622 = vadd.f32 %v2016, %v2621
    %v2623 = vpop.f32.mrb[0].mxu0
    %v2624 = vadd.f32 %v2020, %v2623
    %v2625 = vpop.f32.mrb[0].mxu0
    %v2626 = vpop.f32.mrb[0].mxu0
    %2627 = vdwg.mxu0
    %2628 = vmatprep.subr.bf16.mxu0 %v2380
    %2629 = vmatpush1.bf16.msra.mxu0 %v2379
    %2630 = vmatprep.subr.bf16.mxu0 %v2384
    %2631 = vmatpush1.bf16.msra.mxu0 %v2383
    %2632 = vmatprep.subr.bf16.mxu0 %v2388
    %2633 = vmatpush1.bf16.msra.mxu0 %v2387
    %2634 = vmatprep.subr.bf16.mxu0 %v2392
    %2635 = vmatpush1.bf16.msra.mxu0 %v2391
    %2636 = vmatprep.subr.bf16.mxu0 %v2396
    %2637 = vmatpush1.bf16.msra.mxu0 %v2395
    %2638 = vmatprep.subr.bf16.mxu0 %v2400
    %2639 = vmatpush1.bf16.msra.mxu0 %v2399
    %2640 = vmatprep.subr.bf16.mxu0 %v2404
    %2641 = vmatpush1.bf16.msra.mxu0 %v2403
    %2642 = vmatprep.subr.bf16.mxu0 %v2408
    %2643 = vmatpush1.bf16.msra.mxu0 %v2407
    %2644 = vmatprep.subr.bf16.mxu0 0
    %2645 = vmatpush1.bf16.msra.mxu0 0
    %2646 = vmatprep.subr.bf16.mxu0 0
    %2647 = vmatpush1.bf16.msra.mxu0 0
    %2648 = vmatprep.subr.bf16.mxu0 0
    %2649 = vmatpush1.bf16.msra.mxu0 0
    %2650 = vmatprep.subr.bf16.mxu0 0
    %2651 = vmatpush1.bf16.msra.mxu0 0
    %2652 = vmatprep.subr.bf16.mxu0 0
    %2653 = vmatpush1.bf16.msra.mxu0 0
    %2654 = vmatprep.subr.bf16.mxu0 0
    %2655 = vmatpush1.bf16.msra.mxu0 0
    %2656 = vmatprep.subr.bf16.mxu0 0
    %2657 = vmatpush1.bf16.msra.mxu0 0
    %2658 = vmatprep.subr.bf16.mxu0 0
    %2659 = vmatpush1.bf16.msra.mxu0 0
    %2660 = vmatprep.mubr.bf16.mxu0 0
    %2661 = vmatmul.mubr.bf16.gmra.mrb[0].mxu0 %v1906
    %v2662 = vpop.f32.mrb[0].mxu0
    %v2663 = vadd.f32 %v2622, %v2662
    %v2664 = vpop.f32.mrb[0].mxu0
    %v2665 = vadd.f32 %v2624, %v2664
    %v2666 = vpop.f32.mrb[0].mxu0
    %v2667 = vpop.f32.mrb[0].mxu0
    %2668 = vdwg.mxu0
    %v2669 = vmax.f32 %v2581, 0.0
    %v2670 = vmax.f32 %v2583, 0.0
    %v2671 = vmax.f32 %v2663, 0.0
    %v2672 = vmax.f32 %v2665, 0.0
    %v2673 = vld [vmem:[#allocation10] sm:$0xff]
    %v2674 = vld [vmem:[#allocation10 + $0x8] sm:$0xff]
    %v2675 = vld [vmem:[#allocation10 + $0x10] sm:$0xff]
    %v2676 = vld [vmem:[#allocation10 + $0x18] sm:$0xff]
    %v2677 = vld [vmem:[#allocation10 + $0x20] sm:$0xff]
    %v2678 = vld [vmem:[#allocation10 + $0x28] sm:$0xff]
    %vm2679 = vcmask 64512
    %v2681 = vsel %vm2679, %v123, 0
    %2683 = vmatprep.subr.mxu0 %v2674
    %2684 = vmatpush1.msra.mxu0 %v2673
    %2685 = vmatprep.subr.mxu0 0.0
    %2686 = vmatpush1.msra.mxu0 0.0
    %2687 = vmatprep.subr.mxu0 0.0
    %2688 = vmatpush1.msra.mxu0 0.0
    %2689 = vmatprep.subr.mxu0 0.0
    %2690 = vmatpush1.msra.mxu0 0.0
    %2691 = vmatprep.subr.mxu0 0.0
    %2692 = vmatpush1.msra.mxu0 0.0
    %2693 = vmatprep.subr.mxu0 0.0
    %2694 = vmatpush1.msra.mxu0 0.0
    %2695 = vmatprep.subr.mxu0 0.0
    %2696 = vmatpush1.msra.mxu0 0.0
    %2697 = vmatprep.subr.mxu0 0.0
    %2698 = vmatpush1.msra.mxu0 0.0
    %2699 = vmatprep.subr.mxu0 0.0
    %2700 = vmatpush1.msra.mxu0 0.0
    %2701 = vmatprep.subr.mxu0 0.0
    %2702 = vmatpush1.msra.mxu0 0.0
    %2703 = vmatprep.subr.mxu0 0.0
    %2704 = vmatpush1.msra.mxu0 0.0
    %2705 = vmatprep.subr.mxu0 0.0
    %2706 = vmatpush1.msra.mxu0 0.0
    %2707 = vmatprep.subr.mxu0 0.0
    %2708 = vmatpush1.msra.mxu0 0.0
    %2709 = vmatprep.subr.mxu0 0.0
    %2710 = vmatpush1.msra.mxu0 0.0
    %2711 = vmatprep.subr.mxu0 0.0
    %2712 = vmatpush1.msra.mxu0 0.0
    %2713 = vmatprep.subr.mxu0 0.0
    %2714 = vmatpush1.msra.mxu0 0.0
    %2715 = vmatprep.subr.mxu0 0.0
    %2716 = vmatpush1.msra.mxu0 0.0
    %2717 = vmatprep.subr.mxu0 0.0
    %2718 = vmatpush1.msra.mxu0 0.0
    %2719 = vmatprep.subr.mxu0 0.0
    %2720 = vmatpush1.msra.mxu0 0.0
    %2721 = vmatprep.subr.mxu0 0.0
    %2722 = vmatpush1.msra.mxu0 0.0
    %2723 = vmatprep.subr.mxu0 0.0
    %2724 = vmatpush1.msra.mxu0 0.0
    %2725 = vmatprep.subr.mxu0 0.0
    %2726 = vmatpush1.msra.mxu0 0.0
    %2727 = vmatprep.subr.mxu0 0.0
    %2728 = vmatpush1.msra.mxu0 0.0
    %2729 = vmatprep.subr.mxu0 0.0
    %2730 = vmatpush1.msra.mxu0 0.0
    %2731 = vmatprep.subr.mxu0 0.0
    %2732 = vmatpush1.msra.mxu0 0.0
    %2733 = vmatprep.subr.mxu0 0.0
    %2734 = vmatpush1.msra.mxu0 0.0
    %2735 = vmatprep.subr.mxu0 0.0
    %2736 = vmatpush1.msra.mxu0 0.0
    %2737 = vmatprep.subr.mxu0 0.0
    %2738 = vmatpush1.msra.mxu0 0.0
    %2739 = vmatprep.subr.mxu0 0.0
    %2740 = vmatpush1.msra.mxu0 0.0
    %2741 = vmatprep.subr.mxu0 0.0
    %2742 = vmatpush1.msra.mxu0 0.0
    %2743 = vmatprep.subr.mxu0 0.0
    %2744 = vmatpush1.msra.mxu0 0.0
    %2745 = vmatprep.subr.mxu0 0.0
    %2746 = vmatpush1.msra.mxu0 0.0
    %2747 = vmatprep.mubr.f32.mxu0 0.0
    %2748 = vmatmul.mubr.f32.gmra.mrb[0].mxu0 %v2681
    %v2749 = vpop.f32.mrb[0].mxu0
    %v2750 = vadd.f32 0.0, %v2749
    %v2751 = vpop.f32.mrb[0].mxu0
    %v2752 = vadd.f32 0.0, %v2751
    %2753 = vdwg.mxu0
    %2754 = vmatprep.subr.mxu0 %v2676
    %2755 = vmatpush1.msra.mxu0 %v2675
    %2756 = vmatprep.subr.mxu0 0.0
    %2757 = vmatpush1.msra.mxu0 0.0
    %2758 = vmatprep.subr.mxu0 0.0
    %2759 = vmatpush1.msra.mxu0 0.0
    %2760 = vmatprep.subr.mxu0 0.0
    %2761 = vmatpush1.msra.mxu0 0.0
    %2762 = vmatprep.subr.mxu0 0.0
    %2763 = vmatpush1.msra.mxu0 0.0
    %2764 = vmatprep.subr.mxu0 0.0
    %2765 = vmatpush1.msra.mxu0 0.0
    %2766 = vmatprep.subr.mxu0 0.0
    %2767 = vmatpush1.msra.mxu0 0.0
    %2768 = vmatprep.subr.mxu0 0.0
    %2769 = vmatpush1.msra.mxu0 0.0
    %2770 = vmatprep.subr.mxu0 0.0
    %2771 = vmatpush1.msra.mxu0 0.0
    %2772 = vmatprep.subr.mxu0 0.0
    %2773 = vmatpush1.msra.mxu0 0.0
    %2774 = vmatprep.subr.mxu0 0.0
    %2775 = vmatpush1.msra.mxu0 0.0
    %2776 = vmatprep.subr.mxu0 0.0
    %2777 = vmatpush1.msra.mxu0 0.0
    %2778 = vmatprep.subr.mxu0 0.0
    %2779 = vmatpush1.msra.mxu0 0.0
    %2780 = vmatprep.subr.mxu0 0.0
    %2781 = vmatpush1.msra.mxu0 0.0
    %2782 = vmatprep.subr.mxu0 0.0
    %2783 = vmatpush1.msra.mxu0 0.0
    %2784 = vmatprep.subr.mxu0 0.0
    %2785 = vmatpush1.msra.mxu0 0.0
    %2786 = vmatprep.subr.mxu0 0.0
    %2787 = vmatpush1.msra.mxu0 0.0
    %2788 = vmatprep.subr.mxu0 0.0
    %2789 = vmatpush1.msra.mxu0 0.0
    %2790 = vmatprep.subr.mxu0 0.0
    %2791 = vmatpush1.msra.mxu0 0.0
    %2792 = vmatprep.subr.mxu0 0.0
    %2793 = vmatpush1.msra.mxu0 0.0
    %2794 = vmatprep.subr.mxu0 0.0
    %2795 = vmatpush1.msra.mxu0 0.0
    %2796 = vmatprep.subr.mxu0 0.0
    %2797 = vmatpush1.msra.mxu0 0.0
    %2798 = vmatprep.subr.mxu0 0.0
    %2799 = vmatpush1.msra.mxu0 0.0
    %2800 = vmatprep.subr.mxu0 0.0
    %2801 = vmatpush1.msra.mxu0 0.0
    %2802 = vmatprep.subr.mxu0 0.0
    %2803 = vmatpush1.msra.mxu0 0.0
    %2804 = vmatprep.subr.mxu0 0.0
    %2805 = vmatpush1.msra.mxu0 0.0
    %2806 = vmatprep.subr.mxu0 0.0
    %2807 = vmatpush1.msra.mxu0 0.0
    %2808 = vmatprep.subr.mxu0 0.0
    %2809 = vmatpush1.msra.mxu0 0.0
    %2810 = vmatprep.subr.mxu0 0.0
    %2811 = vmatpush1.msra.mxu0 0.0
    %2812 = vmatprep.subr.mxu0 0.0
    %2813 = vmatpush1.msra.mxu0 0.0
    %2814 = vmatprep.subr.mxu0 0.0
    %2815 = vmatpush1.msra.mxu0 0.0
    %2816 = vmatprep.subr.mxu0 0.0
    %2817 = vmatpush1.msra.mxu0 0.0
    %2818 = vmatprep.mubr.f32.mxu0 0.0
    %2819 = vmatmul.mubr.f32.gmra.mrb[0].mxu0 %v2681
    %v2820 = vpop.f32.mrb[0].mxu0
    %v2821 = vadd.f32 0.0, %v2820
    %v2822 = vpop.f32.mrb[0].mxu0
    %v2823 = vadd.f32 0.0, %v2822
    %2824 = vdwg.mxu0
    %2825 = vmatprep.subr.mxu0 %v2678
    %2826 = vmatpush1.msra.mxu0 %v2677
    %2827 = vmatprep.subr.mxu0 0.0
    %2828 = vmatpush1.msra.mxu0 0.0
    %2829 = vmatprep.subr.mxu0 0.0
    %2830 = vmatpush1.msra.mxu0 0.0
    %2831 = vmatprep.subr.mxu0 0.0
    %2832 = vmatpush1.msra.mxu0 0.0
    %2833 = vmatprep.subr.mxu0 0.0
    %2834 = vmatpush1.msra.mxu0 0.0
    %2835 = vmatprep.subr.mxu0 0.0
    %2836 = vmatpush1.msra.mxu0 0.0
    %2837 = vmatprep.subr.mxu0 0.0
    %2838 = vmatpush1.msra.mxu0 0.0
    %2839 = vmatprep.subr.mxu0 0.0
    %2840 = vmatpush1.msra.mxu0 0.0
    %2841 = vmatprep.subr.mxu0 0.0
    %2842 = vmatpush1.msra.mxu0 0.0
    %2843 = vmatprep.subr.mxu0 0.0
    %2844 = vmatpush1.msra.mxu0 0.0
    %2845 = vmatprep.subr.mxu0 0.0
    %2846 = vmatpush1.msra.mxu0 0.0
    %2847 = vmatprep.subr.mxu0 0.0
    %2848 = vmatpush1.msra.mxu0 0.0
    %2849 = vmatprep.subr.mxu0 0.0
    %2850 = vmatpush1.msra.mxu0 0.0
    %2851 = vmatprep.subr.mxu0 0.0
    %2852 = vmatpush1.msra.mxu0 0.0
    %2853 = vmatprep.subr.mxu0 0.0
    %2854 = vmatpush1.msra.mxu0 0.0
    %2855 = vmatprep.subr.mxu0 0.0
    %2856 = vmatpush1.msra.mxu0 0.0
    %2857 = vmatprep.subr.mxu0 0.0
    %2858 = vmatpush1.msra.mxu0 0.0
    %2859 = vmatprep.subr.mxu0 0.0
    %2860 = vmatpush1.msra.mxu0 0.0
    %2861 = vmatprep.subr.mxu0 0.0
    %2862 = vmatpush1.msra.mxu0 0.0
    %2863 = vmatprep.subr.mxu0 0.0
    %2864 = vmatpush1.msra.mxu0 0.0
    %2865 = vmatprep.subr.mxu0 0.0
    %2866 = vmatpush1.msra.mxu0 0.0
    %2867 = vmatprep.subr.mxu0 0.0
    %2868 = vmatpush1.msra.mxu0 0.0
    %2869 = vmatprep.subr.mxu0 0.0
    %2870 = vmatpush1.msra.mxu0 0.0
    %2871 = vmatprep.subr.mxu0 0.0
    %2872 = vmatpush1.msra.mxu0 0.0
    %2873 = vmatprep.subr.mxu0 0.0
    %2874 = vmatpush1.msra.mxu0 0.0
    %2875 = vmatprep.subr.mxu0 0.0
    %2876 = vmatpush1.msra.mxu0 0.0
    %2877 = vmatprep.subr.mxu0 0.0
    %2878 = vmatpush1.msra.mxu0 0.0
    %2879 = vmatprep.subr.mxu0 0.0
    %2880 = vmatpush1.msra.mxu0 0.0
    %2881 = vmatprep.subr.mxu0 0.0
    %2882 = vmatpush1.msra.mxu0 0.0
    %2883 = vmatprep.subr.mxu0 0.0
    %2884 = vmatpush1.msra.mxu0 0.0
    %2885 = vmatprep.subr.mxu0 0.0
    %2886 = vmatpush1.msra.mxu0 0.0
    %2887 = vmatprep.subr.mxu0 0.0
    %2888 = vmatpush1.msra.mxu0 0.0
    %2889 = vmatprep.mubr.f32.mxu0 0.0
    %2890 = vmatmul.mubr.f32.gmra.mrb[0].mxu0 %v2681
    %v2891 = vpop.f32.mrb[0].mxu0
    %v2892 = vadd.f32 0.0, %v2891
    %v2893 = vpop.f32.mrb[0].mxu0
    %v2894 = vadd.f32 0.0, %v2893
    %2895 = vdwg.mxu0
    %v2896 = vld [vmem:[#allocation12 + $0xe] sm:$0xf]
    %v2898 = vlaneseq
    %v2899 = vshrl.u32 %v2898, 7
    %v2900 = vsub.s32 0, %v2899
    %v2901 = vrot.slane %v2896, %v2900
    %v2902 = vlaneseq
    %v2903 = vshrl.u32 %v2902, 7
    %v2904 = vsub.s32 1, %v2903
    %v2905 = vrot.slane %v2896, %v2904
    %v2906 = vlaneseq
    %v2907 = vshrl.u32 %v2906, 7
    %v2908 = vsub.s32 2, %v2907
    %v2909 = vrot.slane %v2896, %v2908
    %v2910 = vlaneseq
    %v2911 = vshrl.u32 %v2910, 7
    %v2912 = vsub.s32 3, %v2911
    %v2913 = vrot.slane %v2896, %v2912
    %v2918 = vadd.f32 %v2750, %v2901
    %v2919 = vadd.f32 %v2752, %v2905
    %v2920 = vadd.f32 %v2821, %v2909
    %v2921 = vadd.f32 %v2823, %v2913
    %v2922 = vmax.f32 %v2918, 0.0
    %v2923 = vmax.f32 %v2919, 0.0
    %v2924 = vmax.f32 %v2920, 0.0
    %v2925 = vmax.f32 %v2921, 0.0
    %v2926 = vadd.f32 %v2922, %v2923
    %v2927 = vpack.c.bf16 %v2926, %v2926
    %v2928 = vadd.f32 %v2924, %v2925
    %v2929 = vpack.c.bf16 %v2928, %v2928
    %v2930 = vpack.c.bf16 %v2669, %v2669
    %v2931 = vpack.c.bf16 %v2670, %v2670
    %v2932 = vld [vmem:[#allocation9] sm:$0xf]
    %v2933 = vld [vmem:[#allocation9 + $0x4] sm:$0xf]
    %v2934 = vld [vmem:[#allocation9 + $0x8] sm:$0xf]
    %v2935 = vld [vmem:[#allocation9 + $0xc] sm:$0xf]
    %v2936 = vld [vmem:[#allocation9 + $0x10] sm:$0xf]
    %v2937 = vld [vmem:[#allocation9 + $0x14] sm:$0xf]
    %v2938 = vld [vmem:[#allocation9 + $0x18] sm:$0xf]
    %v2939 = vld [vmem:[#allocation9 + $0x1c] sm:$0xf]
    %v2940 = vld [vmem:[#allocation9 + $0x20] sm:$0xf]
    %v2941 = vld [vmem:[#allocation9 + $0x24] sm:$0xf]
    %v2942 = vld [vmem:[#allocation9 + $0x28] sm:$0xf]
    %v2943 = vld [vmem:[#allocation9 + $0x2c] sm:$0xf]
    %v2944 = vld [vmem:[#allocation9 + $0x30] sm:$0xf]
    %v2945 = vld [vmem:[#allocation9 + $0x34] sm:$0xf]
    %v2946 = vld [vmem:[#allocation9 + $0x38] sm:$0xf]
    %v2947 = vld [vmem:[#allocation9 + $0x3c] sm:$0xf]
    %v2948 = vld [vmem:[#allocation9 + $0x40] sm:$0xf]
    %v2949 = vld [vmem:[#allocation9 + $0x44] sm:$0xf]
    %v2950 = vld [vmem:[#allocation9 + $0x48] sm:$0xf]
    %v2951 = vld [vmem:[#allocation9 + $0x4c] sm:$0xf]
    %v2952 = vld [vmem:[#allocation9 + $0x50] sm:$0xf]
    %v2953 = vld [vmem:[#allocation9 + $0x54] sm:$0xf]
    %v2954 = vld [vmem:[#allocation9 + $0x58] sm:$0xf]
    %v2955 = vld [vmem:[#allocation9 + $0x5c] sm:$0xf]
    %v2956 = vld [vmem:[#allocation9 + $0x60] sm:$0xf]
    %v2957 = vld [vmem:[#allocation9 + $0x64] sm:$0xf]
    %v2958 = vld [vmem:[#allocation9 + $0x68] sm:$0xf]
    %v2959 = vld [vmem:[#allocation9 + $0x6c] sm:$0xf]
    %v2960 = vld [vmem:[#allocation9 + $0x70] sm:$0xf]
    %v2961 = vld [vmem:[#allocation9 + $0x74] sm:$0xf]
    %v2962 = vld [vmem:[#allocation9 + $0x78] sm:$0xf]
    %v2963 = vld [vmem:[#allocation9 + $0x7c] sm:$0xf]
    %v2964 = vld [vmem:[#allocation9 + $0x100] sm:$0xf]
    %v2965 = vld [vmem:[#allocation9 + $0x104] sm:$0xf]
    %v2966 = vld [vmem:[#allocation9 + $0x108] sm:$0xf]
    %v2967 = vld [vmem:[#allocation9 + $0x10c] sm:$0xf]
    %v2968 = vld [vmem:[#allocation9 + $0x110] sm:$0xf]
    %v2969 = vld [vmem:[#allocation9 + $0x114] sm:$0xf]
    %v2970 = vld [vmem:[#allocation9 + $0x118] sm:$0xf]
    %v2971 = vld [vmem:[#allocation9 + $0x11c] sm:$0xf]
    %v2972 = vld [vmem:[#allocation9 + $0x120] sm:$0xf]
    %v2973 = vld [vmem:[#allocation9 + $0x124] sm:$0xf]
    %v2974 = vld [vmem:[#allocation9 + $0x128] sm:$0xf]
    %v2975 = vld [vmem:[#allocation9 + $0x12c] sm:$0xf]
    %v2976 = vld [vmem:[#allocation9 + $0x130] sm:$0xf]
    %v2977 = vld [vmem:[#allocation9 + $0x134] sm:$0xf]
    %v2978 = vld [vmem:[#allocation9 + $0x138] sm:$0xf]
    %v2979 = vld [vmem:[#allocation9 + $0x13c] sm:$0xf]
    %v2996 = vunpack.c.l.b16 %v2964
    %v2997 = vunpack.c.l.b16 %v2965
    %v2998 = vunpack.c.l.b16 %v2966
    %v2999 = vunpack.c.l.b16 %v2967
    %v3000 = vunpack.c.l.b16 %v2968
    %v3001 = vunpack.c.l.b16 %v2969
    %v3002 = vunpack.c.l.b16 %v2970
    %v3003 = vunpack.c.l.b16 %v2971
    %v3004 = vunpack.c.l.b16 %v2972
    %v3005 = vunpack.c.l.b16 %v2973
    %v3006 = vunpack.c.l.b16 %v2974
    %v3007 = vunpack.c.l.b16 %v2975
    %v3008 = vunpack.c.l.b16 %v2976
    %v3009 = vunpack.c.l.b16 %v2977
    %v3010 = vunpack.c.l.b16 %v2978
    %v3011 = vunpack.c.l.b16 %v2979
    %v3012 = vpack.c.b16 %v2997, %v2996
    %v3013 = vpack.c.b16 %v2999, %v2998
    %v3014 = vpack.c.b16 %v3001, %v3000
    %v3015 = vpack.c.b16 %v3003, %v3002
    %v3016 = vpack.c.b16 %v3005, %v3004
    %v3017 = vpack.c.b16 %v3007, %v3006
    %v3018 = vpack.c.b16 %v3009, %v3008
    %v3019 = vpack.c.b16 %v3011, %v3010
    %3028 = vmatprep.subr.bf16.mxu0 0
    %3029 = vmatpush1.bf16.msra.mxu0 %v3012
    %3030 = vmatprep.subr.bf16.mxu0 0
    %3031 = vmatpush1.bf16.msra.mxu0 %v3013
    %3032 = vmatprep.subr.bf16.mxu0 0
    %3033 = vmatpush1.bf16.msra.mxu0 %v3014
    %3034 = vmatprep.subr.bf16.mxu0 0
    %3035 = vmatpush1.bf16.msra.mxu0 %v3015
    %3036 = vmatprep.subr.bf16.mxu0 0
    %3037 = vmatpush1.bf16.msra.mxu0 %v3016
    %3038 = vmatprep.subr.bf16.mxu0 0
    %3039 = vmatpush1.bf16.msra.mxu0 %v3017
    %3040 = vmatprep.subr.bf16.mxu0 0
    %3041 = vmatpush1.bf16.msra.mxu0 %v3018
    %3042 = vmatprep.subr.bf16.mxu0 0
    %3043 = vmatpush1.bf16.msra.mxu0 %v3019
    %3044 = vmatprep.subr.bf16.mxu0 0
    %3045 = vmatpush1.bf16.msra.mxu0 0
    %3046 = vmatprep.subr.bf16.mxu0 0
    %3047 = vmatpush1.bf16.msra.mxu0 0
    %3048 = vmatprep.subr.bf16.mxu0 0
    %3049 = vmatpush1.bf16.msra.mxu0 0
    %3050 = vmatprep.subr.bf16.mxu0 0
    %3051 = vmatpush1.bf16.msra.mxu0 0
    %3052 = vmatprep.subr.bf16.mxu0 0
    %3053 = vmatpush1.bf16.msra.mxu0 0
    %3054 = vmatprep.subr.bf16.mxu0 0
    %3055 = vmatpush1.bf16.msra.mxu0 0
    %3056 = vmatprep.subr.bf16.mxu0 0
    %3057 = vmatpush1.bf16.msra.mxu0 0
    %3058 = vmatprep.subr.bf16.mxu0 0
    %3059 = vmatpush1.bf16.msra.mxu0 0
    %3060 = vmatprep.mubr.bf16.mxu0 0
    %3061 = vmatmul.mubr.bf16.gmra.mrb[0].mxu0 %v2927
    %v3062 = vpop.f32.mrb[0].mxu0
    %v3063 = vadd.f32 0.0, %v3062
    %v3064 = vpop.f32.mrb[0].mxu0
    %v3065 = vpop.f32.mrb[0].mxu0
    %v3066 = vpop.f32.mrb[0].mxu0
    %3067 = vdwg.mxu0
    %v3100 = vunpack.c.l.b16 %v2932
    %v3101 = vunpack.c.l.b16 %v2933
    %v3102 = vunpack.c.l.b16 %v2934
    %v3103 = vunpack.c.l.b16 %v2935
    %v3104 = vunpack.c.l.b16 %v2936
    %v3105 = vunpack.c.l.b16 %v2937
    %v3106 = vunpack.c.l.b16 %v2938
    %v3107 = vunpack.c.l.b16 %v2939
    %v3108 = vunpack.c.l.b16 %v2940
    %v3109 = vunpack.c.l.b16 %v2941
    %v3110 = vunpack.c.l.b16 %v2942
    %v3111 = vunpack.c.l.b16 %v2943
    %v3112 = vunpack.c.l.b16 %v2944
    %v3113 = vunpack.c.l.b16 %v2945
    %v3114 = vunpack.c.l.b16 %v2946
    %v3115 = vunpack.c.l.b16 %v2947
    %v3116 = vunpack.c.l.b16 %v2948
    %v3117 = vunpack.c.l.b16 %v2949
    %v3118 = vunpack.c.l.b16 %v2950
    %v3119 = vunpack.c.l.b16 %v2951
    %v3120 = vunpack.c.l.b16 %v2952
    %v3121 = vunpack.c.l.b16 %v2953
    %v3122 = vunpack.c.l.b16 %v2954
    %v3123 = vunpack.c.l.b16 %v2955
    %v3124 = vunpack.c.l.b16 %v2956
    %v3125 = vunpack.c.l.b16 %v2957
    %v3126 = vunpack.c.l.b16 %v2958
    %v3127 = vunpack.c.l.b16 %v2959
    %v3128 = vunpack.c.l.b16 %v2960
    %v3129 = vunpack.c.l.b16 %v2961
    %v3130 = vunpack.c.l.b16 %v2962
    %v3131 = vunpack.c.l.b16 %v2963
    %v3132 = vpack.c.b16 %v3101, %v3100
    %v3133 = vpack.c.b16 %v3103, %v3102
    %v3134 = vpack.c.b16 %v3105, %v3104
    %v3135 = vpack.c.b16 %v3107, %v3106
    %v3136 = vpack.c.b16 %v3109, %v3108
    %v3137 = vpack.c.b16 %v3111, %v3110
    %v3138 = vpack.c.b16 %v3113, %v3112
    %v3139 = vpack.c.b16 %v3115, %v3114
    %v3140 = vpack.c.b16 %v3117, %v3116
    %v3141 = vpack.c.b16 %v3119, %v3118
    %v3142 = vpack.c.b16 %v3121, %v3120
    %v3143 = vpack.c.b16 %v3123, %v3122
    %v3144 = vpack.c.b16 %v3125, %v3124
    %v3145 = vpack.c.b16 %v3127, %v3126
    %v3146 = vpack.c.b16 %v3129, %v3128
    %v3147 = vpack.c.b16 %v3131, %v3130
    %3164 = vmatprep.subr.bf16.mxu0 0
    %3165 = vmatpush1.bf16.msra.mxu0 %v3132
    %3166 = vmatprep.subr.bf16.mxu0 0
    %3167 = vmatpush1.bf16.msra.mxu0 %v3133
    %3168 = vmatprep.subr.bf16.mxu0 0
    %3169 = vmatpush1.bf16.msra.mxu0 %v3134
    %3170 = vmatprep.subr.bf16.mxu0 0
    %3171 = vmatpush1.bf16.msra.mxu0 %v3135
    %3172 = vmatprep.subr.bf16.mxu0 0
    %3173 = vmatpush1.bf16.msra.mxu0 %v3136
    %3174 = vmatprep.subr.bf16.mxu0 0
    %3175 = vmatpush1.bf16.msra.mxu0 %v3137
    %3176 = vmatprep.subr.bf16.mxu0 0
    %3177 = vmatpush1.bf16.msra.mxu0 %v3138
    %3178 = vmatprep.subr.bf16.mxu0 0
    %3179 = vmatpush1.bf16.msra.mxu0 %v3139
    %3180 = vmatprep.subr.bf16.mxu0 0
    %3181 = vmatpush1.bf16.msra.mxu0 %v3140
    %3182 = vmatprep.subr.bf16.mxu0 0
    %3183 = vmatpush1.bf16.msra.mxu0 %v3141
    %3184 = vmatprep.subr.bf16.mxu0 0
    %3185 = vmatpush1.bf16.msra.mxu0 %v3142
    %3186 = vmatprep.subr.bf16.mxu0 0
    %3187 = vmatpush1.bf16.msra.mxu0 %v3143
    %3188 = vmatprep.subr.bf16.mxu0 0
    %3189 = vmatpush1.bf16.msra.mxu0 %v3144
    %3190 = vmatprep.subr.bf16.mxu0 0
    %3191 = vmatpush1.bf16.msra.mxu0 %v3145
    %3192 = vmatprep.subr.bf16.mxu0 0
    %3193 = vmatpush1.bf16.msra.mxu0 %v3146
    %3194 = vmatprep.subr.bf16.mxu0 0
    %3195 = vmatpush1.bf16.msra.mxu0 %v3147
    %3196 = vmatprep.mubr.bf16.mxu0 %v2931
    %3197 = vmatmul.mubr.bf16.gmra.mrb[0].mxu0 %v2930
    %v3198 = vpop.f32.mrb[0].mxu0
    %v3199 = vadd.f32 %v3063, %v3198
    %v3200 = vpop.f32.mrb[0].mxu0
    %v3201 = vpop.f32.mrb[0].mxu0
    %v3202 = vpop.f32.mrb[0].mxu0
    %3203 = vdwg.mxu0
    %v3204 = vadd.f32 %v3199, %v2892
    %v3205 = vld [vmem:[#allocation12 + $0x12] sm:$0x1]
    %v3207 = vlaneseq
    %v3208 = vshrl.u32 %v3207, 7
    %v3209 = vsub.s32 0, %v3208
    %v3210 = vrot.slane %v3205, %v3209
    %v3212 = vadd.f32 %v3204, %v3210
    %v3213 = vmax.f32 %v3212, 0.0
    %v3214 = vpack.c.bf16 %v2671, %v2671
    %v3215 = vpack.c.bf16 %v2672, %v2672
    %v3216 = vld [vmem:[#allocation9 + $0x80] sm:$0xf]
    %v3217 = vld [vmem:[#allocation9 + $0x84] sm:$0xf]
    %v3218 = vld [vmem:[#allocation9 + $0x88] sm:$0xf]
    %v3219 = vld [vmem:[#allocation9 + $0x8c] sm:$0xf]
    %v3220 = vld [vmem:[#allocation9 + $0x90] sm:$0xf]
    %v3221 = vld [vmem:[#allocation9 + $0x94] sm:$0xf]
    %v3222 = vld [vmem:[#allocation9 + $0x98] sm:$0xf]
    %v3223 = vld [vmem:[#allocation9 + $0x9c] sm:$0xf]
    %v3224 = vld [vmem:[#allocation9 + $0xa0] sm:$0xf]
    %v3225 = vld [vmem:[#allocation9 + $0xa4] sm:$0xf]
    %v3226 = vld [vmem:[#allocation9 + $0xa8] sm:$0xf]
    %v3227 = vld [vmem:[#allocation9 + $0xac] sm:$0xf]
    %v3228 = vld [vmem:[#allocation9 + $0xb0] sm:$0xf]
    %v3229 = vld [vmem:[#allocation9 + $0xb4] sm:$0xf]
    %v3230 = vld [vmem:[#allocation9 + $0xb8] sm:$0xf]
    %v3231 = vld [vmem:[#allocation9 + $0xbc] sm:$0xf]
    %v3232 = vld [vmem:[#allocation9 + $0xc0] sm:$0xf]
    %v3233 = vld [vmem:[#allocation9 + $0xc4] sm:$0xf]
    %v3234 = vld [vmem:[#allocation9 + $0xc8] sm:$0xf]
    %v3235 = vld [vmem:[#allocation9 + $0xcc] sm:$0xf]
    %v3236 = vld [vmem:[#allocation9 + $0xd0] sm:$0xf]
    %v3237 = vld [vmem:[#allocation9 + $0xd4] sm:$0xf]
    %v3238 = vld [vmem:[#allocation9 + $0xd8] sm:$0xf]
    %v3239 = vld [vmem:[#allocation9 + $0xdc] sm:$0xf]
    %v3240 = vld [vmem:[#allocation9 + $0xe0] sm:$0xf]
    %v3241 = vld [vmem:[#allocation9 + $0xe4] sm:$0xf]
    %v3242 = vld [vmem:[#allocation9 + $0xe8] sm:$0xf]
    %v3243 = vld [vmem:[#allocation9 + $0xec] sm:$0xf]
    %v3244 = vld [vmem:[#allocation9 + $0xf0] sm:$0xf]
    %v3245 = vld [vmem:[#allocation9 + $0xf4] sm:$0xf]
    %v3246 = vld [vmem:[#allocation9 + $0xf8] sm:$0xf]
    %v3247 = vld [vmem:[#allocation9 + $0xfc] sm:$0xf]
    %v3248 = vld [vmem:[#allocation9 + $0x140] sm:$0xf]
    %v3249 = vld [vmem:[#allocation9 + $0x144] sm:$0xf]
    %v3250 = vld [vmem:[#allocation9 + $0x148] sm:$0xf]
    %v3251 = vld [vmem:[#allocation9 + $0x14c] sm:$0xf]
    %v3252 = vld [vmem:[#allocation9 + $0x150] sm:$0xf]
    %v3253 = vld [vmem:[#allocation9 + $0x154] sm:$0xf]
    %v3254 = vld [vmem:[#allocation9 + $0x158] sm:$0xf]
    %v3255 = vld [vmem:[#allocation9 + $0x15c] sm:$0xf]
    %v3256 = vld [vmem:[#allocation9 + $0x160] sm:$0xf]
    %v3257 = vld [vmem:[#allocation9 + $0x164] sm:$0xf]
    %v3258 = vld [vmem:[#allocation9 + $0x168] sm:$0xf]
    %v3259 = vld [vmem:[#allocation9 + $0x16c] sm:$0xf]
    %v3260 = vld [vmem:[#allocation9 + $0x170] sm:$0xf]
    %v3261 = vld [vmem:[#allocation9 + $0x174] sm:$0xf]
    %v3262 = vld [vmem:[#allocation9 + $0x178] sm:$0xf]
    %v3263 = vld [vmem:[#allocation9 + $0x17c] sm:$0xf]
    %v3280 = vunpack.c.l.b16 %v3248
    %v3281 = vunpack.c.l.b16 %v3249
    %v3282 = vunpack.c.l.b16 %v3250
    %v3283 = vunpack.c.l.b16 %v3251
    %v3284 = vunpack.c.l.b16 %v3252
    %v3285 = vunpack.c.l.b16 %v3253
    %v3286 = vunpack.c.l.b16 %v3254
    %v3287 = vunpack.c.l.b16 %v3255
    %v3288 = vunpack.c.l.b16 %v3256
    %v3289 = vunpack.c.l.b16 %v3257
    %v3290 = vunpack.c.l.b16 %v3258
    %v3291 = vunpack.c.l.b16 %v3259
    %v3292 = vunpack.c.l.b16 %v3260
    %v3293 = vunpack.c.l.b16 %v3261
    %v3294 = vunpack.c.l.b16 %v3262
    %v3295 = vunpack.c.l.b16 %v3263
    %v3296 = vpack.c.b16 %v3281, %v3280
    %v3297 = vpack.c.b16 %v3283, %v3282
    %v3298 = vpack.c.b16 %v3285, %v3284
    %v3299 = vpack.c.b16 %v3287, %v3286
    %v3300 = vpack.c.b16 %v3289, %v3288
    %v3301 = vpack.c.b16 %v3291, %v3290
    %v3302 = vpack.c.b16 %v3293, %v3292
    %v3303 = vpack.c.b16 %v3295, %v3294
    %3312 = vmatprep.subr.bf16.mxu0 0
    %3313 = vmatpush1.bf16.msra.mxu0 %v3296
    %3314 = vmatprep.subr.bf16.mxu0 0
    %3315 = vmatpush1.bf16.msra.mxu0 %v3297
    %3316 = vmatprep.subr.bf16.mxu0 0
    %3317 = vmatpush1.bf16.msra.mxu0 %v3298
    %3318 = vmatprep.subr.bf16.mxu0 0
    %3319 = vmatpush1.bf16.msra.mxu0 %v3299
    %3320 = vmatprep.subr.bf16.mxu0 0
    %3321 = vmatpush1.bf16.msra.mxu0 %v3300
    %3322 = vmatprep.subr.bf16.mxu0 0
    %3323 = vmatpush1.bf16.msra.mxu0 %v3301
    %3324 = vmatprep.subr.bf16.mxu0 0
    %3325 = vmatpush1.bf16.msra.mxu0 %v3302
    %3326 = vmatprep.subr.bf16.mxu0 0
    %3327 = vmatpush1.bf16.msra.mxu0 %v3303
    %3328 = vmatprep.subr.bf16.mxu0 0
    %3329 = vmatpush1.bf16.msra.mxu0 0
    %3330 = vmatprep.subr.bf16.mxu0 0
    %3331 = vmatpush1.bf16.msra.mxu0 0
    %3332 = vmatprep.subr.bf16.mxu0 0
    %3333 = vmatpush1.bf16.msra.mxu0 0
    %3334 = vmatprep.subr.bf16.mxu0 0
    %3335 = vmatpush1.bf16.msra.mxu0 0
    %3336 = vmatprep.subr.bf16.mxu0 0
    %3337 = vmatpush1.bf16.msra.mxu0 0
    %3338 = vmatprep.subr.bf16.mxu0 0
    %3339 = vmatpush1.bf16.msra.mxu0 0
    %3340 = vmatprep.subr.bf16.mxu0 0
    %3341 = vmatpush1.bf16.msra.mxu0 0
    %3342 = vmatprep.subr.bf16.mxu0 0
    %3343 = vmatpush1.bf16.msra.mxu0 0
    %3344 = vmatprep.mubr.bf16.mxu0 0
    %3345 = vmatmul.mubr.bf16.gmra.mrb[0].mxu0 %v2929
    %v3346 = vpop.f32.mrb[0].mxu0
    %v3347 = vadd.f32 0.0, %v3346
    %v3348 = vpop.f32.mrb[0].mxu0
    %v3349 = vpop.f32.mrb[0].mxu0
    %v3350 = vpop.f32.mrb[0].mxu0
    %3351 = vdwg.mxu0
    %v3384 = vunpack.c.l.b16 %v3216
    %v3385 = vunpack.c.l.b16 %v3217
    %v3386 = vunpack.c.l.b16 %v3218
    %v3387 = vunpack.c.l.b16 %v3219
    %v3388 = vunpack.c.l.b16 %v3220
    %v3389 = vunpack.c.l.b16 %v3221
    %v3390 = vunpack.c.l.b16 %v3222
    %v3391 = vunpack.c.l.b16 %v3223
    %v3392 = vunpack.c.l.b16 %v3224
    %v3393 = vunpack.c.l.b16 %v3225
    %v3394 = vunpack.c.l.b16 %v3226
    %v3395 = vunpack.c.l.b16 %v3227
    %v3396 = vunpack.c.l.b16 %v3228
    %v3397 = vunpack.c.l.b16 %v3229
    %v3398 = vunpack.c.l.b16 %v3230
    %v3399 = vunpack.c.l.b16 %v3231
    %v3400 = vunpack.c.l.b16 %v3232
    %v3401 = vunpack.c.l.b16 %v3233
    %v3402 = vunpack.c.l.b16 %v3234
    %v3403 = vunpack.c.l.b16 %v3235
    %v3404 = vunpack.c.l.b16 %v3236
    %v3405 = vunpack.c.l.b16 %v3237
    %v3406 = vunpack.c.l.b16 %v3238
    %v3407 = vunpack.c.l.b16 %v3239
    %v3408 = vunpack.c.l.b16 %v3240
    %v3409 = vunpack.c.l.b16 %v3241
    %v3410 = vunpack.c.l.b16 %v3242
    %v3411 = vunpack.c.l.b16 %v3243
    %v3412 = vunpack.c.l.b16 %v3244
    %v3413 = vunpack.c.l.b16 %v3245
    %v3414 = vunpack.c.l.b16 %v3246
    %v3415 = vunpack.c.l.b16 %v3247
    %v3416 = vpack.c.b16 %v3385, %v3384
    %v3417 = vpack.c.b16 %v3387, %v3386
    %v3418 = vpack.c.b16 %v3389, %v3388
    %v3419 = vpack.c.b16 %v3391, %v3390
    %v3420 = vpack.c.b16 %v3393, %v3392
    %v3421 = vpack.c.b16 %v3395, %v3394
    %v3422 = vpack.c.b16 %v3397, %v3396
    %v3423 = vpack.c.b16 %v3399, %v3398
    %v3424 = vpack.c.b16 %v3401, %v3400
    %v3425 = vpack.c.b16 %v3403, %v3402
    %v3426 = vpack.c.b16 %v3405, %v3404
    %v3427 = vpack.c.b16 %v3407, %v3406
    %v3428 = vpack.c.b16 %v3409, %v3408
    %v3429 = vpack.c.b16 %v3411, %v3410
    %v3430 = vpack.c.b16 %v3413, %v3412
    %v3431 = vpack.c.b16 %v3415, %v3414
    %3448 = vmatprep.subr.bf16.mxu0 0
    %3449 = vmatpush1.bf16.msra.mxu0 %v3416
    %3450 = vmatprep.subr.bf16.mxu0 0
    %3451 = vmatpush1.bf16.msra.mxu0 %v3417
    %3452 = vmatprep.subr.bf16.mxu0 0
    %3453 = vmatpush1.bf16.msra.mxu0 %v3418
    %3454 = vmatprep.subr.bf16.mxu0 0
    %3455 = vmatpush1.bf16.msra.mxu0 %v3419
    %3456 = vmatprep.subr.bf16.mxu0 0
    %3457 = vmatpush1.bf16.msra.mxu0 %v3420
    %3458 = vmatprep.subr.bf16.mxu0 0
    %3459 = vmatpush1.bf16.msra.mxu0 %v3421
    %3460 = vmatprep.subr.bf16.mxu0 0
    %3461 = vmatpush1.bf16.msra.mxu0 %v3422
    %3462 = vmatprep.subr.bf16.mxu0 0
    %3463 = vmatpush1.bf16.msra.mxu0 %v3423
    %3464 = vmatprep.subr.bf16.mxu0 0
    %3465 = vmatpush1.bf16.msra.mxu0 %v3424
    %3466 = vmatprep.subr.bf16.mxu0 0
    %3467 = vmatpush1.bf16.msra.mxu0 %v3425
    %3468 = vmatprep.subr.bf16.mxu0 0
    %3469 = vmatpush1.bf16.msra.mxu0 %v3426
    %3470 = vmatprep.subr.bf16.mxu0 0
    %3471 = vmatpush1.bf16.msra.mxu0 %v3427
    %3472 = vmatprep.subr.bf16.mxu0 0
    %3473 = vmatpush1.bf16.msra.mxu0 %v3428
    %3474 = vmatprep.subr.bf16.mxu0 0
    %3475 = vmatpush1.bf16.msra.mxu0 %v3429
    %3476 = vmatprep.subr.bf16.mxu0 0
    %3477 = vmatpush1.bf16.msra.mxu0 %v3430
    %3478 = vmatprep.subr.bf16.mxu0 0
    %3479 = vmatpush1.bf16.msra.mxu0 %v3431
    %3480 = vmatprep.mubr.bf16.mxu0 %v3215
    %3481 = vmatmul.mubr.bf16.gmra.mrb[0].mxu0 %v3214
    %v3482 = vpop.f32.mrb[0].mxu0
    %v3483 = vadd.f32 %v3347, %v3482
    %v3484 = vpop.f32.mrb[0].mxu0
    %v3485 = vpop.f32.mrb[0].mxu0
    %v3486 = vpop.f32.mrb[0].mxu0
    %3487 = vdwg.mxu0
    %v3488 = vadd.f32 %v3483, %v2894
    %v3489 = vld [vmem:[#allocation12 + $0x13] sm:$0x1]
    %v3491 = vlaneseq
    %v3492 = vshrl.u32 %v3491, 7
    %v3493 = vsub.s32 0, %v3492
    %v3494 = vrot.slane %v3489, %v3493
    %v3496 = vadd.f32 %v3488, %v3494
    %v3497 = vmax.f32 %v3496, 0.0
    %v3498 = vpack.c.bf16 %v3497, %v3497
    %v3499 = vld [vmem:[#allocation9 + $0x180] sm:$0xf]
    %v3500 = vld [vmem:[#allocation9 + $0x184] sm:$0xf]
    %v3501 = vld [vmem:[#allocation9 + $0x188] sm:$0xf]
    %v3502 = vld [vmem:[#allocation9 + $0x18c] sm:$0xf]
    %v3503 = vld [vmem:[#allocation9 + $0x190] sm:$0xf]
    %v3504 = vld [vmem:[#allocation9 + $0x194] sm:$0xf]
    %v3505 = vld [vmem:[#allocation9 + $0x198] sm:$0xf]
    %v3506 = vld [vmem:[#allocation9 + $0x19c] sm:$0xf]
    %v3507 = vld [vmem:[#allocation9 + $0x1a0] sm:$0xf]
    %v3508 = vld [vmem:[#allocation9 + $0x1a4] sm:$0xf]
    %v3509 = vld [vmem:[#allocation9 + $0x1a8] sm:$0xf]
    %v3510 = vld [vmem:[#allocation9 + $0x1ac] sm:$0xf]
    %v3511 = vld [vmem:[#allocation9 + $0x1b0] sm:$0xf]
    %v3512 = vld [vmem:[#allocation9 + $0x1b4] sm:$0xf]
    %v3513 = vld [vmem:[#allocation9 + $0x1b8] sm:$0xf]
    %v3514 = vld [vmem:[#allocation9 + $0x1bc] sm:$0xf]
    %v3515 = vld [vmem:[#allocation12 + $0x14] sm:$0x1]
    %v3517 = vlaneseq
    %v3518 = vshrl.u32 %v3517, 7
    %v3519 = vsub.s32 0, %v3518
    %v3520 = vrot.slane %v3515, %v3519
    %v3538 = vunpack.c.l.b16 %v3499
    %v3539 = vunpack.c.l.b16 %v3500
    %v3540 = vunpack.c.l.b16 %v3501
    %v3541 = vunpack.c.l.b16 %v3502
    %v3542 = vunpack.c.l.b16 %v3503
    %v3543 = vunpack.c.l.b16 %v3504
    %v3544 = vunpack.c.l.b16 %v3505
    %v3545 = vunpack.c.l.b16 %v3506
    %v3546 = vunpack.c.l.b16 %v3507
    %v3547 = vunpack.c.l.b16 %v3508
    %v3548 = vunpack.c.l.b16 %v3509
    %v3549 = vunpack.c.l.b16 %v3510
    %v3550 = vunpack.c.l.b16 %v3511
    %v3551 = vunpack.c.l.b16 %v3512
    %v3552 = vunpack.c.l.b16 %v3513
    %v3553 = vunpack.c.l.b16 %v3514
    %v3554 = vpack.c.b16 %v3539, %v3538
    %v3555 = vpack.c.b16 %v3541, %v3540
    %v3556 = vpack.c.b16 %v3543, %v3542
    %v3557 = vpack.c.b16 %v3545, %v3544
    %v3558 = vpack.c.b16 %v3547, %v3546
    %v3559 = vpack.c.b16 %v3549, %v3548
    %v3560 = vpack.c.b16 %v3551, %v3550
    %v3561 = vpack.c.b16 %v3553, %v3552
    %3570 = vmatprep.subr.bf16.mxu0 0
    %3571 = vmatpush1.bf16.msra.mxu0 %v3554
    %3572 = vmatprep.subr.bf16.mxu0 0
    %3573 = vmatpush1.bf16.msra.mxu0 %v3555
    %3574 = vmatprep.subr.bf16.mxu0 0
    %3575 = vmatpush1.bf16.msra.mxu0 %v3556
    %3576 = vmatprep.subr.bf16.mxu0 0
    %3577 = vmatpush1.bf16.msra.mxu0 %v3557
    %3578 = vmatprep.subr.bf16.mxu0 0
    %3579 = vmatpush1.bf16.msra.mxu0 %v3558
    %3580 = vmatprep.subr.bf16.mxu0 0
    %3581 = vmatpush1.bf16.msra.mxu0 %v3559
    %3582 = vmatprep.subr.bf16.mxu0 0
    %3583 = vmatpush1.bf16.msra.mxu0 %v3560
    %3584 = vmatprep.subr.bf16.mxu0 0
    %3585 = vmatpush1.bf16.msra.mxu0 %v3561
    %3586 = vmatprep.subr.bf16.mxu0 0
    %3587 = vmatpush1.bf16.msra.mxu0 0
    %3588 = vmatprep.subr.bf16.mxu0 0
    %3589 = vmatpush1.bf16.msra.mxu0 0
    %3590 = vmatprep.subr.bf16.mxu0 0
    %3591 = vmatpush1.bf16.msra.mxu0 0
    %3592 = vmatprep.subr.bf16.mxu0 0
    %3593 = vmatpush1.bf16.msra.mxu0 0
    %3594 = vmatprep.subr.bf16.mxu0 0
    %3595 = vmatpush1.bf16.msra.mxu0 0
    %3596 = vmatprep.subr.bf16.mxu0 0
    %3597 = vmatpush1.bf16.msra.mxu0 0
    %3598 = vmatprep.subr.bf16.mxu0 0
    %3599 = vmatpush1.bf16.msra.mxu0 0
    %3600 = vmatprep.subr.bf16.mxu0 0
    %3601 = vmatpush1.bf16.msra.mxu0 0
    %3602 = vmatprep.mubr.bf16.mxu0 0
    %3603 = vmatmul.mubr.bf16.gmra.mrb[0].mxu0 %v3498
    %v3604 = vpop.f32.mrb[0].mxu0
    %v3605 = vadd.f32 %v3520, %v3604
    %v3606 = vpop.f32.mrb[0].mxu0
    %v3607 = vpop.f32.mrb[0].mxu0
    %v3608 = vpop.f32.mrb[0].mxu0
    %3609 = vdwg.mxu0
    %v3610 = vmax.f32 %v3605, 0.0
    %v3611 = vlaneseq
    %v3612 = vshrl.u32 %v3611, 7
    %v3613 = vlaneseq
    %v3614 = vand.u32 %v3613, 127
    %vm3615 = vcmp.eq.s32.totalorder %v3614, %v3612
    %v3616 = vsel %vm3615, 1.0, 0.0
    %v3617 = vadd.s32 %v3612, 2
    %vm3618 = vcmp.eq.s32.totalorder %v3614, %v3617
    %v3619 = vsel %vm3618, 1.0, 0.0
    %v3620 = vadd.s32 %v3612, 4
    %vm3621 = vcmp.eq.s32.totalorder %v3614, %v3620
    %v3622 = vsel %vm3621, 1.0, 0.0
    %v3623 = vadd.f32 %v3616, %v3619
    %v3624 = vadd.f32 %v3623, %v3622
    %vm3625 = vcmask 48128
    %v3627 = vsel %vm3625, %v3624, 0
    %vm3629 = vcmask 1045504
    %v3631 = vsel %vm3629, %v3213, 0
    %3633 = vmatprep.subr.mxu0 0.0
    %3634 = vmatpush1.msra.mxu0 %v3631
    %3635 = vmatprep.subr.mxu0 0.0
    %3636 = vmatpush1.msra.mxu0 0.0
    %3637 = vmatprep.subr.mxu0 0.0
    %3638 = vmatpush1.msra.mxu0 0.0
    %3639 = vmatprep.subr.mxu0 0.0
    %3640 = vmatpush1.msra.mxu0 0.0
    %3641 = vmatprep.subr.mxu0 0.0
    %3642 = vmatpush1.msra.mxu0 0.0
    %3643 = vmatprep.subr.mxu0 0.0
    %3644 = vmatpush1.msra.mxu0 0.0
    %3645 = vmatprep.subr.mxu0 0.0
    %3646 = vmatpush1.msra.mxu0 0.0
    %3647 = vmatprep.subr.mxu0 0.0
    %3648 = vmatpush1.msra.mxu0 0.0
    %3649 = vmatprep.subr.mxu0 0.0
    %3650 = vmatpush1.msra.mxu0 0.0
    %3651 = vmatprep.subr.mxu0 0.0
    %3652 = vmatpush1.msra.mxu0 0.0
    %3653 = vmatprep.subr.mxu0 0.0
    %3654 = vmatpush1.msra.mxu0 0.0
    %3655 = vmatprep.subr.mxu0 0.0
    %3656 = vmatpush1.msra.mxu0 0.0
    %3657 = vmatprep.subr.mxu0 0.0
    %3658 = vmatpush1.msra.mxu0 0.0
    %3659 = vmatprep.subr.mxu0 0.0
    %3660 = vmatpush1.msra.mxu0 0.0
    %3661 = vmatprep.subr.mxu0 0.0
    %3662 = vmatpush1.msra.mxu0 0.0
    %3663 = vmatprep.subr.mxu0 0.0
    %3664 = vmatpush1.msra.mxu0 0.0
    %3665 = vmatprep.subr.mxu0 0.0
    %3666 = vmatpush1.msra.mxu0 0.0
    %3667 = vmatprep.subr.mxu0 0.0
    %3668 = vmatpush1.msra.mxu0 0.0
    %3669 = vmatprep.subr.mxu0 0.0
    %3670 = vmatpush1.msra.mxu0 0.0
    %3671 = vmatprep.subr.mxu0 0.0
    %3672 = vmatpush1.msra.mxu0 0.0
    %3673 = vmatprep.subr.mxu0 0.0
    %3674 = vmatpush1.msra.mxu0 0.0
    %3675 = vmatprep.subr.mxu0 0.0
    %3676 = vmatpush1.msra.mxu0 0.0
    %3677 = vmatprep.subr.mxu0 0.0
    %3678 = vmatpush1.msra.mxu0 0.0
    %3679 = vmatprep.subr.mxu0 0.0
    %3680 = vmatpush1.msra.mxu0 0.0
    %3681 = vmatprep.subr.mxu0 0.0
    %3682 = vmatpush1.msra.mxu0 0.0
    %3683 = vmatprep.subr.mxu0 0.0
    %3684 = vmatpush1.msra.mxu0 0.0
    %3685 = vmatprep.subr.mxu0 0.0
    %3686 = vmatpush1.msra.mxu0 0.0
    %3687 = vmatprep.subr.mxu0 0.0
    %3688 = vmatpush1.msra.mxu0 0.0
    %3689 = vmatprep.subr.mxu0 0.0
    %3690 = vmatpush1.msra.mxu0 0.0
    %3691 = vmatprep.subr.mxu0 0.0
    %3692 = vmatpush1.msra.mxu0 0.0
    %3693 = vmatprep.subr.mxu0 0.0
    %3694 = vmatpush1.msra.mxu0 0.0
    %3695 = vmatprep.subr.mxu0 0.0
    %3696 = vmatpush1.msra.mxu0 0.0
    %3697 = vmatprep.mubr.f32.mxu0 0.0
    %3698 = vmatmul.mubr.f32.gmra.mrb[0].mxu0 %v3627
    %v3699 = vpop.f32.mrb[0].mxu0
    %v3700 = vadd.f32 0.0, %v3699
    %v3701 = vpop.f32.mrb[0].mxu0
    %3702 = vdwg.mxu0
    %v3703 = vpack.c.bf16 %v3700, %v3700
    %v3704 = vld [vmem:[#allocation9 + $0x1c0] sm:$0xf]
    %v3705 = vld [vmem:[#allocation9 + $0x1c4] sm:$0xf]
    %v3706 = vld [vmem:[#allocation9 + $0x1c8] sm:$0xf]
    %v3707 = vld [vmem:[#allocation9 + $0x1cc] sm:$0xf]
    %v3708 = vld [vmem:[#allocation9 + $0x1d0] sm:$0xf]
    %v3709 = vld [vmem:[#allocation9 + $0x1d4] sm:$0xf]
    %v3710 = vld [vmem:[#allocation9 + $0x1d8] sm:$0xf]
    %v3711 = vld [vmem:[#allocation9 + $0x1dc] sm:$0xf]
    %v3712 = vld [vmem:[#allocation9 + $0x1e0] sm:$0xf]
    %v3713 = vld [vmem:[#allocation9 + $0x1e4] sm:$0xf]
    %v3714 = vld [vmem:[#allocation9 + $0x1e8] sm:$0xf]
    %v3715 = vld [vmem:[#allocation9 + $0x1ec] sm:$0xf]
    %v3716 = vld [vmem:[#allocation9 + $0x1f0] sm:$0xf]
    %v3717 = vld [vmem:[#allocation9 + $0x1f4] sm:$0xf]
    %v3718 = vld [vmem:[#allocation9 + $0x1f8] sm:$0xf]
    %v3719 = vld [vmem:[#allocation9 + $0x1fc] sm:$0xf]
    %v3720 = vld [vmem:[#allocation12 + $0x15] sm:$0x1]
    %v3722 = vlaneseq
    %v3723 = vshrl.u32 %v3722, 7
    %v3724 = vsub.s32 0, %v3723
    %v3725 = vrot.slane %v3720, %v3724
    %v3743 = vunpack.c.l.b16 %v3704
    %v3744 = vunpack.c.l.b16 %v3705
    %v3745 = vunpack.c.l.b16 %v3706
    %v3746 = vunpack.c.l.b16 %v3707
    %v3747 = vunpack.c.l.b16 %v3708
    %v3748 = vunpack.c.l.b16 %v3709
    %v3749 = vunpack.c.l.b16 %v3710
    %v3750 = vunpack.c.l.b16 %v3711
    %v3751 = vunpack.c.l.b16 %v3712
    %v3752 = vunpack.c.l.b16 %v3713
    %v3753 = vunpack.c.l.b16 %v3714
    %v3754 = vunpack.c.l.b16 %v3715
    %v3755 = vunpack.c.l.b16 %v3716
    %v3756 = vunpack.c.l.b16 %v3717
    %v3757 = vunpack.c.l.b16 %v3718
    %v3758 = vunpack.c.l.b16 %v3719
    %v3759 = vpack.c.b16 %v3744, %v3743
    %v3760 = vpack.c.b16 %v3746, %v3745
    %v3761 = vpack.c.b16 %v3748, %v3747
    %v3762 = vpack.c.b16 %v3750, %v3749
    %v3763 = vpack.c.b16 %v3752, %v3751
    %v3764 = vpack.c.b16 %v3754, %v3753
    %v3765 = vpack.c.b16 %v3756, %v3755
    %v3766 = vpack.c.b16 %v3758, %v3757
    %3775 = vmatprep.subr.bf16.mxu0 0
    %3776 = vmatpush1.bf16.msra.mxu0 %v3759
    %3777 = vmatprep.subr.bf16.mxu0 0
    %3778 = vmatpush1.bf16.msra.mxu0 %v3760
    %3779 = vmatprep.subr.bf16.mxu0 0
    %3780 = vmatpush1.bf16.msra.mxu0 %v3761
    %3781 = vmatprep.subr.bf16.mxu0 0
    %3782 = vmatpush1.bf16.msra.mxu0 %v3762
    %3783 = vmatprep.subr.bf16.mxu0 0
    %3784 = vmatpush1.bf16.msra.mxu0 %v3763
    %3785 = vmatprep.subr.bf16.mxu0 0
    %3786 = vmatpush1.bf16.msra.mxu0 %v3764
    %3787 = vmatprep.subr.bf16.mxu0 0
    %3788 = vmatpush1.bf16.msra.mxu0 %v3765
    %3789 = vmatprep.subr.bf16.mxu0 0
    %3790 = vmatpush1.bf16.msra.mxu0 %v3766
    %3791 = vmatprep.subr.bf16.mxu0 0
    %3792 = vmatpush1.bf16.msra.mxu0 0
    %3793 = vmatprep.subr.bf16.mxu0 0
    %3794 = vmatpush1.bf16.msra.mxu0 0
    %3795 = vmatprep.subr.bf16.mxu0 0
    %3796 = vmatpush1.bf16.msra.mxu0 0
    %3797 = vmatprep.subr.bf16.mxu0 0
    %3798 = vmatpush1.bf16.msra.mxu0 0
    %3799 = vmatprep.subr.bf16.mxu0 0
    %3800 = vmatpush1.bf16.msra.mxu0 0
    %3801 = vmatprep.subr.bf16.mxu0 0
    %3802 = vmatpush1.bf16.msra.mxu0 0
    %3803 = vmatprep.subr.bf16.mxu0 0
    %3804 = vmatpush1.bf16.msra.mxu0 0
    %3805 = vmatprep.subr.bf16.mxu0 0
    %3806 = vmatpush1.bf16.msra.mxu0 0
    %3807 = vmatprep.mubr.bf16.mxu0 0
    %3808 = vmatmul.mubr.bf16.gmra.mrb[0].mxu0 %v3703
    %v3809 = vpop.f32.mrb[0].mxu0
    %v3810 = vadd.f32 %v3725, %v3809
    %v3811 = vpop.f32.mrb[0].mxu0
    %v3812 = vpop.f32.mrb[0].mxu0
    %v3813 = vpop.f32.mrb[0].mxu0
    %3814 = vdwg.mxu0
    %v3815 = vmax.f32 %v3810, 0.0
    %v3816 = vpack.c.bf16 %v3815, %v3815
    %v3817 = vld [vmem:[#allocation6 + $0x540] sm:$0xff]
    %v3818 = vld [vmem:[#allocation6 + $0x548] sm:$0xf]
    %v3819 = vld [vmem:[#allocation6 + $0x54c] sm:$0xff]
    %v3820 = vld [vmem:[#allocation6 + $0x554] sm:$0xf]
    %v3821 = vld [vmem:[#allocation6 + $0x558] sm:$0xff]
    %v3822 = vld [vmem:[#allocation6 + $0x560] sm:$0xf]
    %v3823 = vld [vmem:[#allocation6 + $0x564] sm:$0xff]
    %v3824 = vld [vmem:[#allocation6 + $0x56c] sm:$0xf]
    %v3825 = vld [vmem:[#allocation6 + $0x570] sm:$0xff]
    %v3826 = vld [vmem:[#allocation6 + $0x578] sm:$0xf]
    %v3827 = vld [vmem:[#allocation6 + $0x57c] sm:$0xff]
    %v3828 = vld [vmem:[#allocation6 + $0x584] sm:$0xf]
    %v3829 = vld [vmem:[#allocation6 + $0x588] sm:$0xff]
    %v3830 = vld [vmem:[#allocation6 + $0x590] sm:$0xf]
    %v3831 = vld [vmem:[#allocation6 + $0x594] sm:$0xff]
    %v3832 = vld [vmem:[#allocation6 + $0x59c] sm:$0xf]
    %v3833 = vld [vmem:[#allocation6 + $0x5a0] sm:$0xff]
    %v3834 = vld [vmem:[#allocation6 + $0x5a8] sm:$0xf]
    %v3835 = vld [vmem:[#allocation6 + $0x5ac] sm:$0xff]
    %v3836 = vld [vmem:[#allocation6 + $0x5b4] sm:$0xf]
    %v3837 = vld [vmem:[#allocation6 + $0x5b8] sm:$0xff]
    %v3838 = vld [vmem:[#allocation6 + $0x5c0] sm:$0xf]
    %v3839 = vld [vmem:[#allocation6 + $0x5c4] sm:$0xff]
    %v3840 = vld [vmem:[#allocation6 + $0x5cc] sm:$0xf]
    %v3841 = vld [vmem:[#allocation6 + $0x5d0] sm:$0xff]
    %v3842 = vld [vmem:[#allocation6 + $0x5d8] sm:$0xf]
    %v3843 = vld [vmem:[#allocation6 + $0x5dc] sm:$0xff]
    %v3844 = vld [vmem:[#allocation6 + $0x5e4] sm:$0xf]
    %v3845 = vld [vmem:[#allocation6 + $0x5e8] sm:$0xff]
    %v3846 = vld [vmem:[#allocation6 + $0x5f0] sm:$0xf]
    %v3847 = vld [vmem:[#allocation6 + $0x5f4] sm:$0xff]
    %v3848 = vld [vmem:[#allocation6 + $0x5fc] sm:$0xf]
    %v3849 = vld [vmem:[#allocation12 + $0x16] sm:$0x7]
    %v3851 = vlaneseq
    %v3852 = vshrl.u32 %v3851, 7
    %v3853 = vsub.s32 0, %v3852
    %v3854 = vrot.slane %v3849, %v3853
    %v3855 = vlaneseq
    %v3856 = vshrl.u32 %v3855, 7
    %v3857 = vsub.s32 1, %v3856
    %v3858 = vrot.slane %v3849, %v3857
    %v3859 = vlaneseq
    %v3860 = vshrl.u32 %v3859, 7
    %v3861 = vsub.s32 2, %v3860
    %v3862 = vrot.slane %v3849, %v3861
    %v3898 = vunpack.c.l.b16 %v3817
    %v3899 = vunpack.c.h.b16 %v3817
    %v3900 = vunpack.c.l.b16 %v3818
    %v3901 = vunpack.c.l.b16 %v3819
    %v3902 = vunpack.c.h.b16 %v3819
    %v3903 = vunpack.c.l.b16 %v3820
    %v3904 = vunpack.c.l.b16 %v3821
    %v3905 = vunpack.c.h.b16 %v3821
    %v3906 = vunpack.c.l.b16 %v3822
    %v3907 = vunpack.c.l.b16 %v3823
    %v3908 = vunpack.c.h.b16 %v3823
    %v3909 = vunpack.c.l.b16 %v3824
    %v3910 = vunpack.c.l.b16 %v3825
    %v3911 = vunpack.c.h.b16 %v3825
    %v3912 = vunpack.c.l.b16 %v3826
    %v3913 = vunpack.c.l.b16 %v3827
    %v3914 = vunpack.c.h.b16 %v3827
    %v3915 = vunpack.c.l.b16 %v3828
    %v3916 = vunpack.c.l.b16 %v3829
    %v3917 = vunpack.c.h.b16 %v3829
    %v3918 = vunpack.c.l.b16 %v3830
    %v3919 = vunpack.c.l.b16 %v3831
    %v3920 = vunpack.c.h.b16 %v3831
    %v3921 = vunpack.c.l.b16 %v3832
    %v3922 = vunpack.c.l.b16 %v3833
    %v3923 = vunpack.c.h.b16 %v3833
    %v3924 = vunpack.c.l.b16 %v3834
    %v3925 = vunpack.c.l.b16 %v3835
    %v3926 = vunpack.c.h.b16 %v3835
    %v3927 = vunpack.c.l.b16 %v3836
    %v3928 = vunpack.c.l.b16 %v3837
    %v3929 = vunpack.c.h.b16 %v3837
    %v3930 = vunpack.c.l.b16 %v3838
    %v3931 = vunpack.c.l.b16 %v3839
    %v3932 = vunpack.c.h.b16 %v3839
    %v3933 = vunpack.c.l.b16 %v3840
    %v3934 = vunpack.c.l.b16 %v3841
    %v3935 = vunpack.c.h.b16 %v3841
    %v3936 = vunpack.c.l.b16 %v3842
    %v3937 = vunpack.c.l.b16 %v3843
    %v3938 = vunpack.c.h.b16 %v3843
    %v3939 = vunpack.c.l.b16 %v3844
    %v3940 = vunpack.c.l.b16 %v3845
    %v3941 = vunpack.c.h.b16 %v3845
    %v3942 = vunpack.c.l.b16 %v3846
    %v3943 = vunpack.c.l.b16 %v3847
    %v3944 = vunpack.c.h.b16 %v3847
    %v3945 = vunpack.c.l.b16 %v3848
    %v3946 = vpack.c.b16 %v3901, %v3898
    %v3947 = vpack.c.b16 %v3902, %v3899
    %v3948 = vpack.c.b16 %v3903, %v3900
    %v3949 = vpack.c.b16 %v3907, %v3904
    %v3950 = vpack.c.b16 %v3908, %v3905
    %v3951 = vpack.c.b16 %v3909, %v3906
    %v3952 = vpack.c.b16 %v3913, %v3910
    %v3953 = vpack.c.b16 %v3914, %v3911
    %v3954 = vpack.c.b16 %v3915, %v3912
    %v3955 = vpack.c.b16 %v3919, %v3916
    %v3956 = vpack.c.b16 %v3920, %v3917
    %v3957 = vpack.c.b16 %v3921, %v3918
    %v3958 = vpack.c.b16 %v3925, %v3922
    %v3959 = vpack.c.b16 %v3926, %v3923
    %v3960 = vpack.c.b16 %v3927, %v3924
    %v3961 = vpack.c.b16 %v3931, %v3928
    %v3962 = vpack.c.b16 %v3932, %v3929
    %v3963 = vpack.c.b16 %v3933, %v3930
    %v3964 = vpack.c.b16 %v3937, %v3934
    %v3965 = vpack.c.b16 %v3938, %v3935
    %v3966 = vpack.c.b16 %v3939, %v3936
    %v3967 = vpack.c.b16 %v3943, %v3940
    %v3968 = vpack.c.b16 %v3944, %v3941
    %v3969 = vpack.c.b16 %v3945, %v3942
    %3994 = vmatprep.subr.bf16.mxu0 %v3947
    %3995 = vmatpush1.bf16.msra.mxu0 %v3946
    %3996 = vmatprep.subr.bf16.mxu0 %v3950
    %3997 = vmatpush1.bf16.msra.mxu0 %v3949
    %3998 = vmatprep.subr.bf16.mxu0 %v3953
    %3999 = vmatpush1.bf16.msra.mxu0 %v3952
    %4000 = vmatprep.subr.bf16.mxu0 %v3956
    %4001 = vmatpush1.bf16.msra.mxu0 %v3955
    %4002 = vmatprep.subr.bf16.mxu0 %v3959
    %4003 = vmatpush1.bf16.msra.mxu0 %v3958
    %4004 = vmatprep.subr.bf16.mxu0 %v3962
    %4005 = vmatpush1.bf16.msra.mxu0 %v3961
    %4006 = vmatprep.subr.bf16.mxu0 %v3965
    %4007 = vmatpush1.bf16.msra.mxu0 %v3964
    %4008 = vmatprep.subr.bf16.mxu0 %v3968
    %4009 = vmatpush1.bf16.msra.mxu0 %v3967
    %4010 = vmatprep.subr.bf16.mxu0 0
    %4011 = vmatpush1.bf16.msra.mxu0 0
    %4012 = vmatprep.subr.bf16.mxu0 0
    %4013 = vmatpush1.bf16.msra.mxu0 0
    %4014 = vmatprep.subr.bf16.mxu0 0
    %4015 = vmatpush1.bf16.msra.mxu0 0
    %4016 = vmatprep.subr.bf16.mxu0 0
    %4017 = vmatpush1.bf16.msra.mxu0 0
    %4018 = vmatprep.subr.bf16.mxu0 0
    %4019 = vmatpush1.bf16.msra.mxu0 0
    %4020 = vmatprep.subr.bf16.mxu0 0
    %4021 = vmatpush1.bf16.msra.mxu0 0
    %4022 = vmatprep.subr.bf16.mxu0 0
    %4023 = vmatpush1.bf16.msra.mxu0 0
    %4024 = vmatprep.subr.bf16.mxu0 0
    %4025 = vmatpush1.bf16.msra.mxu0 0
    %4026 = vmatprep.mubr.bf16.mxu0 0
    %4027 = vmatmul.mubr.bf16.gmra.mrb[0].mxu0 %v3816
    %v4028 = vpop.f32.mrb[0].mxu0
    %v4029 = vadd.f32 %v3854, %v4028
    %v4030 = vpop.f32.mrb[0].mxu0
    %v4031 = vadd.f32 %v3858, %v4030
    %v4032 = vpop.f32.mrb[0].mxu0
    %v4033 = vpop.f32.mrb[0].mxu0
    %4034 = vdwg.mxu0
    %4035 = vmatprep.subr.bf16.mxu0 0
    %4036 = vmatpush1.bf16.msra.mxu0 %v3948
    %4037 = vmatprep.subr.bf16.mxu0 0
    %4038 = vmatpush1.bf16.msra.mxu0 %v3951
    %4039 = vmatprep.subr.bf16.mxu0 0
    %4040 = vmatpush1.bf16.msra.mxu0 %v3954
    %4041 = vmatprep.subr.bf16.mxu0 0
    %4042 = vmatpush1.bf16.msra.mxu0 %v3957
    %4043 = vmatprep.subr.bf16.mxu0 0
    %4044 = vmatpush1.bf16.msra.mxu0 %v3960
    %4045 = vmatprep.subr.bf16.mxu0 0
    %4046 = vmatpush1.bf16.msra.mxu0 %v3963
    %4047 = vmatprep.subr.bf16.mxu0 0
    %4048 = vmatpush1.bf16.msra.mxu0 %v3966
    %4049 = vmatprep.subr.bf16.mxu0 0
    %4050 = vmatpush1.bf16.msra.mxu0 %v3969
    %4051 = vmatprep.subr.bf16.mxu0 0
    %4052 = vmatpush1.bf16.msra.mxu0 0
    %4053 = vmatprep.subr.bf16.mxu0 0
    %4054 = vmatpush1.bf16.msra.mxu0 0
    %4055 = vmatprep.subr.bf16.mxu0 0
    %4056 = vmatpush1.bf16.msra.mxu0 0
    %4057 = vmatprep.subr.bf16.mxu0 0
    %4058 = vmatpush1.bf16.msra.mxu0 0
    %4059 = vmatprep.subr.bf16.mxu0 0
    %4060 = vmatpush1.bf16.msra.mxu0 0
    %4061 = vmatprep.subr.bf16.mxu0 0
    %4062 = vmatpush1.bf16.msra.mxu0 0
    %4063 = vmatprep.subr.bf16.mxu0 0
    %4064 = vmatpush1.bf16.msra.mxu0 0
    %4065 = vmatprep.subr.bf16.mxu0 0
    %4066 = vmatpush1.bf16.msra.mxu0 0
    %4067 = vmatprep.mubr.bf16.mxu0 0
    %4068 = vmatmul.mubr.bf16.gmra.mrb[0].mxu0 %v3816
    %v4069 = vpop.f32.mrb[0].mxu0
    %v4070 = vadd.f32 %v3862, %v4069
    %v4071 = vpop.f32.mrb[0].mxu0
    %v4072 = vpop.f32.mrb[0].mxu0
    %v4073 = vpop.f32.mrb[0].mxu0
    %4074 = vdwg.mxu0
    %v4075 = vpack.c.bf16 %v133, %v133
    %v4076 = vld [vmem:[#allocation6 + $0x600] sm:$0xff]
    %v4077 = vld [vmem:[#allocation6 + $0x608] sm:$0xf]
    %v4078 = vld [vmem:[#allocation6 + $0x60c] sm:$0xff]
    %v4079 = vld [vmem:[#allocation6 + $0x614] sm:$0xf]
    %v4080 = vld [vmem:[#allocation6 + $0x618] sm:$0xff]
    %v4081 = vld [vmem:[#allocation6 + $0x620] sm:$0xf]
    %v4082 = vld [vmem:[#allocation6 + $0x624] sm:$0xff]
    %v4083 = vld [vmem:[#allocation6 + $0x62c] sm:$0xf]
    %v4084 = vld [vmem:[#allocation6 + $0x630] sm:$0xff]
    %v4085 = vld [vmem:[#allocation6 + $0x638] sm:$0xf]
    %v4086 = vld [vmem:[#allocation6 + $0x63c] sm:$0xff]
    %v4087 = vld [vmem:[#allocation6 + $0x644] sm:$0xf]
    %v4088 = vld [vmem:[#allocation6 + $0x648] sm:$0xff]
    %v4089 = vld [vmem:[#allocation6 + $0x650] sm:$0xf]
    %v4090 = vld [vmem:[#allocation6 + $0x654] sm:$0xff]
    %v4091 = vld [vmem:[#allocation6 + $0x65c] sm:$0xf]
    %v4092 = vld [vmem:[#allocation6 + $0x660] sm:$0xff]
    %v4093 = vld [vmem:[#allocation6 + $0x668] sm:$0xf]
    %v4094 = vld [vmem:[#allocation6 + $0x66c] sm:$0xff]
    %v4095 = vld [vmem:[#allocation6 + $0x674] sm:$0xf]
    %v4096 = vld [vmem:[#allocation6 + $0x678] sm:$0xff]
    %v4097 = vld [vmem:[#allocation6 + $0x680] sm:$0xf]
    %v4098 = vld [vmem:[#allocation6 + $0x684] sm:$0xff]
    %v4099 = vld [vmem:[#allocation6 + $0x68c] sm:$0xf]
    %v4100 = vld [vmem:[#allocation6 + $0x690] sm:$0xff]
    %v4101 = vld [vmem:[#allocation6 + $0x698] sm:$0xf]
    %v4102 = vld [vmem:[#allocation6 + $0x69c] sm:$0xff]
    %v4103 = vld [vmem:[#allocation6 + $0x6a4] sm:$0xf]
    %v4104 = vld [vmem:[#allocation6 + $0x6a8] sm:$0xff]
    %v4105 = vld [vmem:[#allocation6 + $0x6b0] sm:$0xf]
    %v4106 = vld [vmem:[#allocation6 + $0x6b4] sm:$0xff]
    %v4107 = vld [vmem:[#allocation6 + $0x6bc] sm:$0xf]
    %v4108 = vld [vmem:[#allocation12 + $0x19] sm:$0x7]
    %v4110 = vlaneseq
    %v4111 = vshrl.u32 %v4110, 7
    %v4112 = vsub.s32 0, %v4111
    %v4113 = vrot.slane %v4108, %v4112
    %v4114 = vlaneseq
    %v4115 = vshrl.u32 %v4114, 7
    %v4116 = vsub.s32 1, %v4115
    %v4117 = vrot.slane %v4108, %v4116
    %v4118 = vlaneseq
    %v4119 = vshrl.u32 %v4118, 7
    %v4120 = vsub.s32 2, %v4119
    %v4121 = vrot.slane %v4108, %v4120
    %v4157 = vunpack.c.l.b16 %v4076
    %v4158 = vunpack.c.h.b16 %v4076
    %v4159 = vunpack.c.l.b16 %v4077
    %v4160 = vunpack.c.l.b16 %v4078
    %v4161 = vunpack.c.h.b16 %v4078
    %v4162 = vunpack.c.l.b16 %v4079
    %v4163 = vunpack.c.l.b16 %v4080
    %v4164 = vunpack.c.h.b16 %v4080
    %v4165 = vunpack.c.l.b16 %v4081
    %v4166 = vunpack.c.l.b16 %v4082
    %v4167 = vunpack.c.h.b16 %v4082
    %v4168 = vunpack.c.l.b16 %v4083
    %v4169 = vunpack.c.l.b16 %v4084
    %v4170 = vunpack.c.h.b16 %v4084
    %v4171 = vunpack.c.l.b16 %v4085
    %v4172 = vunpack.c.l.b16 %v4086
    %v4173 = vunpack.c.h.b16 %v4086
    %v4174 = vunpack.c.l.b16 %v4087
    %v4175 = vunpack.c.l.b16 %v4088
    %v4176 = vunpack.c.h.b16 %v4088
    %v4177 = vunpack.c.l.b16 %v4089
    %v4178 = vunpack.c.l.b16 %v4090
    %v4179 = vunpack.c.h.b16 %v4090
    %v4180 = vunpack.c.l.b16 %v4091
    %v4181 = vunpack.c.l.b16 %v4092
    %v4182 = vunpack.c.h.b16 %v4092
    %v4183 = vunpack.c.l.b16 %v4093
    %v4184 = vunpack.c.l.b16 %v4094
    %v4185 = vunpack.c.h.b16 %v4094
    %v4186 = vunpack.c.l.b16 %v4095
    %v4187 = vunpack.c.l.b16 %v4096
    %v4188 = vunpack.c.h.b16 %v4096
    %v4189 = vunpack.c.l.b16 %v4097
    %v4190 = vunpack.c.l.b16 %v4098
    %v4191 = vunpack.c.h.b16 %v4098
    %v4192 = vunpack.c.l.b16 %v4099
    %v4193 = vunpack.c.l.b16 %v4100
    %v4194 = vunpack.c.h.b16 %v4100
    %v4195 = vunpack.c.l.b16 %v4101
    %v4196 = vunpack.c.l.b16 %v4102
    %v4197 = vunpack.c.h.b16 %v4102
    %v4198 = vunpack.c.l.b16 %v4103
    %v4199 = vunpack.c.l.b16 %v4104
    %v4200 = vunpack.c.h.b16 %v4104
    %v4201 = vunpack.c.l.b16 %v4105
    %v4202 = vunpack.c.l.b16 %v4106
    %v4203 = vunpack.c.h.b16 %v4106
    %v4204 = vunpack.c.l.b16 %v4107
    %v4205 = vpack.c.b16 %v4160, %v4157
    %v4206 = vpack.c.b16 %v4161, %v4158
    %v4207 = vpack.c.b16 %v4162, %v4159
    %v4208 = vpack.c.b16 %v4166, %v4163
    %v4209 = vpack.c.b16 %v4167, %v4164
    %v4210 = vpack.c.b16 %v4168, %v4165
    %v4211 = vpack.c.b16 %v4172, %v4169
    %v4212 = vpack.c.b16 %v4173, %v4170
    %v4213 = vpack.c.b16 %v4174, %v4171
    %v4214 = vpack.c.b16 %v4178, %v4175
    %v4215 = vpack.c.b16 %v4179, %v4176
    %v4216 = vpack.c.b16 %v4180, %v4177
    %v4217 = vpack.c.b16 %v4184, %v4181
    %v4218 = vpack.c.b16 %v4185, %v4182
    %v4219 = vpack.c.b16 %v4186, %v4183
    %v4220 = vpack.c.b16 %v4190, %v4187
    %v4221 = vpack.c.b16 %v4191, %v4188
    %v4222 = vpack.c.b16 %v4192, %v4189
    %v4223 = vpack.c.b16 %v4196, %v4193
    %v4224 = vpack.c.b16 %v4197, %v4194
    %v4225 = vpack.c.b16 %v4198, %v4195
    %v4226 = vpack.c.b16 %v4202, %v4199
    %v4227 = vpack.c.b16 %v4203, %v4200
    %v4228 = vpack.c.b16 %v4204, %v4201
    %4253 = vmatprep.subr.bf16.mxu0 %v4206
    %4254 = vmatpush1.bf16.msra.mxu0 %v4205
    %4255 = vmatprep.subr.bf16.mxu0 %v4209
    %4256 = vmatpush1.bf16.msra.mxu0 %v4208
    %4257 = vmatprep.subr.bf16.mxu0 %v4212
    %4258 = vmatpush1.bf16.msra.mxu0 %v4211
    %4259 = vmatprep.subr.bf16.mxu0 %v4215
    %4260 = vmatpush1.bf16.msra.mxu0 %v4214
    %4261 = vmatprep.subr.bf16.mxu0 %v4218
    %4262 = vmatpush1.bf16.msra.mxu0 %v4217
    %4263 = vmatprep.subr.bf16.mxu0 %v4221
    %4264 = vmatpush1.bf16.msra.mxu0 %v4220
    %4265 = vmatprep.subr.bf16.mxu0 %v4224
    %4266 = vmatpush1.bf16.msra.mxu0 %v4223
    %4267 = vmatprep.subr.bf16.mxu0 %v4227
    %4268 = vmatpush1.bf16.msra.mxu0 %v4226
    %4269 = vmatprep.subr.bf16.mxu0 0
    %4270 = vmatpush1.bf16.msra.mxu0 0
    %4271 = vmatprep.subr.bf16.mxu0 0
    %4272 = vmatpush1.bf16.msra.mxu0 0
    %4273 = vmatprep.subr.bf16.mxu0 0
    %4274 = vmatpush1.bf16.msra.mxu0 0
    %4275 = vmatprep.subr.bf16.mxu0 0
    %4276 = vmatpush1.bf16.msra.mxu0 0
    %4277 = vmatprep.subr.bf16.mxu0 0
    %4278 = vmatpush1.bf16.msra.mxu0 0
    %4279 = vmatprep.subr.bf16.mxu0 0
    %4280 = vmatpush1.bf16.msra.mxu0 0
    %4281 = vmatprep.subr.bf16.mxu0 0
    %4282 = vmatpush1.bf16.msra.mxu0 0
    %4283 = vmatprep.subr.bf16.mxu0 0
    %4284 = vmatpush1.bf16.msra.mxu0 0
    %4285 = vmatprep.mubr.bf16.mxu0 0
    %4286 = vmatmul.mubr.bf16.gmra.mrb[0].mxu0 %v4075
    %v4287 = vpop.f32.mrb[0].mxu0
    %v4288 = vadd.f32 %v4113, %v4287
    %v4289 = vpop.f32.mrb[0].mxu0
    %v4290 = vadd.f32 %v4117, %v4289
    %v4291 = vpop.f32.mrb[0].mxu0
    %v4292 = vpop.f32.mrb[0].mxu0
    %4293 = vdwg.mxu0
    %4294 = vmatprep.subr.bf16.mxu0 0
    %4295 = vmatpush1.bf16.msra.mxu0 %v4207
    %4296 = vmatprep.subr.bf16.mxu0 0
    %4297 = vmatpush1.bf16.msra.mxu0 %v4210
    %4298 = vmatprep.subr.bf16.mxu0 0
    %4299 = vmatpush1.bf16.msra.mxu0 %v4213
    %4300 = vmatprep.subr.bf16.mxu0 0
    %4301 = vmatpush1.bf16.msra.mxu0 %v4216
    %4302 = vmatprep.subr.bf16.mxu0 0
    %4303 = vmatpush1.bf16.msra.mxu0 %v4219
    %4304 = vmatprep.subr.bf16.mxu0 0
    %4305 = vmatpush1.bf16.msra.mxu0 %v4222
    %4306 = vmatprep.subr.bf16.mxu0 0
    %4307 = vmatpush1.bf16.msra.mxu0 %v4225
    %4308 = vmatprep.subr.bf16.mxu0 0
    %4309 = vmatpush1.bf16.msra.mxu0 %v4228
    %4310 = vmatprep.subr.bf16.mxu0 0
    %4311 = vmatpush1.bf16.msra.mxu0 0
    %4312 = vmatprep.subr.bf16.mxu0 0
    %4313 = vmatpush1.bf16.msra.mxu0 0
    %4314 = vmatprep.subr.bf16.mxu0 0
    %4315 = vmatpush1.bf16.msra.mxu0 0
    %4316 = vmatprep.subr.bf16.mxu0 0
    %4317 = vmatpush1.bf16.msra.mxu0 0
    %4318 = vmatprep.subr.bf16.mxu0 0
    %4319 = vmatpush1.bf16.msra.mxu0 0
    %4320 = vmatprep.subr.bf16.mxu0 0
    %4321 = vmatpush1.bf16.msra.mxu0 0
    %4322 = vmatprep.subr.bf16.mxu0 0
    %4323 = vmatpush1.bf16.msra.mxu0 0
    %4324 = vmatprep.subr.bf16.mxu0 0
    %4325 = vmatpush1.bf16.msra.mxu0 0
    %4326 = vmatprep.mubr.bf16.mxu0 0
    %4327 = vmatmul.mubr.bf16.gmra.mrb[0].mxu0 %v4075
    %v4328 = vpop.f32.mrb[0].mxu0
    %v4329 = vadd.f32 %v4121, %v4328
    %v4330 = vpop.f32.mrb[0].mxu0
    %v4331 = vpop.f32.mrb[0].mxu0
    %v4332 = vpop.f32.mrb[0].mxu0
    %4333 = vdwg.mxu0
    %v4334 = vadd.f32 %v4029, %v4288
    %v4335 = vxor.u32 %v4334, 2147483648
    %v4336 = vmul.f32 %v4335, 1.442695
    %v4337 = vpow.pop %v4336
    %v4338 = vadd.f32 %v4337, 1.0
    %v4339 = vrcp.pop %v4338
    %v4340 = vmul.f32 1.0, %v4339
    %v4341 = vadd.f32 %v4031, %v4290
    %v4342 = vxor.u32 %v4341, 2147483648
    %v4343 = vmul.f32 %v4342, 1.442695
    %v4344 = vpow.pop %v4343
    %v4345 = vadd.f32 %v4344, 1.0
    %v4346 = vrcp.pop %v4345
    %v4347 = vmul.f32 1.0, %v4346
    %v4348 = vmul.f32 %v4340, %v4329
    %v4349 = vadd.f32 %v4070, %v4348
    %v4350 = vtanh.pop %v4349
    %v4351 = vsub.f32 1.0, %v4347
    %v4352 = vmul.f32 %v4351, %v4350
    %v4353 = vmul.f32 %v4347, %v133
    %v4354 = vadd.f32 %v4352, %v4353
    %v4355 = vpack.c.bf16 %v3610, %v3610
    %v4356 = vld [vmem:[#allocation6 + $0x6c0] sm:$0xff]
    %v4357 = vld [vmem:[#allocation6 + $0x6c8] sm:$0xf]
    %v4358 = vld [vmem:[#allocation6 + $0x6cc] sm:$0xff]
    %v4359 = vld [vmem:[#allocation6 + $0x6d4] sm:$0xf]
    %v4360 = vld [vmem:[#allocation6 + $0x6d8] sm:$0xff]
    %v4361 = vld [vmem:[#allocation6 + $0x6e0] sm:$0xf]
    %v4362 = vld [vmem:[#allocation6 + $0x6e4] sm:$0xff]
    %v4363 = vld [vmem:[#allocation6 + $0x6ec] sm:$0xf]
    %v4364 = vld [vmem:[#allocation6 + $0x6f0] sm:$0xff]
    %v4365 = vld [vmem:[#allocation6 + $0x6f8] sm:$0xf]
    %v4366 = vld [vmem:[#allocation6 + $0x6fc] sm:$0xff]
    %v4367 = vld [vmem:[#allocation6 + $0x704] sm:$0xf]
    %v4368 = vld [vmem:[#allocation6 + $0x708] sm:$0xff]
    %v4369 = vld [vmem:[#allocation6 + $0x710] sm:$0xf]
    %v4370 = vld [vmem:[#allocation6 + $0x714] sm:$0xff]
    %v4371 = vld [vmem:[#allocation6 + $0x71c] sm:$0xf]
    %v4372 = vld [vmem:[#allocation6 + $0x720] sm:$0xff]
    %v4373 = vld [vmem:[#allocation6 + $0x728] sm:$0xf]
    %v4374 = vld [vmem:[#allocation6 + $0x72c] sm:$0xff]
    %v4375 = vld [vmem:[#allocation6 + $0x734] sm:$0xf]
    %v4376 = vld [vmem:[#allocation6 + $0x738] sm:$0xff]
    %v4377 = vld [vmem:[#allocation6 + $0x740] sm:$0xf]
    %v4378 = vld [vmem:[#allocation6 + $0x744] sm:$0xff]
    %v4379 = vld [vmem:[#allocation6 + $0x74c] sm:$0xf]
    %v4380 = vld [vmem:[#allocation6 + $0x750] sm:$0xff]
    %v4381 = vld [vmem:[#allocation6 + $0x758] sm:$0xf]
    %v4382 = vld [vmem:[#allocation6 + $0x75c] sm:$0xff]
    %v4383 = vld [vmem:[#allocation6 + $0x764] sm:$0xf]
    %v4384 = vld [vmem:[#allocation6 + $0x768] sm:$0xff]
    %v4385 = vld [vmem:[#allocation6 + $0x770] sm:$0xf]
    %v4386 = vld [vmem:[#allocation6 + $0x774] sm:$0xff]
    %v4387 = vld [vmem:[#allocation6 + $0x77c] sm:$0xf]
    %v4388 = vld [vmem:[#allocation12 + $0x1c] sm:$0x7]
    %v4390 = vlaneseq
    %v4391 = vshrl.u32 %v4390, 7
    %v4392 = vsub.s32 0, %v4391
    %v4393 = vrot.slane %v4388, %v4392
    %v4394 = vlaneseq
    %v4395 = vshrl.u32 %v4394, 7
    %v4396 = vsub.s32 1, %v4395
    %v4397 = vrot.slane %v4388, %v4396
    %v4398 = vlaneseq
    %v4399 = vshrl.u32 %v4398, 7
    %v4400 = vsub.s32 2, %v4399
    %v4401 = vrot.slane %v4388, %v4400
    %v4437 = vunpack.c.l.b16 %v4356
    %v4438 = vunpack.c.h.b16 %v4356
    %v4439 = vunpack.c.l.b16 %v4357
    %v4440 = vunpack.c.l.b16 %v4358
    %v4441 = vunpack.c.h.b16 %v4358
    %v4442 = vunpack.c.l.b16 %v4359
    %v4443 = vunpack.c.l.b16 %v4360
    %v4444 = vunpack.c.h.b16 %v4360
    %v4445 = vunpack.c.l.b16 %v4361
    %v4446 = vunpack.c.l.b16 %v4362
    %v4447 = vunpack.c.h.b16 %v4362
    %v4448 = vunpack.c.l.b16 %v4363
    %v4449 = vunpack.c.l.b16 %v4364
    %v4450 = vunpack.c.h.b16 %v4364
    %v4451 = vunpack.c.l.b16 %v4365
    %v4452 = vunpack.c.l.b16 %v4366
    %v4453 = vunpack.c.h.b16 %v4366
    %v4454 = vunpack.c.l.b16 %v4367
    %v4455 = vunpack.c.l.b16 %v4368
    %v4456 = vunpack.c.h.b16 %v4368
    %v4457 = vunpack.c.l.b16 %v4369
    %v4458 = vunpack.c.l.b16 %v4370
    %v4459 = vunpack.c.h.b16 %v4370
    %v4460 = vunpack.c.l.b16 %v4371
    %v4461 = vunpack.c.l.b16 %v4372
    %v4462 = vunpack.c.h.b16 %v4372
    %v4463 = vunpack.c.l.b16 %v4373
    %v4464 = vunpack.c.l.b16 %v4374
    %v4465 = vunpack.c.h.b16 %v4374
    %v4466 = vunpack.c.l.b16 %v4375
    %v4467 = vunpack.c.l.b16 %v4376
    %v4468 = vunpack.c.h.b16 %v4376
    %v4469 = vunpack.c.l.b16 %v4377
    %v4470 = vunpack.c.l.b16 %v4378
    %v4471 = vunpack.c.h.b16 %v4378
    %v4472 = vunpack.c.l.b16 %v4379
    %v4473 = vunpack.c.l.b16 %v4380
    %v4474 = vunpack.c.h.b16 %v4380
    %v4475 = vunpack.c.l.b16 %v4381
    %v4476 = vunpack.c.l.b16 %v4382
    %v4477 = vunpack.c.h.b16 %v4382
    %v4478 = vunpack.c.l.b16 %v4383
    %v4479 = vunpack.c.l.b16 %v4384
    %v4480 = vunpack.c.h.b16 %v4384
    %v4481 = vunpack.c.l.b16 %v4385
    %v4482 = vunpack.c.l.b16 %v4386
    %v4483 = vunpack.c.h.b16 %v4386
    %v4484 = vunpack.c.l.b16 %v4387
    %v4485 = vpack.c.b16 %v4440, %v4437
    %v4486 = vpack.c.b16 %v4441, %v4438
    %v4487 = vpack.c.b16 %v4442, %v4439
    %v4488 = vpack.c.b16 %v4446, %v4443
    %v4489 = vpack.c.b16 %v4447, %v4444
    %v4490 = vpack.c.b16 %v4448, %v4445
    %v4491 = vpack.c.b16 %v4452, %v4449
    %v4492 = vpack.c.b16 %v4453, %v4450
    %v4493 = vpack.c.b16 %v4454, %v4451
    %v4494 = vpack.c.b16 %v4458, %v4455
    %v4495 = vpack.c.b16 %v4459, %v4456
    %v4496 = vpack.c.b16 %v4460, %v4457
    %v4497 = vpack.c.b16 %v4464, %v4461
    %v4498 = vpack.c.b16 %v4465, %v4462
    %v4499 = vpack.c.b16 %v4466, %v4463
    %v4500 = vpack.c.b16 %v4470, %v4467
    %v4501 = vpack.c.b16 %v4471, %v4468
    %v4502 = vpack.c.b16 %v4472, %v4469
    %v4503 = vpack.c.b16 %v4476, %v4473
    %v4504 = vpack.c.b16 %v4477, %v4474
    %v4505 = vpack.c.b16 %v4478, %v4475
    %v4506 = vpack.c.b16 %v4482, %v4479
    %v4507 = vpack.c.b16 %v4483, %v4480
    %v4508 = vpack.c.b16 %v4484, %v4481
    %4533 = vmatprep.subr.bf16.mxu0 %v4486
    %4534 = vmatpush1.bf16.msra.mxu0 %v4485
    %4535 = vmatprep.subr.bf16.mxu0 %v4489
    %4536 = vmatpush1.bf16.msra.mxu0 %v4488
    %4537 = vmatprep.subr.bf16.mxu0 %v4492
    %4538 = vmatpush1.bf16.msra.mxu0 %v4491
    %4539 = vmatprep.subr.bf16.mxu0 %v4495
    %4540 = vmatpush1.bf16.msra.mxu0 %v4494
    %4541 = vmatprep.subr.bf16.mxu0 %v4498
    %4542 = vmatpush1.bf16.msra.mxu0 %v4497
    %4543 = vmatprep.subr.bf16.mxu0 %v4501
    %4544 = vmatpush1.bf16.msra.mxu0 %v4500
    %4545 = vmatprep.subr.bf16.mxu0 %v4504
    %4546 = vmatpush1.bf16.msra.mxu0 %v4503
    %4547 = vmatprep.subr.bf16.mxu0 %v4507
    %4548 = vmatpush1.bf16.msra.mxu0 %v4506
    %4549 = vmatprep.subr.bf16.mxu0 0
    %4550 = vmatpush1.bf16.msra.mxu0 0
    %4551 = vmatprep.subr.bf16.mxu0 0
    %4552 = vmatpush1.bf16.msra.mxu0 0
    %4553 = vmatprep.subr.bf16.mxu0 0
    %4554 = vmatpush1.bf16.msra.mxu0 0
    %4555 = vmatprep.subr.bf16.mxu0 0
    %4556 = vmatpush1.bf16.msra.mxu0 0
    %4557 = vmatprep.subr.bf16.mxu0 0
    %4558 = vmatpush1.bf16.msra.mxu0 0
    %4559 = vmatprep.subr.bf16.mxu0 0
    %4560 = vmatpush1.bf16.msra.mxu0 0
    %4561 = vmatprep.subr.bf16.mxu0 0
    %4562 = vmatpush1.bf16.msra.mxu0 0
    %4563 = vmatprep.subr.bf16.mxu0 0
    %4564 = vmatpush1.bf16.msra.mxu0 0
    %4565 = vmatprep.mubr.bf16.mxu0 0
    %4566 = vmatmul.mubr.bf16.gmra.mrb[0].mxu0 %v4355
    %v4567 = vpop.f32.mrb[0].mxu0
    %v4568 = vadd.f32 %v4393, %v4567
    %v4569 = vpop.f32.mrb[0].mxu0
    %v4570 = vadd.f32 %v4397, %v4569
    %v4571 = vpop.f32.mrb[0].mxu0
    %v4572 = vpop.f32.mrb[0].mxu0
    %4573 = vdwg.mxu0
    %4574 = vmatprep.subr.bf16.mxu0 0
    %4575 = vmatpush1.bf16.msra.mxu0 %v4487
    %4576 = vmatprep.subr.bf16.mxu0 0
    %4577 = vmatpush1.bf16.msra.mxu0 %v4490
    %4578 = vmatprep.subr.bf16.mxu0 0
    %4579 = vmatpush1.bf16.msra.mxu0 %v4493
    %4580 = vmatprep.subr.bf16.mxu0 0
    %4581 = vmatpush1.bf16.msra.mxu0 %v4496
    %4582 = vmatprep.subr.bf16.mxu0 0
    %4583 = vmatpush1.bf16.msra.mxu0 %v4499
    %4584 = vmatprep.subr.bf16.mxu0 0
    %4585 = vmatpush1.bf16.msra.mxu0 %v4502
    %4586 = vmatprep.subr.bf16.mxu0 0
    %4587 = vmatpush1.bf16.msra.mxu0 %v4505
    %4588 = vmatprep.subr.bf16.mxu0 0
    %4589 = vmatpush1.bf16.msra.mxu0 %v4508
    %4590 = vmatprep.subr.bf16.mxu0 0
    %4591 = vmatpush1.bf16.msra.mxu0 0
    %4592 = vmatprep.subr.bf16.mxu0 0
    %4593 = vmatpush1.bf16.msra.mxu0 0
    %4594 = vmatprep.subr.bf16.mxu0 0
    %4595 = vmatpush1.bf16.msra.mxu0 0
    %4596 = vmatprep.subr.bf16.mxu0 0
    %4597 = vmatpush1.bf16.msra.mxu0 0
    %4598 = vmatprep.subr.bf16.mxu0 0
    %4599 = vmatpush1.bf16.msra.mxu0 0
    %4600 = vmatprep.subr.bf16.mxu0 0
    %4601 = vmatpush1.bf16.msra.mxu0 0
    %4602 = vmatprep.subr.bf16.mxu0 0
    %4603 = vmatpush1.bf16.msra.mxu0 0
    %4604 = vmatprep.subr.bf16.mxu0 0
    %4605 = vmatpush1.bf16.msra.mxu0 0
    %4606 = vmatprep.mubr.bf16.mxu0 0
    %4607 = vmatmul.mubr.bf16.gmra.mrb[0].mxu0 %v4355
    %v4608 = vpop.f32.mrb[0].mxu0
    %v4609 = vadd.f32 %v4401, %v4608
    %v4610 = vpop.f32.mrb[0].mxu0
    %v4611 = vpop.f32.mrb[0].mxu0
    %v4612 = vpop.f32.mrb[0].mxu0
    %4613 = vdwg.mxu0
    %v4614 = vpack.c.bf16 %v124, %v124
    %v4615 = vld [vmem:[#allocation6 + $0x780] sm:$0xff]
    %v4616 = vld [vmem:[#allocation6 + $0x788] sm:$0xf]
    %v4617 = vld [vmem:[#allocation6 + $0x78c] sm:$0xff]
    %v4618 = vld [vmem:[#allocation6 + $0x794] sm:$0xf]
    %v4619 = vld [vmem:[#allocation6 + $0x798] sm:$0xff]
    %v4620 = vld [vmem:[#allocation6 + $0x7a0] sm:$0xf]
    %v4621 = vld [vmem:[#allocation6 + $0x7a4] sm:$0xff]
    %v4622 = vld [vmem:[#allocation6 + $0x7ac] sm:$0xf]
    %v4623 = vld [vmem:[#allocation6 + $0x7b0] sm:$0xff]
    %v4624 = vld [vmem:[#allocation6 + $0x7b8] sm:$0xf]
    %v4625 = vld [vmem:[#allocation6 + $0x7bc] sm:$0xff]
    %v4626 = vld [vmem:[#allocation6 + $0x7c4] sm:$0xf]
    %v4627 = vld [vmem:[#allocation6 + $0x7c8] sm:$0xff]
    %v4628 = vld [vmem:[#allocation6 + $0x7d0] sm:$0xf]
    %v4629 = vld [vmem:[#allocation6 + $0x7d4] sm:$0xff]
    %v4630 = vld [vmem:[#allocation6 + $0x7dc] sm:$0xf]
    %v4631 = vld [vmem:[#allocation6 + $0x7e0] sm:$0xff]
    %v4632 = vld [vmem:[#allocation6 + $0x7e8] sm:$0xf]
    %v4633 = vld [vmem:[#allocation6 + $0x7ec] sm:$0xff]
    %v4634 = vld [vmem:[#allocation6 + $0x7f4] sm:$0xf]
    %v4635 = vld [vmem:[#allocation6 + $0x7f8] sm:$0xff]
    %v4636 = vld [vmem:[#allocation6 + $0x800] sm:$0xf]
    %v4637 = vld [vmem:[#allocation6 + $0x804] sm:$0xff]
    %v4638 = vld [vmem:[#allocation6 + $0x80c] sm:$0xf]
    %v4639 = vld [vmem:[#allocation6 + $0x810] sm:$0xff]
    %v4640 = vld [vmem:[#allocation6 + $0x818] sm:$0xf]
    %v4641 = vld [vmem:[#allocation6 + $0x81c] sm:$0xff]
    %v4642 = vld [vmem:[#allocation6 + $0x824] sm:$0xf]
    %v4643 = vld [vmem:[#allocation6 + $0x828] sm:$0xff]
    %v4644 = vld [vmem:[#allocation6 + $0x830] sm:$0xf]
    %v4645 = vld [vmem:[#allocation6 + $0x834] sm:$0xff]
    %v4646 = vld [vmem:[#allocation6 + $0x83c] sm:$0xf]
    %v4647 = vld [vmem:[#allocation12 + $0x1f] sm:$0x7]
    %v4649 = vlaneseq
    %v4650 = vshrl.u32 %v4649, 7
    %v4651 = vsub.s32 0, %v4650
    %v4652 = vrot.slane %v4647, %v4651
    %v4653 = vlaneseq
    %v4654 = vshrl.u32 %v4653, 7
    %v4655 = vsub.s32 1, %v4654
    %v4656 = vrot.slane %v4647, %v4655
    %v4657 = vlaneseq
    %v4658 = vshrl.u32 %v4657, 7
    %v4659 = vsub.s32 2, %v4658
    %v4660 = vrot.slane %v4647, %v4659
    %v4696 = vunpack.c.l.b16 %v4615
    %v4697 = vunpack.c.h.b16 %v4615
    %v4698 = vunpack.c.l.b16 %v4616
    %v4699 = vunpack.c.l.b16 %v4617
    %v4700 = vunpack.c.h.b16 %v4617
    %v4701 = vunpack.c.l.b16 %v4618
    %v4702 = vunpack.c.l.b16 %v4619
    %v4703 = vunpack.c.h.b16 %v4619
    %v4704 = vunpack.c.l.b16 %v4620
    %v4705 = vunpack.c.l.b16 %v4621
    %v4706 = vunpack.c.h.b16 %v4621
    %v4707 = vunpack.c.l.b16 %v4622
    %v4708 = vunpack.c.l.b16 %v4623
    %v4709 = vunpack.c.h.b16 %v4623
    %v4710 = vunpack.c.l.b16 %v4624
    %v4711 = vunpack.c.l.b16 %v4625
    %v4712 = vunpack.c.h.b16 %v4625
    %v4713 = vunpack.c.l.b16 %v4626
    %v4714 = vunpack.c.l.b16 %v4627
    %v4715 = vunpack.c.h.b16 %v4627
    %v4716 = vunpack.c.l.b16 %v4628
    %v4717 = vunpack.c.l.b16 %v4629
    %v4718 = vunpack.c.h.b16 %v4629
    %v4719 = vunpack.c.l.b16 %v4630
    %v4720 = vunpack.c.l.b16 %v4631
    %v4721 = vunpack.c.h.b16 %v4631
    %v4722 = vunpack.c.l.b16 %v4632
    %v4723 = vunpack.c.l.b16 %v4633
    %v4724 = vunpack.c.h.b16 %v4633
    %v4725 = vunpack.c.l.b16 %v4634
    %v4726 = vunpack.c.l.b16 %v4635
    %v4727 = vunpack.c.h.b16 %v4635
    %v4728 = vunpack.c.l.b16 %v4636
    %v4729 = vunpack.c.l.b16 %v4637
    %v4730 = vunpack.c.h.b16 %v4637
    %v4731 = vunpack.c.l.b16 %v4638
    %v4732 = vunpack.c.l.b16 %v4639
    %v4733 = vunpack.c.h.b16 %v4639
    %v4734 = vunpack.c.l.b16 %v4640
    %v4735 = vunpack.c.l.b16 %v4641
    %v4736 = vunpack.c.h.b16 %v4641
    %v4737 = vunpack.c.l.b16 %v4642
    %v4738 = vunpack.c.l.b16 %v4643
    %v4739 = vunpack.c.h.b16 %v4643
    %v4740 = vunpack.c.l.b16 %v4644
    %v4741 = vunpack.c.l.b16 %v4645
    %v4742 = vunpack.c.h.b16 %v4645
    %v4743 = vunpack.c.l.b16 %v4646
    %v4744 = vpack.c.b16 %v4699, %v4696
    %v4745 = vpack.c.b16 %v4700, %v4697
    %v4746 = vpack.c.b16 %v4701, %v4698
    %v4747 = vpack.c.b16 %v4705, %v4702
    %v4748 = vpack.c.b16 %v4706, %v4703
    %v4749 = vpack.c.b16 %v4707, %v4704
    %v4750 = vpack.c.b16 %v4711, %v4708
    %v4751 = vpack.c.b16 %v4712, %v4709
    %v4752 = vpack.c.b16 %v4713, %v4710
    %v4753 = vpack.c.b16 %v4717, %v4714
    %v4754 = vpack.c.b16 %v4718, %v4715
    %v4755 = vpack.c.b16 %v4719, %v4716
    %v4756 = vpack.c.b16 %v4723, %v4720
    %v4757 = vpack.c.b16 %v4724, %v4721
    %v4758 = vpack.c.b16 %v4725, %v4722
    %v4759 = vpack.c.b16 %v4729, %v4726
    %v4760 = vpack.c.b16 %v4730, %v4727
    %v4761 = vpack.c.b16 %v4731, %v4728
    %v4762 = vpack.c.b16 %v4735, %v4732
    %v4763 = vpack.c.b16 %v4736, %v4733
    %v4764 = vpack.c.b16 %v4737, %v4734
    %v4765 = vpack.c.b16 %v4741, %v4738
    %v4766 = vpack.c.b16 %v4742, %v4739
    %v4767 = vpack.c.b16 %v4743, %v4740
    %4792 = vmatprep.subr.bf16.mxu0 %v4745
    %4793 = vmatpush1.bf16.msra.mxu0 %v4744
    %4794 = vmatprep.subr.bf16.mxu0 %v4748
    %4795 = vmatpush1.bf16.msra.mxu0 %v4747
    %4796 = vmatprep.subr.bf16.mxu0 %v4751
    %4797 = vmatpush1.bf16.msra.mxu0 %v4750
    %4798 = vmatprep.subr.bf16.mxu0 %v4754
    %4799 = vmatpush1.bf16.msra.mxu0 %v4753
    %4800 = vmatprep.subr.bf16.mxu0 %v4757
    %4801 = vmatpush1.bf16.msra.mxu0 %v4756
    %4802 = vmatprep.subr.bf16.mxu0 %v4760
    %4803 = vmatpush1.bf16.msra.mxu0 %v4759
    %4804 = vmatprep.subr.bf16.mxu0 %v4763
    %4805 = vmatpush1.bf16.msra.mxu0 %v4762
    %4806 = vmatprep.subr.bf16.mxu0 %v4766
    %4807 = vmatpush1.bf16.msra.mxu0 %v4765
    %4808 = vmatprep.subr.bf16.mxu0 0
    %4809 = vmatpush1.bf16.msra.mxu0 0
    %4810 = vmatprep.subr.bf16.mxu0 0
    %4811 = vmatpush1.bf16.msra.mxu0 0
    %4812 = vmatprep.subr.bf16.mxu0 0
    %4813 = vmatpush1.bf16.msra.mxu0 0
    %4814 = vmatprep.subr.bf16.mxu0 0
    %4815 = vmatpush1.bf16.msra.mxu0 0
    %4816 = vmatprep.subr.bf16.mxu0 0
    %4817 = vmatpush1.bf16.msra.mxu0 0
    %4818 = vmatprep.subr.bf16.mxu0 0
    %4819 = vmatpush1.bf16.msra.mxu0 0
    %4820 = vmatprep.subr.bf16.mxu0 0
    %4821 = vmatpush1.bf16.msra.mxu0 0
    %4822 = vmatprep.subr.bf16.mxu0 0
    %4823 = vmatpush1.bf16.msra.mxu0 0
    %4824 = vmatprep.mubr.bf16.mxu0 0
    %4825 = vmatmul.mubr.bf16.gmra.mrb[0].mxu0 %v4614
    %v4826 = vpop.f32.mrb[0].mxu0
    %v4827 = vadd.f32 %v4652, %v4826
    %v4828 = vpop.f32.mrb[0].mxu0
    %v4829 = vadd.f32 %v4656, %v4828
    %v4830 = vpop.f32.mrb[0].mxu0
    %v4831 = vpop.f32.mrb[0].mxu0
    %4832 = vdwg.mxu0
    %4833 = vmatprep.subr.bf16.mxu0 0
    %4834 = vmatpush1.bf16.msra.mxu0 %v4746
    %4835 = vmatprep.subr.bf16.mxu0 0
    %4836 = vmatpush1.bf16.msra.mxu0 %v4749
    %4837 = vmatprep.subr.bf16.mxu0 0
    %4838 = vmatpush1.bf16.msra.mxu0 %v4752
    %4839 = vmatprep.subr.bf16.mxu0 0
    %4840 = vmatpush1.bf16.msra.mxu0 %v4755
    %4841 = vmatprep.subr.bf16.mxu0 0
    %4842 = vmatpush1.bf16.msra.mxu0 %v4758
    %4843 = vmatprep.subr.bf16.mxu0 0
    %4844 = vmatpush1.bf16.msra.mxu0 %v4761
    %4845 = vmatprep.subr.bf16.mxu0 0
    %4846 = vmatpush1.bf16.msra.mxu0 %v4764
    %4847 = vmatprep.subr.bf16.mxu0 0
    %4848 = vmatpush1.bf16.msra.mxu0 %v4767
    %4849 = vmatprep.subr.bf16.mxu0 0
    %4850 = vmatpush1.bf16.msra.mxu0 0
    %4851 = vmatprep.subr.bf16.mxu0 0
    %4852 = vmatpush1.bf16.msra.mxu0 0
    %4853 = vmatprep.subr.bf16.mxu0 0
    %4854 = vmatpush1.bf16.msra.mxu0 0
    %4855 = vmatprep.subr.bf16.mxu0 0
    %4856 = vmatpush1.bf16.msra.mxu0 0
    %4857 = vmatprep.subr.bf16.mxu0 0
    %4858 = vmatpush1.bf16.msra.mxu0 0
    %4859 = vmatprep.subr.bf16.mxu0 0
    %4860 = vmatpush1.bf16.msra.mxu0 0
    %4861 = vmatprep.subr.bf16.mxu0 0
    %4862 = vmatpush1.bf16.msra.mxu0 0
    %4863 = vmatprep.subr.bf16.mxu0 0
    %4864 = vmatpush1.bf16.msra.mxu0 0
    %4865 = vmatprep.mubr.bf16.mxu0 0
    %4866 = vmatmul.mubr.bf16.gmra.mrb[0].mxu0 %v4614
    %v4867 = vpop.f32.mrb[0].mxu0
    %v4868 = vadd.f32 %v4660, %v4867
    %v4869 = vpop.f32.mrb[0].mxu0
    %v4870 = vpop.f32.mrb[0].mxu0
    %v4871 = vpop.f32.mrb[0].mxu0
    %4872 = vdwg.mxu0
    %v4873 = vadd.f32 %v4568, %v4827
    %v4874 = vxor.u32 %v4873, 2147483648
    %v4875 = vmul.f32 %v4874, 1.442695
    %v4876 = vpow.pop %v4875
    %v4877 = vadd.f32 %v4876, 1.0
    %v4878 = vrcp.pop %v4877
    %v4879 = vmul.f32 1.0, %v4878
    %v4880 = vadd.f32 %v4570, %v4829
    %v4881 = vxor.u32 %v4880, 2147483648
    %v4882 = vmul.f32 %v4881, 1.442695
    %v4883 = vpow.pop %v4882
    %v4884 = vadd.f32 %v4883, 1.0
    %v4885 = vrcp.pop %v4884
    %v4886 = vmul.f32 1.0, %v4885
    %v4887 = vmul.f32 %v4879, %v4868
    %v4888 = vadd.f32 %v4609, %v4887
    %v4889 = vtanh.pop %v4888
    %v4890 = vsub.f32 1.0, %v4886
    %v4891 = vmul.f32 %v4890, %v4889
    %v4892 = vmul.f32 %v4886, %v124
    %v4893 = vadd.f32 %v4891, %v4892
    %v4894 = vld [vmem:[#allocation12 + $0x22] sm:$0x1]
    %v4896 = vlaneseq
    %v4897 = vshrl.u32 %v4896, 7
    %v4898 = vsub.s32 0, %v4897
    %v4899 = vrot.slane %v4894, %v4898
    %v4901 = vmul.f32 %v4354, %v4899
    %vm4902 = vcmask 1041408
    %v4903 = vsel %vm4902, %v4901, 0.0
    %4904 = vadd.xlane.f32.xlu0 %v4903
    %v4905 = vpop.xlane.xlu0 %4904
    %v4906 = vld [vmem:[#allocation12 + $0x23] sm:$0x1]
    %v4908 = vlaneseq
    %v4909 = vshrl.u32 %v4908, 7
    %v4910 = vsub.s32 0, %v4909
    %v4911 = vrot.slane %v4906, %v4910
    %v4913 = vadd.f32 %v4905, %v4911
    %4914 = vst [vmem:[%s9] sm:$0x3] %v4354
    %v4916 = vsel %vm3625, %v3616, 0
    %v4919 = vsel %vm3629, %v4893, 0
    %4921 = vmatprep.subr.mxu0 0.0
    %4922 = vmatpush1.msra.mxu0 %v4919
    %4923 = vmatprep.subr.mxu0 0.0
    %4924 = vmatpush1.msra.mxu0 0.0
    %4925 = vmatprep.subr.mxu0 0.0
    %4926 = vmatpush1.msra.mxu0 0.0
    %4927 = vmatprep.subr.mxu0 0.0
    %4928 = vmatpush1.msra.mxu0 0.0
    %4929 = vmatprep.subr.mxu0 0.0
    %4930 = vmatpush1.msra.mxu0 0.0
    %4931 = vmatprep.subr.mxu0 0.0
    %4932 = vmatpush1.msra.mxu0 0.0
    %4933 = vmatprep.subr.mxu0 0.0
    %4934 = vmatpush1.msra.mxu0 0.0
    %4935 = vmatprep.subr.mxu0 0.0
    %4936 = vmatpush1.msra.mxu0 0.0
    %4937 = vmatprep.subr.mxu0 0.0
    %4938 = vmatpush1.msra.mxu0 0.0
    %4939 = vmatprep.subr.mxu0 0.0
    %4940 = vmatpush1.msra.mxu0 0.0
    %4941 = vmatprep.subr.mxu0 0.0
    %4942 = vmatpush1.msra.mxu0 0.0
    %4943 = vmatprep.subr.mxu0 0.0
    %4944 = vmatpush1.msra.mxu0 0.0
    %4945 = vmatprep.subr.mxu0 0.0
    %4946 = vmatpush1.msra.mxu0 0.0
    %4947 = vmatprep.subr.mxu0 0.0
    %4948 = vmatpush1.msra.mxu0 0.0
    %4949 = vmatprep.subr.mxu0 0.0
    %4950 = vmatpush1.msra.mxu0 0.0
    %4951 = vmatprep.subr.mxu0 0.0
    %4952 = vmatpush1.msra.mxu0 0.0
    %4953 = vmatprep.subr.mxu0 0.0
    %4954 = vmatpush1.msra.mxu0 0.0
    %4955 = vmatprep.subr.mxu0 0.0
    %4956 = vmatpush1.msra.mxu0 0.0
    %4957 = vmatprep.subr.mxu0 0.0
    %4958 = vmatpush1.msra.mxu0 0.0
    %4959 = vmatprep.subr.mxu0 0.0
    %4960 = vmatpush1.msra.mxu0 0.0
    %4961 = vmatprep.subr.mxu0 0.0
    %4962 = vmatpush1.msra.mxu0 0.0
    %4963 = vmatprep.subr.mxu0 0.0
    %4964 = vmatpush1.msra.mxu0 0.0
    %4965 = vmatprep.subr.mxu0 0.0
    %4966 = vmatpush1.msra.mxu0 0.0
    %4967 = vmatprep.subr.mxu0 0.0
    %4968 = vmatpush1.msra.mxu0 0.0
    %4969 = vmatprep.subr.mxu0 0.0
    %4970 = vmatpush1.msra.mxu0 0.0
    %4971 = vmatprep.subr.mxu0 0.0
    %4972 = vmatpush1.msra.mxu0 0.0
    %4973 = vmatprep.subr.mxu0 0.0
    %4974 = vmatpush1.msra.mxu0 0.0
    %4975 = vmatprep.subr.mxu0 0.0
    %4976 = vmatpush1.msra.mxu0 0.0
    %4977 = vmatprep.subr.mxu0 0.0
    %4978 = vmatpush1.msra.mxu0 0.0
    %4979 = vmatprep.subr.mxu0 0.0
    %4980 = vmatpush1.msra.mxu0 0.0
    %4981 = vmatprep.subr.mxu0 0.0
    %4982 = vmatpush1.msra.mxu0 0.0
    %4983 = vmatprep.subr.mxu0 0.0
    %4984 = vmatpush1.msra.mxu0 0.0
    %4985 = vmatprep.mubr.f32.mxu0 0.0
    %4986 = vmatmul.mubr.f32.gmra.mrb[0].mxu0 %v4916
    %v4987 = vpop.f32.mrb[0].mxu0
    %v4988 = vadd.f32 0.0, %v4987
    %v4989 = vpop.f32.mrb[0].mxu0
    %4990 = vdwg.mxu0
    %4991 = vst [vmem:[%s9 + $0x2] sm:$0x3] %v4988
    %v4993 = vsel %vm3625, %v3619, 0
    %4995 = vmatprep.subr.mxu0 0.0
    %4996 = vmatpush1.msra.mxu0 %v4919
    %4997 = vmatprep.subr.mxu0 0.0
    %4998 = vmatpush1.msra.mxu0 0.0
    %4999 = vmatprep.subr.mxu0 0.0
    %5000 = vmatpush1.msra.mxu0 0.0
    %5001 = vmatprep.subr.mxu0 0.0
    %5002 = vmatpush1.msra.mxu0 0.0
    %5003 = vmatprep.subr.mxu0 0.0
    %5004 = vmatpush1.msra.mxu0 0.0
    %5005 = vmatprep.subr.mxu0 0.0
    %5006 = vmatpush1.msra.mxu0 0.0
    %5007 = vmatprep.subr.mxu0 0.0
    %5008 = vmatpush1.msra.mxu0 0.0
    %5009 = vmatprep.subr.mxu0 0.0
    %5010 = vmatpush1.msra.mxu0 0.0
    %5011 = vmatprep.subr.mxu0 0.0
    %5012 = vmatpush1.msra.mxu0 0.0
    %5013 = vmatprep.subr.mxu0 0.0
    %5014 = vmatpush1.msra.mxu0 0.0
    %5015 = vmatprep.subr.mxu0 0.0
    %5016 = vmatpush1.msra.mxu0 0.0
    %5017 = vmatprep.subr.mxu0 0.0
    %5018 = vmatpush1.msra.mxu0 0.0
    %5019 = vmatprep.subr.mxu0 0.0
    %5020 = vmatpush1.msra.mxu0 0.0
    %5021 = vmatprep.subr.mxu0 0.0
    %5022 = vmatpush1.msra.mxu0 0.0
    %5023 = vmatprep.subr.mxu0 0.0
    %5024 = vmatpush1.msra.mxu0 0.0
    %5025 = vmatprep.subr.mxu0 0.0
    %5026 = vmatpush1.msra.mxu0 0.0
    %5027 = vmatprep.subr.mxu0 0.0
    %5028 = vmatpush1.msra.mxu0 0.0
    %5029 = vmatprep.subr.mxu0 0.0
    %5030 = vmatpush1.msra.mxu0 0.0
    %5031 = vmatprep.subr.mxu0 0.0
    %5032 = vmatpush1.msra.mxu0 0.0
    %5033 = vmatprep.subr.mxu0 0.0
    %5034 = vmatpush1.msra.mxu0 0.0
    %5035 = vmatprep.subr.mxu0 0.0
    %5036 = vmatpush1.msra.mxu0 0.0
    %5037 = vmatprep.subr.mxu0 0.0
    %5038 = vmatpush1.msra.mxu0 0.0
    %5039 = vmatprep.subr.mxu0 0.0
    %5040 = vmatpush1.msra.mxu0 0.0
    %5041 = vmatprep.subr.mxu0 0.0
    %5042 = vmatpush1.msra.mxu0 0.0
    %5043 = vmatprep.subr.mxu0 0.0
    %5044 = vmatpush1.msra.mxu0 0.0
    %5045 = vmatprep.subr.mxu0 0.0
    %5046 = vmatpush1.msra.mxu0 0.0
    %5047 = vmatprep.subr.mxu0 0.0
    %5048 = vmatpush1.msra.mxu0 0.0
    %5049 = vmatprep.subr.mxu0 0.0
    %5050 = vmatpush1.msra.mxu0 0.0
    %5051 = vmatprep.subr.mxu0 0.0
    %5052 = vmatpush1.msra.mxu0 0.0
    %5053 = vmatprep.subr.mxu0 0.0
    %5054 = vmatpush1.msra.mxu0 0.0
    %5055 = vmatprep.subr.mxu0 0.0
    %5056 = vmatpush1.msra.mxu0 0.0
    %5057 = vmatprep.subr.mxu0 0.0
    %5058 = vmatpush1.msra.mxu0 0.0
    %5059 = vmatprep.mubr.f32.mxu0 0.0
    %5060 = vmatmul.mubr.f32.gmra.mrb[0].mxu0 %v4993
    %v5061 = vpop.f32.mrb[0].mxu0
    %v5062 = vadd.f32 0.0, %v5061
    %v5063 = vpop.f32.mrb[0].mxu0
    %5064 = vdwg.mxu0
    %5065 = vst [vmem:[%s9 + $0x4] sm:$0x3] %v5062
    %v5067 = vsel %vm3625, %v3622, 0
    %5069 = vmatprep.subr.mxu0 0.0
    %5070 = vmatpush1.msra.mxu0 %v4919
    %5071 = vmatprep.subr.mxu0 0.0
    %5072 = vmatpush1.msra.mxu0 0.0
    %5073 = vmatprep.subr.mxu0 0.0
    %5074 = vmatpush1.msra.mxu0 0.0
    %5075 = vmatprep.subr.mxu0 0.0
    %5076 = vmatpush1.msra.mxu0 0.0
    %5077 = vmatprep.subr.mxu0 0.0
    %5078 = vmatpush1.msra.mxu0 0.0
    %5079 = vmatprep.subr.mxu0 0.0
    %5080 = vmatpush1.msra.mxu0 0.0
    %5081 = vmatprep.subr.mxu0 0.0
    %5082 = vmatpush1.msra.mxu0 0.0
    %5083 = vmatprep.subr.mxu0 0.0
    %5084 = vmatpush1.msra.mxu0 0.0
    %5085 = vmatprep.subr.mxu0 0.0
    %5086 = vmatpush1.msra.mxu0 0.0
    %5087 = vmatprep.subr.mxu0 0.0
    %5088 = vmatpush1.msra.mxu0 0.0
    %5089 = vmatprep.subr.mxu0 0.0
    %5090 = vmatpush1.msra.mxu0 0.0
    %5091 = vmatprep.subr.mxu0 0.0
    %5092 = vmatpush1.msra.mxu0 0.0
    %5093 = vmatprep.subr.mxu0 0.0
    %5094 = vmatpush1.msra.mxu0 0.0
    %5095 = vmatprep.subr.mxu0 0.0
    %5096 = vmatpush1.msra.mxu0 0.0
    %5097 = vmatprep.subr.mxu0 0.0
    %5098 = vmatpush1.msra.mxu0 0.0
    %5099 = vmatprep.subr.mxu0 0.0
    %5100 = vmatpush1.msra.mxu0 0.0
    %5101 = vmatprep.subr.mxu0 0.0
    %5102 = vmatpush1.msra.mxu0 0.0
    %5103 = vmatprep.subr.mxu0 0.0
    %5104 = vmatpush1.msra.mxu0 0.0
    %5105 = vmatprep.subr.mxu0 0.0
    %5106 = vmatpush1.msra.mxu0 0.0
    %5107 = vmatprep.subr.mxu0 0.0
    %5108 = vmatpush1.msra.mxu0 0.0
    %5109 = vmatprep.subr.mxu0 0.0
    %5110 = vmatpush1.msra.mxu0 0.0
    %5111 = vmatprep.subr.mxu0 0.0
    %5112 = vmatpush1.msra.mxu0 0.0
    %5113 = vmatprep.subr.mxu0 0.0
    %5114 = vmatpush1.msra.mxu0 0.0
    %5115 = vmatprep.subr.mxu0 0.0
    %5116 = vmatpush1.msra.mxu0 0.0
    %5117 = vmatprep.subr.mxu0 0.0
    %5118 = vmatpush1.msra.mxu0 0.0
    %5119 = vmatprep.subr.mxu0 0.0
    %5120 = vmatpush1.msra.mxu0 0.0
    %5121 = vmatprep.subr.mxu0 0.0
    %5122 = vmatpush1.msra.mxu0 0.0
    %5123 = vmatprep.subr.mxu0 0.0
    %5124 = vmatpush1.msra.mxu0 0.0
    %5125 = vmatprep.subr.mxu0 0.0
    %5126 = vmatpush1.msra.mxu0 0.0
    %5127 = vmatprep.subr.mxu0 0.0
    %5128 = vmatpush1.msra.mxu0 0.0
    %5129 = vmatprep.subr.mxu0 0.0
    %5130 = vmatpush1.msra.mxu0 0.0
    %5131 = vmatprep.subr.mxu0 0.0
    %5132 = vmatpush1.msra.mxu0 0.0
    %5133 = vmatprep.mubr.f32.mxu0 0.0
    %5134 = vmatmul.mubr.f32.gmra.mrb[0].mxu0 %v5067
    %v5135 = vpop.f32.mrb[0].mxu0
    %v5136 = vadd.f32 0.0, %v5135
    %v5137 = vpop.f32.mrb[0].mxu0
    %5138 = vdwg.mxu0
    %5139 = vst [vmem:[%s9 + $0x6] sm:$0x3] %v5136
    %5140 = vst [vmem:[%s9 + $0x8] sm:$0x3] %v4913
    // Predicated region
    $region66: #{rnnbase_forward.1} parent=1 // pred_check
      _
    $region67: #{rnnbase_forward.1} parent=1 // pred_check_branch
      %5142 = sbr.rel (0) target = $region69
    $region68: #{rnnbase_forward.1} parent=1 // pred_region
      _
    $region69: #{rnnbase_forward.1} parent=1 // pred_fallthru
      _
    // Predicated region
    $region70: #{rnnbase_forward.1} parent=1 // pred_check
      _
    $region71: #{rnnbase_forward.1} parent=1 // pred_check_branch
      %5144 = sbr.rel (0) target = $region73
    $region72: #{rnnbase_forward.1} parent=1 // pred_region
      _
    $region73: #{rnnbase_forward.1} parent=1 // pred_fallthru
      _
    %5145 = vsyncpa [#allocation3], 1
    %5146 = vsyncpa [#allocation5], 1
    %5147 = vsyncpa [#allocation8], 1
    %5148 = vsyncpa [#allocation11], 1

</llo_original>
